<compile_context>
chip_gen: v7x
topology: tpu7x:2x2x1
jax: 0.10.0
libtpu: 0.0.40
codegen_flags: <defaults>
</compile_context>

<pallas_src>
import functools

import jax
import jax.numpy as jnp
from jax.experimental import pallas as pl
from jax.experimental.pallas import tpu as pltpu

TILE_M = 1024          # GEMM row tile (fits v5e 16 MiB scoped VMEM with headroom)
POOL_TILE = 128        # max-pool row tile (small trailing slabs pad to (8,128) in VMEM)
MXU_INPUT_DTYPE = jnp.float32   # set to jnp.bfloat16 on v6e/v7x for ~2x MXU throughput
                                # (epilogue / accumulation stay f32 either way)


# ----------------------------- Pallas kernels -----------------------------

def _gemm_kernel(x_ref, w_ref, b_ref, o_ref, *stats_refs,
                 relu, emit_stats, block_m, m_total):
    """Row-tile GEMM: o = act(x @ w + b).  Optionally emits per-tile partial
    sums / sums-of-squares of the epilogue output (rows 0/1 of an (8, N) block)."""
    x = x_ref[...].astype(MXU_INPUT_DTYPE)
    w = w_ref[...].astype(MXU_INPUT_DTYPE)
    acc = jnp.dot(x, w, preferred_element_type=jnp.float32)
    acc = acc + b_ref[...]
    if relu:
        acc = jnp.maximum(acc, 0.0)
    o_ref[...] = acc
    if emit_stats:
        st_ref = stats_refs[0]
        if m_total % block_m != 0:
            # Mask rows of the (partial) final tile so garbage rows don't poison stats.
            rid = (jax.lax.broadcasted_iota(jnp.int32, acc.shape, 0)
                   + pl.program_id(0) * block_m)
            vals = jnp.where(rid < m_total, acc, 0.0)
        else:
            vals = acc
        s = jnp.sum(vals, axis=0, keepdims=True)            # (1, N)
        ss = jnp.sum(vals * vals, axis=0, keepdims=True)     # (1, N)
        row = jax.lax.broadcasted_iota(jnp.int32, (8, acc.shape[1]), 0)
        st_ref[...] = jnp.where(row == 0, s, 0.0) + jnp.where(row == 1, ss, 0.0)


def gemm_bias_act(x, w, b, *, relu=False, return_stats=False):
    """(M, K) @ (K, N) + b with optional fused ReLU.  No HBM padding of K/N: blocks use
    full-extent K and N_out (Mosaic pads in VMEM).  Tiled over rows, "parallel" grid."""
    M, K = x.shape
    Kw, Nout = w.shape
    assert K == Kw
    x = x.astype(jnp.float32)
    w = w.astype(jnp.float32)
    b = b.reshape(1, Nout).astype(jnp.float32)

    bm = M if M <= TILE_M else TILE_M
    n_tiles = pl.cdiv(M, bm)

    out_shape = [jax.ShapeDtypeStruct((M, Nout), jnp.float32)]
    out_specs = [pl.BlockSpec((bm, Nout), lambda i: (i, 0))]
    if return_stats:
        out_shape.append(jax.ShapeDtypeStruct((n_tiles * 8, Nout), jnp.float32))
        out_specs.append(pl.BlockSpec((8, Nout), lambda i: (i, 0)))

    kern = functools.partial(_gemm_kernel, relu=relu, emit_stats=return_stats,
                             block_m=bm, m_total=M)
    res = pl.pallas_call(
        kern,
        grid=(n_tiles,),
        in_specs=[
            pl.BlockSpec((bm, K), lambda i: (i, 0)),      # activations: row tile, full K
            pl.BlockSpec((K, Nout), lambda i: (0, 0)),    # weight: resident
            pl.BlockSpec((1, Nout), lambda i: (0, 0)),    # bias: resident
        ],
        out_specs=out_specs if return_stats else out_specs[0],
        out_shape=out_shape if return_stats else out_shape[0],
        compiler_params=pltpu.CompilerParams(dimension_semantics=("parallel",)),
    )(x, w, b)

    if return_stats:
        y, st = res
        st = st.reshape(n_tiles, 8, Nout)
        return y, jnp.sum(st[:, 0, :], axis=0), jnp.sum(st[:, 1, :], axis=0)
    return res


def _pool_kernel(x_ref, o_ref, *, c):
    """x block: (TB, 2, Wo, 2*C) -> 2x2 max -> (TB, Wo, C)."""
    x = x_ref[...]                               # (TB, 2, Wo, 2C)
    m = jnp.maximum(x[:, 0], x[:, 1])            # max over the H pair (leading dim)
    o_ref[...] = jnp.maximum(m[..., :c], m[..., c:])   # max over the W pair (lane halves)


def maxpool_2x2(x_nhwc):
    """2x2 / stride-2 max pool on NHWC.  The input reshape is free (row-major regroup),
    so the pool reads / writes each activation exactly once (no strided-slice copies)."""
    N, H, W, C = x_nhwc.shape
    assert H % 2 == 0 and W % 2 == 0
    Ho, Wo = H // 2, W // 2
    R = N * Ho
    xr = x_nhwc.reshape(R, 2, Wo, 2 * C)          # free reshape: pairs -> leading/lane dims
    bm = R if R <= POOL_TILE else POOL_TILE
    out = pl.pallas_call(
        functools.partial(_pool_kernel, c=C),
        grid=(pl.cdiv(R, bm),),
        in_specs=[pl.BlockSpec((bm, 2, Wo, 2 * C), lambda i: (i, 0, 0, 0))],
        out_specs=pl.BlockSpec((bm, Wo, C), lambda i: (i, 0, 0)),
        out_shape=jax.ShapeDtypeStruct((R, Wo, C), jnp.float32),
        compiler_params=pltpu.CompilerParams(dimension_semantics=("parallel",)),
    )(xr)
    return out.reshape(N, Ho, Wo, C)


# ------------------------------- JAX glue ----------------------------------

def _im2col(xp, k, ho, wo):
    """xp: spatially padded NHWC.  Returns (N*ho*wo, k*k*C), columns ordered (kh, kw, c)
    so it matches the (kh, kw, cin) row order of the prepared conv weights (no transpose
    of the expanded patches tensor is ever materialized)."""
    n, _, _, c = xp.shape
    pat = jnp.concatenate(
        [xp[:, i:i + ho, j:j + wo, :] for i in range(k) for j in range(k)], axis=-1)
    return pat.reshape(n * ho * wo, k * k * c)


def init_params(key):
    """Torch-layout parameters of MnistCNN (xavier-uniform weights, zero biases)."""
    def xavier(k, shape, fan_in, fan_out):
        bound = (6.0 / (fan_in + fan_out)) ** 0.5
        return jax.random.uniform(k, shape, jnp.float32, -bound, bound)

    ks = jax.random.split(key, 5)
    p = {}
    p["conv1_w"] = xavier(ks[0], (16, 1, 5, 5), 1 * 25, 16 * 25)
    p["conv1_b"] = jnp.zeros((16,), jnp.float32)
    p["conv2_w"] = xavier(ks[1], (32, 16, 2, 2), 16 * 4, 32 * 4)
    p["conv2_b"] = jnp.zeros((32,), jnp.float32)
    p["bn2_g"] = jnp.ones((32,), jnp.float32)
    p["bn2_b"] = jnp.zeros((32,), jnp.float32)
    p["conv3_w"] = xavier(ks[2], (8, 32, 1, 1), 32, 8)
    p["conv3_b"] = jnp.zeros((8,), jnp.float32)
    p["fc1_w"] = xavier(ks[3], (64, 512), 512, 64)      # torch Linear layout (out, in)
    p["fc1_b"] = jnp.zeros((64,), jnp.float32)
    p["bn1_g"] = jnp.ones((64,), jnp.float32)
    p["bn1_b"] = jnp.zeros((64,), jnp.float32)
    p["fc2_w"] = xavier(ks[4], (10, 64), 64, 10)
    p["fc2_b"] = jnp.zeros((10,), jnp.float32)
    return p


def prepare_params(p):
    """One-time conversion of torch-layout weights into GEMM-ready layout (done once,
    outside the hot path): conv weights -> (kh*kw*cin, cout); fc1 columns permuted from
    torch's NCHW (c,h,w) flatten to our NHWC (h,w,c) flatten (removes the transpose)."""
    g = {}
    g["w1"] = p["conv1_w"].transpose(2, 3, 1, 0).reshape(25, 16)
    g["b1"] = p["conv1_b"].reshape(1, 16)
    g["w2"] = p["conv2_w"].transpose(2, 3, 1, 0).reshape(64, 32)
    g["b2"] = p["conv2_b"].reshape(1, 32)
    g["w3"] = p["conv3_w"].reshape(8, 32).T                 # (cin=32, cout=8)
    g["b3"] = p["conv3_b"].reshape(1, 8)
    g["bn2_g"], g["bn2_b"] = p["bn2_g"], p["bn2_b"]
    g["wfc1"] = p["fc1_w"].reshape(64, 8, 8, 8).transpose(2, 3, 1, 0).reshape(512, 64)
    g["bfc1"] = p["fc1_b"].reshape(1, 64)
    g["bn1_g"], g["bn1_b"] = p["bn1_g"], p["bn1_b"]
    g["wfc2"] = p["fc2_w"].T                                # (64, 10)
    g["bfc2"] = p["fc2_b"].reshape(1, 10)
    return g


def _bn_fold(bsum, bsumsq, count, gamma, beta, eps=1e-5):
    """Training-mode BN (biased variance) -> per-channel scale/shift."""
    mean = bsum / count
    var = jnp.maximum(bsumsq / count - mean * mean, 0.0)
    scale = gamma * jax.lax.rsqrt(var + eps)
    shift = beta - mean * scale
    return scale, shift


def mnist_cnn_forward(gp, x_nchw):
    """Forward pass of MnistCNN.  x_nchw: (N, 1, 28, 28) float32. Returns (N, 10)."""
    N = x_nchw.shape[0]
    x = x_nchw.reshape(N, 28, 28, 1).astype(jnp.float32)          # NCHW(C=1)->NHWC, free

    # conv1 (k=5, pad=1): im2col + GEMM(+bias) -> (N,26,26,16)
    xp = jnp.pad(x, ((0, 0), (1, 1), (1, 1), (0, 0)))
    p1 = _im2col(xp, 5, 26, 26)                                   # (N*676, 25)
    y1 = gemm_bias_act(p1, gp["w1"], gp["b1"])                    # (N*676, 16)

    # pool1 -> (N,13,13,16)
    y1 = maxpool_2x2(y1.reshape(N, 26, 26, 16))

    # conv2 (k=2, pad=1) -> (N,14,14,32); BN2 partial stats fused into the GEMM.
    xp2 = jnp.pad(y1, ((0, 0), (1, 1), (1, 1), (0, 0)))           # (N,15,15,16)
    p2 = _im2col(xp2, 2, 14, 14)                                  # (N*196, 64)
    y2, s2, ss2 = gemm_bias_act(p2, gp["w2"], gp["b2"], return_stats=True)

    # BatchNorm2d (training-mode batch stats) folded into conv3's 1x1 weights.
    scale2, shift2 = _bn_fold(s2, ss2, N * 14 * 14, gp["bn2_g"], gp["bn2_b"])
    w3f = scale2[:, None] * gp["w3"]                              # (32, 8)
    b3f = gp["b3"] + shift2 @ gp["w3"]                            # (1, 8)

    # conv3 (1x1, pad=1) + ReLU: interior via GEMM on conv2's output rows; the padding
    # ring of the 16x16 output is the constant relu(b3) (conv of zero padding).
    y3i = gemm_bias_act(y2, w3f, b3f, relu=True)                  # (N*196, 8)
    border = jnp.maximum(gp["b3"], 0.0).reshape(1, 1, 1, 8)
    y3 = jnp.broadcast_to(border, (N, 16, 16, 8))
    y3 = y3.at[:, 1:15, 1:15, :].set(y3i.reshape(N, 14, 14, 8))   # (N,16,16,8)

    # pool2 -> (N,8,8,8)
    y4 = maxpool_2x2(y3)
    # TODO(synk): Dropout(p=0.5) train-mode masking omitted (identity / eval semantics).

    # Flatten in NHWC (h,w,c) order; fc1's columns were pre-permuted to match, so no
    # NHWC->NCHW transpose is needed.  fc1 + ReLU, with BN1 partial stats fused.
    h = y4.reshape(N, 512)
    h1, s1, ss1 = gemm_bias_act(h, gp["wfc1"], gp["bfc1"], relu=True, return_stats=True)

    # BatchNorm1d (training-mode batch stats) folded into fc2.
    scale1, shift1 = _bn_fold(s1, ss1, N, gp["bn1_g"], gp["bn1_b"])
    wfc2f = scale1[:, None] * gp["wfc2"]                          # (64, 10)
    bfc2f = gp["bfc2"] + shift1 @ gp["wfc2"]                      # (1, 10)
    out = gemm_bias_act(h1, wfc2f, bfc2f)                         # (N, 10)
    return out


if __name__ == "__main__":
    key = jax.random.PRNGKey(0)
    pkey, xkey = jax.random.split(key)
    params = init_params(pkey)
    gemm_params = prepare_params(params)       # one-time weight layout prep (hot path clean)
    # MNIST-shaped input: the architecture requires 28x28x1 to yield the 8*8*8 flatten.
    x = jax.random.normal(xkey, (2, 1, 28, 28), dtype=jnp.float32)
    out = jax.jit(mnist_cnn_forward)(gemm_params, x)
    jax.block_until_ready(out)
    assert out.shape == (2, 10) and out.dtype == jnp.float32
    print("KERNEL_OK")
</pallas_src>

<mosaic_0001>
module attributes {stable_mosaic.version = 11 : i64} {
  func.func @_gemm_kernel(%arg0: i32, %arg1: memref<1024x25xf32, #tpu.memory_space<vmem>>, %arg2: memref<25x16xf32, #tpu.memory_space<vmem>>, %arg3: memref<1x16xf32, #tpu.memory_space<vmem>>, %arg4: memref<1024x16xf32, #tpu.memory_space<vmem>>) attributes {dimension_semantics = [#tpu.dimension_semantics<parallel>], iteration_bounds = array<i64: 2>, scalar_prefetch = 0 : i64, scratch_operands = 0 : i64, tpu.core_type = #tpu.core_type<tc>, window_params = [{transform_indices = @transform_0, window_bounds = array<i64: 1024, 25>}, {pipeline_mode = #tpu.pipeline_mode<synchronous>, transform_indices = @transform_1, window_bounds = array<i64: 25, 16>}, {pipeline_mode = #tpu.pipeline_mode<synchronous>, transform_indices = @transform_2, window_bounds = array<i64: 1, 16>}, {transform_indices = @transform_3, window_bounds = array<i64: 1024, 16>}]} {
    %c0 = arith.constant 0 : index
    %c0_0 = arith.constant 0 : index
    %0 = vector.load %arg1[%c0, %c0_0] : memref<1024x25xf32, #tpu.memory_space<vmem>>, vector<1024x25xf32>
    %c0_1 = arith.constant 0 : index
    %c0_2 = arith.constant 0 : index
    %1 = vector.load %arg2[%c0_1, %c0_2] : memref<25x16xf32, #tpu.memory_space<vmem>>, vector<25x16xf32>
    %cst = arith.constant dense<0.000000e+00> : vector<1024x16xf32>
    %2 = tpu.matmul %0, %1, %cst {dimension_numbers = #tpu.dot_dimension_numbers<[1], [0], [0], [1], [0, 0, 1, 1], [], []>} : vector<1024x25xf32>, vector<25x16xf32>, vector<1024x16xf32> -> vector<1024x16xf32>
    %c0_3 = arith.constant 0 : index
    %c0_4 = arith.constant 0 : index
    %3 = vector.load %arg3[%c0_3, %c0_4] : memref<1x16xf32, #tpu.memory_space<vmem>>, vector<1x16xf32>
    %4 = vector.broadcast %3 : vector<1x16xf32> to vector<1024x16xf32>
    %5 = arith.addf %2, %4 : vector<1024x16xf32>
    %c0_5 = arith.constant 0 : index
    %c0_6 = arith.constant 0 : index
    %6 = vector.load %arg4[%c0_5, %c0_6] : memref<1024x16xf32, #tpu.memory_space<vmem>>, vector<1024x16xf32>
    tpu.vector_store %arg4[%c0_5, %c0_6], %5 {strides = array<i32>} : memref<1024x16xf32, #tpu.memory_space<vmem>>, vector<1024x16xf32>,
    return
  }
  func.func @transform_0(%arg0: i32) -> (i32, i32) {
    %c0_i32 = arith.constant 0 : i32
    %c0_i32_0 = arith.constant 0 : i32
    return %arg0, %c0_i32 : i32, i32
  }
  func.func @transform_1(%arg0: i32) -> (i32, i32) {
    %c0_i32 = arith.constant 0 : i32
    %c0_i32_0 = arith.constant 0 : i32
    %c0_i32_1 = arith.constant 0 : i32
    return %c0_i32, %c0_i32_0 : i32, i32
  }
  func.func @transform_2(%arg0: i32) -> (i32, i32) {
    %c0_i32 = arith.constant 0 : i32
    %c0_i32_0 = arith.constant 0 : i32
    %c0_i32_1 = arith.constant 0 : i32
    return %c0_i32, %c0_i32_0 : i32, i32
  }
  func.func @transform_3(%arg0: i32) -> (i32, i32) {
    %c0_i32 = arith.constant 0 : i32
    %c0_i32_0 = arith.constant 0 : i32
    return %arg0, %c0_i32 : i32, i32
  }
}

module attributes {stable_mosaic.version = 11 : i64} {
  func.func @_pool_kernel(%arg0: i32, %arg1: memref<26x2x13x32xf32, #tpu.memory_space<vmem>>, %arg2: memref<26x13x16xf32, #tpu.memory_space<vmem>>) attributes {dimension_semantics = [#tpu.dimension_semantics<parallel>], iteration_bounds = array<i64: 1>, scalar_prefetch = 0 : i64, scratch_operands = 0 : i64, tpu.core_type = #tpu.core_type<tc>, window_params = [{transform_indices = @transform_0, window_bounds = array<i64: 26, 2, 13, 32>}, {transform_indices = @transform_1, window_bounds = array<i64: 26, 13, 16>}]} {
    %c0 = arith.constant 0 : index
    %c0_0 = arith.constant 0 : index
    %c0_1 = arith.constant 0 : index
    %c0_2 = arith.constant 0 : index
    %0 = vector.load %arg1[%c0, %c0_0, %c0_1, %c0_2] : memref<26x2x13x32xf32, #tpu.memory_space<vmem>>, vector<26x2x13x32xf32>
    %1 = vector.extract_strided_slice %0 {offsets = [0, 0, 0, 0], sizes = [26, 1, 13, 32], strides = [1, 1, 1, 1]} : vector<26x2x13x32xf32> to vector<26x1x13x32xf32>
    %2 = vector.shape_cast %1 : vector<26x1x13x32xf32> to vector<26x13x32xf32>
    %3 = vector.extract_strided_slice %0 {offsets = [0, 1, 0, 0], sizes = [26, 1, 13, 32], strides = [1, 1, 1, 1]} : vector<26x2x13x32xf32> to vector<26x1x13x32xf32>
    %4 = vector.shape_cast %3 : vector<26x1x13x32xf32> to vector<26x13x32xf32>
    %5 = arith.maximumf %2, %4 : vector<26x13x32xf32>
    %6 = vector.extract_strided_slice %5 {offsets = [0, 0, 0], sizes = [26, 13, 16], strides = [1, 1, 1]} : vector<26x13x32xf32> to vector<26x13x16xf32>
    %7 = vector.extract_strided_slice %5 {offsets = [0, 0, 16], sizes = [26, 13, 16], strides = [1, 1, 1]} : vector<26x13x32xf32> to vector<26x13x16xf32>
    %8 = arith.maximumf %6, %7 : vector<26x13x16xf32>
    %c0_3 = arith.constant 0 : index
    %c0_4 = arith.constant 0 : index
    %c0_5 = arith.constant 0 : index
    %9 = vector.load %arg2[%c0_3, %c0_4, %c0_5] : memref<26x13x16xf32, #tpu.memory_space<vmem>>, vector<26x13x16xf32>
    tpu.vector_store %arg2[%c0_3, %c0_4, %c0_5], %8 {strides = array<i32>} : memref<26x13x16xf32, #tpu.memory_space<vmem>>, vector<26x13x16xf32>,
    return
  }
  func.func @transform_0(%arg0: i32) -> (i32, i32, i32, i32) {
    %c0_i32 = arith.constant 0 : i32
    %c0_i32_0 = arith.constant 0 : i32
    %c0_i32_1 = arith.constant 0 : i32
    %c0_i32_2 = arith.constant 0 : i32
    return %arg0, %c0_i32, %c0_i32_0, %c0_i32_1 : i32, i32, i32, i32
  }
  func.func @transform_1(%arg0: i32) -> (i32, i32, i32) {
    %c0_i32 = arith.constant 0 : i32
    %c0_i32_0 = arith.constant 0 : i32
    %c0_i32_1 = arith.constant 0 : i32
    return %arg0, %c0_i32, %c0_i32_0 : i32, i32, i32
  }
}

module attributes {stable_mosaic.version = 11 : i64} {
  func.func @_gemm_kernel(%arg0: i32, %arg1: memref<392x64xf32, #tpu.memory_space<vmem>>, %arg2: memref<64x32xf32, #tpu.memory_space<vmem>>, %arg3: memref<1x32xf32, #tpu.memory_space<vmem>>, %arg4: memref<392x32xf32, #tpu.memory_space<vmem>>, %arg5: memref<8x32xf32, #tpu.memory_space<vmem>>) attributes {dimension_semantics = [#tpu.dimension_semantics<parallel>], iteration_bounds = array<i64: 1>, scalar_prefetch = 0 : i64, scratch_operands = 0 : i64, tpu.core_type = #tpu.core_type<tc>, window_params = [{transform_indices = @transform_0, window_bounds = array<i64: 392, 64>}, {pipeline_mode = #tpu.pipeline_mode<synchronous>, transform_indices = @transform_1, window_bounds = array<i64: 64, 32>}, {pipeline_mode = #tpu.pipeline_mode<synchronous>, transform_indices = @transform_2, window_bounds = array<i64: 1, 32>}, {transform_indices = @transform_3, window_bounds = array<i64: 392, 32>}, {transform_indices = @transform_4, window_bounds = array<i64: 8, 32>}]} {
    %c0 = arith.constant 0 : index
    %c0_0 = arith.constant 0 : index
    %0 = vector.load %arg1[%c0, %c0_0] : memref<392x64xf32, #tpu.memory_space<vmem>>, vector<392x64xf32>
    %c0_1 = arith.constant 0 : index
    %c0_2 = arith.constant 0 : index
    %1 = vector.load %arg2[%c0_1, %c0_2] : memref<64x32xf32, #tpu.memory_space<vmem>>, vector<64x32xf32>
    %cst = arith.constant dense<0.000000e+00> : vector<392x32xf32>
    %2 = tpu.matmul %0, %1, %cst {dimension_numbers = #tpu.dot_dimension_numbers<[1], [0], [0], [1], [0, 0, 1, 1], [], []>} : vector<392x64xf32>, vector<64x32xf32>, vector<392x32xf32> -> vector<392x32xf32>
    %c0_3 = arith.constant 0 : index
    %c0_4 = arith.constant 0 : index
    %3 = vector.load %arg3[%c0_3, %c0_4] : memref<1x32xf32, #tpu.memory_space<vmem>>, vector<1x32xf32>
    %4 = vector.broadcast %3 : vector<1x32xf32> to vector<392x32xf32>
    %5 = arith.addf %2, %4 : vector<392x32xf32>
    %c0_5 = arith.constant 0 : index
    %c0_6 = arith.constant 0 : index
    %6 = vector.load %arg4[%c0_5, %c0_6] : memref<392x32xf32, #tpu.memory_space<vmem>>, vector<392x32xf32>
    tpu.vector_store %arg4[%c0_5, %c0_6], %5 {strides = array<i32>} : memref<392x32xf32, #tpu.memory_space<vmem>>, vector<392x32xf32>,
    %cst_7 = arith.constant dense<0.000000e+00> : vector<32xf32>
    %7 = vector.multi_reduction <add>, %5, %cst_7 [0] : vector<392x32xf32> to vector<32xf32>
    %8 = vector.shape_cast %7 : vector<32xf32> to vector<1x32xf32>
    %9 = arith.mulf %5, %5 : vector<392x32xf32>
    %cst_8 = arith.constant dense<0.000000e+00> : vector<32xf32>
    %10 = vector.multi_reduction <add>, %9, %cst_8 [0] : vector<392x32xf32> to vector<32xf32>
    %11 = vector.shape_cast %10 : vector<32xf32> to vector<1x32xf32>
    %12 = tpu.iota {dimensions = array<i32: 0>} : vector<8x32xi32>
    %c0_i32 = arith.constant 0 : i32
    %13 = vector.broadcast %c0_i32 : i32 to vector<8x32xi32>
    %14 = arith.cmpi eq, %12, %13 : vector<8x32xi32>
    %cst_9 = arith.constant 0.000000e+00 : f32
    %15 = vector.shape_cast %8 : vector<1x32xf32> to vector<1x32xf32>
    %16 = vector.broadcast %15 : vector<1x32xf32> to vector<8x32xf32>
    %17 = vector.broadcast %cst_9 : f32 to vector<8x32xf32>
    %18 = arith.select %14, %16, %17 : vector<8x32xi1>, vector<8x32xf32>
    %c1_i32 = arith.constant 1 : i32
    %19 = vector.broadcast %c1_i32 : i32 to vector<8x32xi32>
    %20 = arith.cmpi eq, %12, %19 : vector<8x32xi32>
    %cst_10 = arith.constant 0.000000e+00 : f32
    %21 = vector.shape_cast %11 : vector<1x32xf32> to vector<1x32xf32>
    %22 = vector.broadcast %21 : vector<1x32xf32> to vector<8x32xf32>
    %23 = vector.broadcast %cst_10 : f32 to vector<8x32xf32>
    %24 = arith.select %20, %22, %23 : vector<8x32xi1>, vector<8x32xf32>
    %25 = arith.addf %18, %24 : vector<8x32xf32>
    %c0_11 = arith.constant 0 : index
    %c0_12 = arith.constant 0 : index
    %26 = vector.load %arg5[%c0_11, %c0_12] : memref<8x32xf32, #tpu.memory_space<vmem>>, vector<8x32xf32>
    tpu.vector_store %arg5[%c0_11, %c0_12], %25 {strides = array<i32>} : memref<8x32xf32, #tpu.memory_space<vmem>>, vector<8x32xf32>,
    return
  }
  func.func @transform_0(%arg0: i32) -> (i32, i32) {
    %c0_i32 = arith.constant 0 : i32
    %c0_i32_0 = arith.constant 0 : i32
    return %arg0, %c0_i32 : i32, i32
  }
  func.func @transform_1(%arg0: i32) -> (i32, i32) {
    %c0_i32 = arith.constant 0 : i32
    %c0_i32_0 = arith.constant 0 : i32
    %c0_i32_1 = arith.constant 0 : i32
    return %c0_i32, %c0_i32_0 : i32, i32
  }
  func.func @transform_2(%arg0: i32) -> (i32, i32) {
    %c0_i32 = arith.constant 0 : i32
    %c0_i32_0 = arith.constant 0 : i32
    %c0_i32_1 = arith.constant 0 : i32
    return %c0_i32, %c0_i32_0 : i32, i32
  }
  func.func @transform_3(%arg0: i32) -> (i32, i32) {
    %c0_i32 = arith.constant 0 : i32
    %c0_i32_0 = arith.constant 0 : i32
    return %arg0, %c0_i32 : i32, i32
  }
  func.func @transform_4(%arg0: i32) -> (i32, i32) {
    %c0_i32 = arith.constant 0 : i32
    %c0_i32_0 = arith.constant 0 : i32
    return %arg0, %c0_i32 : i32, i32
  }
}

module attributes {stable_mosaic.version = 11 : i64} {
  func.func @_gemm_kernel(%arg0: i32, %arg1: memref<392x32xf32, #tpu.memory_space<vmem>>, %arg2: memref<32x8xf32, #tpu.memory_space<vmem>>, %arg3: memref<1x8xf32, #tpu.memory_space<vmem>>, %arg4: memref<392x8xf32, #tpu.memory_space<vmem>>) attributes {dimension_semantics = [#tpu.dimension_semantics<parallel>], iteration_bounds = array<i64: 1>, scalar_prefetch = 0 : i64, scratch_operands = 0 : i64, tpu.core_type = #tpu.core_type<tc>, window_params = [{transform_indices = @transform_0, window_bounds = array<i64: 392, 32>}, {pipeline_mode = #tpu.pipeline_mode<synchronous>, transform_indices = @transform_1, window_bounds = array<i64: 32, 8>}, {pipeline_mode = #tpu.pipeline_mode<synchronous>, transform_indices = @transform_2, window_bounds = array<i64: 1, 8>}, {transform_indices = @transform_3, window_bounds = array<i64: 392, 8>}]} {
    %c0 = arith.constant 0 : index
    %c0_0 = arith.constant 0 : index
    %0 = vector.load %arg1[%c0, %c0_0] : memref<392x32xf32, #tpu.memory_space<vmem>>, vector<392x32xf32>
    %c0_1 = arith.constant 0 : index
    %c0_2 = arith.constant 0 : index
    %1 = vector.load %arg2[%c0_1, %c0_2] : memref<32x8xf32, #tpu.memory_space<vmem>>, vector<32x8xf32>
    %cst = arith.constant dense<0.000000e+00> : vector<392x8xf32>
    %2 = tpu.matmul %0, %1, %cst {dimension_numbers = #tpu.dot_dimension_numbers<[1], [0], [0], [1], [0, 0, 1, 1], [], []>} : vector<392x32xf32>, vector<32x8xf32>, vector<392x8xf32> -> vector<392x8xf32>
    %c0_3 = arith.constant 0 : index
    %c0_4 = arith.constant 0 : index
    %3 = vector.load %arg3[%c0_3, %c0_4] : memref<1x8xf32, #tpu.memory_space<vmem>>, vector<1x8xf32>
    %4 = vector.broadcast %3 : vector<1x8xf32> to vector<392x8xf32>
    %5 = arith.addf %2, %4 : vector<392x8xf32>
    %cst_5 = arith.constant 0.000000e+00 : f32
    %6 = vector.broadcast %cst_5 : f32 to vector<392x8xf32>
    %7 = arith.maximumf %5, %6 : vector<392x8xf32>
    %c0_6 = arith.constant 0 : index
    %c0_7 = arith.constant 0 : index
    %8 = vector.load %arg4[%c0_6, %c0_7] : memref<392x8xf32, #tpu.memory_space<vmem>>, vector<392x8xf32>
    tpu.vector_store %arg4[%c0_6, %c0_7], %7 {strides = array<i32>} : memref<392x8xf32, #tpu.memory_space<vmem>>, vector<392x8xf32>,
    return
  }
  func.func @transform_0(%arg0: i32) -> (i32, i32) {
    %c0_i32 = arith.constant 0 : i32
    %c0_i32_0 = arith.constant 0 : i32
    return %arg0, %c0_i32 : i32, i32
  }
  func.func @transform_1(%arg0: i32) -> (i32, i32) {
    %c0_i32 = arith.constant 0 : i32
    %c0_i32_0 = arith.constant 0 : i32
    %c0_i32_1 = arith.constant 0 : i32
    return %c0_i32, %c0_i32_0 : i32, i32
  }
  func.func @transform_2(%arg0: i32) -> (i32, i32) {
    %c0_i32 = arith.constant 0 : i32
    %c0_i32_0 = arith.constant 0 : i32
    %c0_i32_1 = arith.constant 0 : i32
    return %c0_i32, %c0_i32_0 : i32, i32
  }
  func.func @transform_3(%arg0: i32) -> (i32, i32) {
    %c0_i32 = arith.constant 0 : i32
    %c0_i32_0 = arith.constant 0 : i32
    return %arg0, %c0_i32 : i32, i32
  }
}

module attributes {stable_mosaic.version = 11 : i64} {
  func.func @_pool_kernel(%arg0: i32, %arg1: memref<16x2x8x16xf32, #tpu.memory_space<vmem>>, %arg2: memref<16x8x8xf32, #tpu.memory_space<vmem>>) attributes {dimension_semantics = [#tpu.dimension_semantics<parallel>], iteration_bounds = array<i64: 1>, scalar_prefetch = 0 : i64, scratch_operands = 0 : i64, tpu.core_type = #tpu.core_type<tc>, window_params = [{transform_indices = @transform_0, window_bounds = array<i64: 16, 2, 8, 16>}, {transform_indices = @transform_1, window_bounds = array<i64: 16, 8, 8>}]} {
    %c0 = arith.constant 0 : index
    %c0_0 = arith.constant 0 : index
    %c0_1 = arith.constant 0 : index
    %c0_2 = arith.constant 0 : index
    %0 = vector.load %arg1[%c0, %c0_0, %c0_1, %c0_2] : memref<16x2x8x16xf32, #tpu.memory_space<vmem>>, vector<16x2x8x16xf32>
    %1 = vector.extract_strided_slice %0 {offsets = [0, 0, 0, 0], sizes = [16, 1, 8, 16], strides = [1, 1, 1, 1]} : vector<16x2x8x16xf32> to vector<16x1x8x16xf32>
    %2 = vector.shape_cast %1 : vector<16x1x8x16xf32> to vector<16x8x16xf32>
    %3 = vector.extract_strided_slice %0 {offsets = [0, 1, 0, 0], sizes = [16, 1, 8, 16], strides = [1, 1, 1, 1]} : vector<16x2x8x16xf32> to vector<16x1x8x16xf32>
    %4 = vector.shape_cast %3 : vector<16x1x8x16xf32> to vector<16x8x16xf32>
    %5 = arith.maximumf %2, %4 : vector<16x8x16xf32>
    %6 = vector.extract_strided_slice %5 {offsets = [0, 0, 0], sizes = [16, 8, 8], strides = [1, 1, 1]} : vector<16x8x16xf32> to vector<16x8x8xf32>
    %7 = vector.extract_strided_slice %5 {offsets = [0, 0, 8], sizes = [16, 8, 8], strides = [1, 1, 1]} : vector<16x8x16xf32> to vector<16x8x8xf32>
    %8 = arith.maximumf %6, %7 : vector<16x8x8xf32>
    %c0_3 = arith.constant 0 : index
    %c0_4 = arith.constant 0 : index
    %c0_5 = arith.constant 0 : index
    %9 = vector.load %arg2[%c0_3, %c0_4, %c0_5] : memref<16x8x8xf32, #tpu.memory_space<vmem>>, vector<16x8x8xf32>
    tpu.vector_store %arg2[%c0_3, %c0_4, %c0_5], %8 {strides = array<i32>} : memref<16x8x8xf32, #tpu.memory_space<vmem>>, vector<16x8x8xf32>,
    return
  }
  func.func @transform_0(%arg0: i32) -> (i32, i32, i32, i32) {
    %c0_i32 = arith.constant 0 : i32
    %c0_i32_0 = arith.constant 0 : i32
    %c0_i32_1 = arith.constant 0 : i32
    %c0_i32_2 = arith.constant 0 : i32
    return %arg0, %c0_i32, %c0_i32_0, %c0_i32_1 : i32, i32, i32, i32
  }
  func.func @transform_1(%arg0: i32) -> (i32, i32, i32) {
    %c0_i32 = arith.constant 0 : i32
    %c0_i32_0 = arith.constant 0 : i32
    %c0_i32_1 = arith.constant 0 : i32
    return %arg0, %c0_i32, %c0_i32_0 : i32, i32, i32
  }
}

module attributes {stable_mosaic.version = 11 : i64} {
  func.func @_gemm_kernel(%arg0: i32, %arg1: memref<2x512xf32, #tpu.memory_space<vmem>>, %arg2: memref<512x64xf32, #tpu.memory_space<vmem>>, %arg3: memref<1x64xf32, #tpu.memory_space<vmem>>, %arg4: memref<2x64xf32, #tpu.memory_space<vmem>>, %arg5: memref<8x64xf32, #tpu.memory_space<vmem>>) attributes {dimension_semantics = [#tpu.dimension_semantics<parallel>], iteration_bounds = array<i64: 1>, scalar_prefetch = 0 : i64, scratch_operands = 0 : i64, tpu.core_type = #tpu.core_type<tc>, window_params = [{transform_indices = @transform_0, window_bounds = array<i64: 2, 512>}, {pipeline_mode = #tpu.pipeline_mode<synchronous>, transform_indices = @transform_1, window_bounds = array<i64: 512, 64>}, {pipeline_mode = #tpu.pipeline_mode<synchronous>, transform_indices = @transform_2, window_bounds = array<i64: 1, 64>}, {transform_indices = @transform_3, window_bounds = array<i64: 2, 64>}, {transform_indices = @transform_4, window_bounds = array<i64: 8, 64>}]} {
    %c0 = arith.constant 0 : index
    %c0_0 = arith.constant 0 : index
    %0 = vector.load %arg1[%c0, %c0_0] : memref<2x512xf32, #tpu.memory_space<vmem>>, vector<2x512xf32>
    %c0_1 = arith.constant 0 : index
    %c0_2 = arith.constant 0 : index
    %1 = vector.load %arg2[%c0_1, %c0_2] : memref<512x64xf32, #tpu.memory_space<vmem>>, vector<512x64xf32>
    %cst = arith.constant dense<0.000000e+00> : vector<2x64xf32>
    %2 = tpu.matmul %0, %1, %cst {dimension_numbers = #tpu.dot_dimension_numbers<[1], [0], [0], [1], [0, 0, 1, 1], [], []>} : vector<2x512xf32>, vector<512x64xf32>, vector<2x64xf32> -> vector<2x64xf32>
    %c0_3 = arith.constant 0 : index
    %c0_4 = arith.constant 0 : index
    %3 = vector.load %arg3[%c0_3, %c0_4] : memref<1x64xf32, #tpu.memory_space<vmem>>, vector<1x64xf32>
    %4 = vector.broadcast %3 : vector<1x64xf32> to vector<2x64xf32>
    %5 = arith.addf %2, %4 : vector<2x64xf32>
    %cst_5 = arith.constant 0.000000e+00 : f32
    %6 = vector.broadcast %cst_5 : f32 to vector<2x64xf32>
    %7 = arith.maximumf %5, %6 : vector<2x64xf32>
    %c0_6 = arith.constant 0 : index
    %c0_7 = arith.constant 0 : index
    %8 = vector.load %arg4[%c0_6, %c0_7] : memref<2x64xf32, #tpu.memory_space<vmem>>, vector<2x64xf32>
    tpu.vector_store %arg4[%c0_6, %c0_7], %7 {strides = array<i32>} : memref<2x64xf32, #tpu.memory_space<vmem>>, vector<2x64xf32>,
    %cst_8 = arith.constant dense<0.000000e+00> : vector<64xf32>
    %9 = vector.multi_reduction <add>, %7, %cst_8 [0] : vector<2x64xf32> to vector<64xf32>
    %10 = vector.shape_cast %9 : vector<64xf32> to vector<1x64xf32>
    %11 = arith.mulf %7, %7 : vector<2x64xf32>
    %cst_9 = arith.constant dense<0.000000e+00> : vector<64xf32>
    %12 = vector.multi_reduction <add>, %11, %cst_9 [0] : vector<2x64xf32> to vector<64xf32>
    %13 = vector.shape_cast %12 : vector<64xf32> to vector<1x64xf32>
    %14 = tpu.iota {dimensions = array<i32: 0>} : vector<8x64xi32>
    %c0_i32 = arith.constant 0 : i32
    %15 = vector.broadcast %c0_i32 : i32 to vector<8x64xi32>
    %16 = arith.cmpi eq, %14, %15 : vector<8x64xi32>
    %cst_10 = arith.constant 0.000000e+00 : f32
    %17 = vector.shape_cast %10 : vector<1x64xf32> to vector<1x64xf32>
    %18 = vector.broadcast %17 : vector<1x64xf32> to vector<8x64xf32>
    %19 = vector.broadcast %cst_10 : f32 to vector<8x64xf32>
    %20 = arith.select %16, %18, %19 : vector<8x64xi1>, vector<8x64xf32>
    %c1_i32 = arith.constant 1 : i32
    %21 = vector.broadcast %c1_i32 : i32 to vector<8x64xi32>
    %22 = arith.cmpi eq, %14, %21 : vector<8x64xi32>
    %cst_11 = arith.constant 0.000000e+00 : f32
    %23 = vector.shape_cast %13 : vector<1x64xf32> to vector<1x64xf32>
    %24 = vector.broadcast %23 : vector<1x64xf32> to vector<8x64xf32>
    %25 = vector.broadcast %cst_11 : f32 to vector<8x64xf32>
    %26 = arith.select %22, %24, %25 : vector<8x64xi1>, vector<8x64xf32>
    %27 = arith.addf %20, %26 : vector<8x64xf32>
    %c0_12 = arith.constant 0 : index
    %c0_13 = arith.constant 0 : index
    %28 = vector.load %arg5[%c0_12, %c0_13] : memref<8x64xf32, #tpu.memory_space<vmem>>, vector<8x64xf32>
    tpu.vector_store %arg5[%c0_12, %c0_13], %27 {strides = array<i32>} : memref<8x64xf32, #tpu.memory_space<vmem>>, vector<8x64xf32>,
    return
  }
  func.func @transform_0(%arg0: i32) -> (i32, i32) {
    %c0_i32 = arith.constant 0 : i32
    %c0_i32_0 = arith.constant 0 : i32
    return %arg0, %c0_i32 : i32, i32
  }
  func.func @transform_1(%arg0: i32) -> (i32, i32) {
    %c0_i32 = arith.constant 0 : i32
    %c0_i32_0 = arith.constant 0 : i32
    %c0_i32_1 = arith.constant 0 : i32
    return %c0_i32, %c0_i32_0 : i32, i32
  }
  func.func @transform_2(%arg0: i32) -> (i32, i32) {
    %c0_i32 = arith.constant 0 : i32
    %c0_i32_0 = arith.constant 0 : i32
    %c0_i32_1 = arith.constant 0 : i32
    return %c0_i32, %c0_i32_0 : i32, i32
  }
  func.func @transform_3(%arg0: i32) -> (i32, i32) {
    %c0_i32 = arith.constant 0 : i32
    %c0_i32_0 = arith.constant 0 : i32
    return %arg0, %c0_i32 : i32, i32
  }
  func.func @transform_4(%arg0: i32) -> (i32, i32) {
    %c0_i32 = arith.constant 0 : i32
    %c0_i32_0 = arith.constant 0 : i32
    return %arg0, %c0_i32 : i32, i32
  }
}

module attributes {stable_mosaic.version = 11 : i64} {
  func.func @_gemm_kernel(%arg0: i32, %arg1: memref<2x64xf32, #tpu.memory_space<vmem>>, %arg2: memref<64x10xf32, #tpu.memory_space<vmem>>, %arg3: memref<1x10xf32, #tpu.memory_space<vmem>>, %arg4: memref<2x10xf32, #tpu.memory_space<vmem>>) attributes {dimension_semantics = [#tpu.dimension_semantics<parallel>], iteration_bounds = array<i64: 1>, scalar_prefetch = 0 : i64, scratch_operands = 0 : i64, tpu.core_type = #tpu.core_type<tc>, window_params = [{transform_indices = @transform_0, window_bounds = array<i64: 2, 64>}, {pipeline_mode = #tpu.pipeline_mode<synchronous>, transform_indices = @transform_1, window_bounds = array<i64: 64, 10>}, {pipeline_mode = #tpu.pipeline_mode<synchronous>, transform_indices = @transform_2, window_bounds = array<i64: 1, 10>}, {transform_indices = @transform_3, window_bounds = array<i64: 2, 10>}]} {
    %c0 = arith.constant 0 : index
    %c0_0 = arith.constant 0 : index
    %0 = vector.load %arg1[%c0, %c0_0] : memref<2x64xf32, #tpu.memory_space<vmem>>, vector<2x64xf32>
    %c0_1 = arith.constant 0 : index
    %c0_2 = arith.constant 0 : index
    %1 = vector.load %arg2[%c0_1, %c0_2] : memref<64x10xf32, #tpu.memory_space<vmem>>, vector<64x10xf32>
    %cst = arith.constant dense<0.000000e+00> : vector<2x10xf32>
    %2 = tpu.matmul %0, %1, %cst {dimension_numbers = #tpu.dot_dimension_numbers<[1], [0], [0], [1], [0, 0, 1, 1], [], []>} : vector<2x64xf32>, vector<64x10xf32>, vector<2x10xf32> -> vector<2x10xf32>
    %c0_3 = arith.constant 0 : index
    %c0_4 = arith.constant 0 : index
    %3 = vector.load %arg3[%c0_3, %c0_4] : memref<1x10xf32, #tpu.memory_space<vmem>>, vector<1x10xf32>
    %4 = vector.broadcast %3 : vector<1x10xf32> to vector<2x10xf32>
    %5 = arith.addf %2, %4 : vector<2x10xf32>
    %c0_5 = arith.constant 0 : index
    %c0_6 = arith.constant 0 : index
    %6 = vector.load %arg4[%c0_5, %c0_6] : memref<2x10xf32, #tpu.memory_space<vmem>>, vector<2x10xf32>
    tpu.vector_store %arg4[%c0_5, %c0_6], %5 {strides = array<i32>} : memref<2x10xf32, #tpu.memory_space<vmem>>, vector<2x10xf32>,
    return
  }
  func.func @transform_0(%arg0: i32) -> (i32, i32) {
    %c0_i32 = arith.constant 0 : i32
    %c0_i32_0 = arith.constant 0 : i32
    return %arg0, %c0_i32 : i32, i32
  }
  func.func @transform_1(%arg0: i32) -> (i32, i32) {
    %c0_i32 = arith.constant 0 : i32
    %c0_i32_0 = arith.constant 0 : i32
    %c0_i32_1 = arith.constant 0 : i32
    return %c0_i32, %c0_i32_0 : i32, i32
  }
  func.func @transform_2(%arg0: i32) -> (i32, i32) {
    %c0_i32 = arith.constant 0 : i32
    %c0_i32_0 = arith.constant 0 : i32
    %c0_i32_1 = arith.constant 0 : i32
    return %c0_i32, %c0_i32_0 : i32, i32
  }
  func.func @transform_3(%arg0: i32) -> (i32, i32) {
    %c0_i32 = arith.constant 0 : i32
    %c0_i32_0 = arith.constant 0 : i32
    return %arg0, %c0_i32 : i32, i32
  }
}

</mosaic_0001>

<llo_original>
// kernel: mnist_cnn_forward.8
$region0: #{mnist_cnn_forward.8}
  #allocation0 [shape = 'u32[]', space=smem, size = 0x4, offset = 0x4, fixed_abs, tag = 'smem constant byte address 0x4 - core index']
  #allocation1 [shape = 'u32[144,128]{1,0:T(1,128)}', space=vmem, size = 0x12000, scoped, tag = 'internal scratch']
  %s0 = inlined_call_operand.vmem [shape: f32[26,2,13,32], index: 0, kind: input, shape index: {}]
  %s1 = inlined_call_operand.vmem [shape: f32[26,13,16], index: 1, kind: output, shape index: {}]
  %s2 = sld [smem:[#allocation0]]
  $region14: #{mnist_cnn_forward.8} parent=0
    _
  %s4 = ssub.s32 1, %s2
  %s5 = scalar_select 0, %s4, %s2
  // Predicated region
  $region2: #{mnist_cnn_forward.8} parent=0 // pred_check
    _
  $region3: #{mnist_cnn_forward.8} parent=0 // pred_check_branch
    %7 = sbr.rel (0) target = $region5
  $region4: #{mnist_cnn_forward.8} parent=0 // pred_region
    _
  $region5: #{mnist_cnn_forward.8} parent=0 // pred_fallthru
    _
  %v8 = vld [vmem:[%s0] sm:$0xff]
  %v9 = vld [vmem:[%s0 + $0x8] sm:$0x1f]
  %v10 = vld [vmem:[%s0 + $0x10] sm:$0xff]
  %v11 = vld [vmem:[%s0 + $0x18] sm:$0x1f]
  %v12 = vld [vmem:[%s0 + $0x20] sm:$0xff]
  %v13 = vld [vmem:[%s0 + $0x28] sm:$0x1f]
  %v14 = vld [vmem:[%s0 + $0x30] sm:$0xff]
  %v15 = vld [vmem:[%s0 + $0x38] sm:$0x1f]
  %v16 = vld [vmem:[%s0 + $0x40] sm:$0xff]
  %v17 = vld [vmem:[%s0 + $0x48] sm:$0x1f]
  %v18 = vld [vmem:[%s0 + $0x50] sm:$0xff]
  %v19 = vld [vmem:[%s0 + $0x58] sm:$0x1f]
  %v20 = vld [vmem:[%s0 + $0x60] sm:$0xff]
  %v21 = vld [vmem:[%s0 + $0x68] sm:$0x1f]
  %v22 = vld [vmem:[%s0 + $0x70] sm:$0xff]
  %v23 = vld [vmem:[%s0 + $0x78] sm:$0x1f]
  %v24 = vld [vmem:[%s0 + $0x80] sm:$0xff]
  %v25 = vld [vmem:[%s0 + $0x88] sm:$0x1f]
  %v26 = vld [vmem:[%s0 + $0x90] sm:$0xff]
  %v27 = vld [vmem:[%s0 + $0x98] sm:$0x1f]
  %v28 = vld [vmem:[%s0 + $0xa0] sm:$0xff]
  %v29 = vld [vmem:[%s0 + $0xa8] sm:$0x1f]
  %v30 = vld [vmem:[%s0 + $0xb0] sm:$0xff]
  %v31 = vld [vmem:[%s0 + $0xb8] sm:$0x1f]
  %v32 = vld [vmem:[%s0 + $0xc0] sm:$0xff]
  %v33 = vld [vmem:[%s0 + $0xc8] sm:$0x1f]
  %v34 = vld [vmem:[%s0 + $0xd0] sm:$0xff]
  %v35 = vld [vmem:[%s0 + $0xd8] sm:$0x1f]
  %v36 = vld [vmem:[%s0 + $0xe0] sm:$0xff]
  %v37 = vld [vmem:[%s0 + $0xe8] sm:$0x1f]
  %v38 = vld [vmem:[%s0 + $0xf0] sm:$0xff]
  %v39 = vld [vmem:[%s0 + $0xf8] sm:$0x1f]
  %v40 = vld [vmem:[%s0 + $0x100] sm:$0xff]
  %v41 = vld [vmem:[%s0 + $0x108] sm:$0x1f]
  %v42 = vld [vmem:[%s0 + $0x110] sm:$0xff]
  %v43 = vld [vmem:[%s0 + $0x118] sm:$0x1f]
  %v44 = vld [vmem:[%s0 + $0x120] sm:$0xff]
  %v45 = vld [vmem:[%s0 + $0x128] sm:$0x1f]
  %v46 = vld [vmem:[%s0 + $0x130] sm:$0xff]
  %v47 = vld [vmem:[%s0 + $0x138] sm:$0x1f]
  %v48 = vld [vmem:[%s0 + $0x140] sm:$0xff]
  %v49 = vld [vmem:[%s0 + $0x148] sm:$0x1f]
  %v50 = vld [vmem:[%s0 + $0x150] sm:$0xff]
  %v51 = vld [vmem:[%s0 + $0x158] sm:$0x1f]
  %v52 = vld [vmem:[%s0 + $0x160] sm:$0xff]
  %v53 = vld [vmem:[%s0 + $0x168] sm:$0x1f]
  %v54 = vld [vmem:[%s0 + $0x170] sm:$0xff]
  %v55 = vld [vmem:[%s0 + $0x178] sm:$0x1f]
  %v56 = vld [vmem:[%s0 + $0x180] sm:$0xff]
  %v57 = vld [vmem:[%s0 + $0x188] sm:$0x1f]
  %v58 = vld [vmem:[%s0 + $0x190] sm:$0xff]
  %v59 = vld [vmem:[%s0 + $0x198] sm:$0x1f]
  %v60 = vld [vmem:[%s0 + $0x1a0] sm:$0xff]
  %v61 = vld [vmem:[%s0 + $0x1a8] sm:$0x1f]
  %v62 = vld [vmem:[%s0 + $0x1b0] sm:$0xff]
  %v63 = vld [vmem:[%s0 + $0x1b8] sm:$0x1f]
  %v64 = vld [vmem:[%s0 + $0x1c0] sm:$0xff]
  %v65 = vld [vmem:[%s0 + $0x1c8] sm:$0x1f]
  %v66 = vld [vmem:[%s0 + $0x1d0] sm:$0xff]
  %v67 = vld [vmem:[%s0 + $0x1d8] sm:$0x1f]
  %v68 = vld [vmem:[%s0 + $0x1e0] sm:$0xff]
  %v69 = vld [vmem:[%s0 + $0x1e8] sm:$0x1f]
  %v70 = vld [vmem:[%s0 + $0x1f0] sm:$0xff]
  %v71 = vld [vmem:[%s0 + $0x1f8] sm:$0x1f]
  %v72 = vld [vmem:[%s0 + $0x200] sm:$0xff]
  %v73 = vld [vmem:[%s0 + $0x208] sm:$0x1f]
  %v74 = vld [vmem:[%s0 + $0x210] sm:$0xff]
  %v75 = vld [vmem:[%s0 + $0x218] sm:$0x1f]
  %v76 = vld [vmem:[%s0 + $0x220] sm:$0xff]
  %v77 = vld [vmem:[%s0 + $0x228] sm:$0x1f]
  %v78 = vld [vmem:[%s0 + $0x230] sm:$0xff]
  %v79 = vld [vmem:[%s0 + $0x238] sm:$0x1f]
  %v80 = vld [vmem:[%s0 + $0x240] sm:$0xff]
  %v81 = vld [vmem:[%s0 + $0x248] sm:$0x1f]
  %v82 = vld [vmem:[%s0 + $0x250] sm:$0xff]
  %v83 = vld [vmem:[%s0 + $0x258] sm:$0x1f]
  %v84 = vld [vmem:[%s0 + $0x260] sm:$0xff]
  %v85 = vld [vmem:[%s0 + $0x268] sm:$0x1f]
  %v86 = vld [vmem:[%s0 + $0x270] sm:$0xff]
  %v87 = vld [vmem:[%s0 + $0x278] sm:$0x1f]
  %v88 = vld [vmem:[%s0 + $0x280] sm:$0xff]
  %v89 = vld [vmem:[%s0 + $0x288] sm:$0x1f]
  %v90 = vld [vmem:[%s0 + $0x290] sm:$0xff]
  %v91 = vld [vmem:[%s0 + $0x298] sm:$0x1f]
  %v92 = vld [vmem:[%s0 + $0x2a0] sm:$0xff]
  %v93 = vld [vmem:[%s0 + $0x2a8] sm:$0x1f]
  %v94 = vld [vmem:[%s0 + $0x2b0] sm:$0xff]
  %v95 = vld [vmem:[%s0 + $0x2b8] sm:$0x1f]
  %v96 = vld [vmem:[%s0 + $0x2c0] sm:$0xff]
  %v97 = vld [vmem:[%s0 + $0x2c8] sm:$0x1f]
  %v98 = vld [vmem:[%s0 + $0x2d0] sm:$0xff]
  %v99 = vld [vmem:[%s0 + $0x2d8] sm:$0x1f]
  %v100 = vld [vmem:[%s0 + $0x2e0] sm:$0xff]
  %v101 = vld [vmem:[%s0 + $0x2e8] sm:$0x1f]
  %v102 = vld [vmem:[%s0 + $0x2f0] sm:$0xff]
  %v103 = vld [vmem:[%s0 + $0x2f8] sm:$0x1f]
  %v104 = vld [vmem:[%s0 + $0x300] sm:$0xff]
  %v105 = vld [vmem:[%s0 + $0x308] sm:$0x1f]
  %v106 = vld [vmem:[%s0 + $0x310] sm:$0xff]
  %v107 = vld [vmem:[%s0 + $0x318] sm:$0x1f]
  %v108 = vld [vmem:[%s0 + $0x320] sm:$0xff]
  %v109 = vld [vmem:[%s0 + $0x328] sm:$0x1f]
  %v110 = vld [vmem:[%s0 + $0x330] sm:$0xff]
  %v111 = vld [vmem:[%s0 + $0x338] sm:$0x1f]
  %v112 = vmax.f32 %v8, %v10
  %v113 = vmax.f32 %v9, %v11
  %v114 = vmax.f32 %v12, %v14
  %v115 = vmax.f32 %v13, %v15
  %v116 = vmax.f32 %v16, %v18
  %v117 = vmax.f32 %v17, %v19
  %v118 = vmax.f32 %v20, %v22
  %v119 = vmax.f32 %v21, %v23
  %v120 = vmax.f32 %v24, %v26
  %v121 = vmax.f32 %v25, %v27
  %v122 = vmax.f32 %v28, %v30
  %v123 = vmax.f32 %v29, %v31
  %v124 = vmax.f32 %v32, %v34
  %v125 = vmax.f32 %v33, %v35
  %v126 = vmax.f32 %v36, %v38
  %v127 = vmax.f32 %v37, %v39
  %v128 = vmax.f32 %v40, %v42
  %v129 = vmax.f32 %v41, %v43
  %v130 = vmax.f32 %v44, %v46
  %v131 = vmax.f32 %v45, %v47
  %v132 = vmax.f32 %v48, %v50
  %v133 = vmax.f32 %v49, %v51
  %v134 = vmax.f32 %v52, %v54
  %v135 = vmax.f32 %v53, %v55
  %v136 = vmax.f32 %v56, %v58
  %v137 = vmax.f32 %v57, %v59
  %v138 = vmax.f32 %v60, %v62
  %v139 = vmax.f32 %v61, %v63
  %v140 = vmax.f32 %v64, %v66
  %v141 = vmax.f32 %v65, %v67
  %v142 = vmax.f32 %v68, %v70
  %v143 = vmax.f32 %v69, %v71
  %v144 = vmax.f32 %v72, %v74
  %v145 = vmax.f32 %v73, %v75
  %v146 = vmax.f32 %v76, %v78
  %v147 = vmax.f32 %v77, %v79
  %v148 = vmax.f32 %v80, %v82
  %v149 = vmax.f32 %v81, %v83
  %v150 = vmax.f32 %v84, %v86
  %v151 = vmax.f32 %v85, %v87
  %v152 = vmax.f32 %v88, %v90
  %v153 = vmax.f32 %v89, %v91
  %v154 = vmax.f32 %v92, %v94
  %v155 = vmax.f32 %v93, %v95
  %v156 = vmax.f32 %v96, %v98
  %v157 = vmax.f32 %v97, %v99
  %v158 = vmax.f32 %v100, %v102
  %v159 = vmax.f32 %v101, %v103
  %v160 = vmax.f32 %v104, %v106
  %v161 = vmax.f32 %v105, %v107
  %v162 = vmax.f32 %v108, %v110
  %v163 = vmax.f32 %v109, %v111
  %216 = vrot.lane.b32.xlu0 %v112, 112
  %v217 = vpop.permute.xlu0 %216
  %218 = vrot.lane.b32.xlu0 %v113, 112
  %v219 = vpop.permute.xlu0 %218
  %220 = vrot.lane.b32.xlu0 %v114, 112
  %v221 = vpop.permute.xlu0 %220
  %222 = vrot.lane.b32.xlu0 %v115, 112
  %v223 = vpop.permute.xlu0 %222
  %224 = vrot.lane.b32.xlu0 %v116, 112
  %v225 = vpop.permute.xlu0 %224
  %226 = vrot.lane.b32.xlu0 %v117, 112
  %v227 = vpop.permute.xlu0 %226
  %228 = vrot.lane.b32.xlu0 %v118, 112
  %v229 = vpop.permute.xlu0 %228
  %230 = vrot.lane.b32.xlu0 %v119, 112
  %v231 = vpop.permute.xlu0 %230
  %232 = vrot.lane.b32.xlu0 %v120, 112
  %v233 = vpop.permute.xlu0 %232
  %234 = vrot.lane.b32.xlu0 %v121, 112
  %v235 = vpop.permute.xlu0 %234
  %236 = vrot.lane.b32.xlu0 %v122, 112
  %v237 = vpop.permute.xlu0 %236
  %238 = vrot.lane.b32.xlu0 %v123, 112
  %v239 = vpop.permute.xlu0 %238
  %240 = vrot.lane.b32.xlu0 %v124, 112
  %v241 = vpop.permute.xlu0 %240
  %242 = vrot.lane.b32.xlu0 %v125, 112
  %v243 = vpop.permute.xlu0 %242
  %244 = vrot.lane.b32.xlu0 %v126, 112
  %v245 = vpop.permute.xlu0 %244
  %246 = vrot.lane.b32.xlu0 %v127, 112
  %v247 = vpop.permute.xlu0 %246
  %248 = vrot.lane.b32.xlu0 %v128, 112
  %v249 = vpop.permute.xlu0 %248
  %250 = vrot.lane.b32.xlu0 %v129, 112
  %v251 = vpop.permute.xlu0 %250
  %252 = vrot.lane.b32.xlu0 %v130, 112
  %v253 = vpop.permute.xlu0 %252
  %254 = vrot.lane.b32.xlu0 %v131, 112
  %v255 = vpop.permute.xlu0 %254
  %256 = vrot.lane.b32.xlu0 %v132, 112
  %v257 = vpop.permute.xlu0 %256
  %258 = vrot.lane.b32.xlu0 %v133, 112
  %v259 = vpop.permute.xlu0 %258
  %260 = vrot.lane.b32.xlu0 %v134, 112
  %v261 = vpop.permute.xlu0 %260
  %262 = vrot.lane.b32.xlu0 %v135, 112
  %v263 = vpop.permute.xlu0 %262
  %264 = vrot.lane.b32.xlu0 %v136, 112
  %v265 = vpop.permute.xlu0 %264
  %266 = vrot.lane.b32.xlu0 %v137, 112
  %v267 = vpop.permute.xlu0 %266
  %268 = vrot.lane.b32.xlu0 %v138, 112
  %v269 = vpop.permute.xlu0 %268
  %270 = vrot.lane.b32.xlu0 %v139, 112
  %v271 = vpop.permute.xlu0 %270
  %272 = vrot.lane.b32.xlu0 %v140, 112
  %v273 = vpop.permute.xlu0 %272
  %274 = vrot.lane.b32.xlu0 %v141, 112
  %v275 = vpop.permute.xlu0 %274
  %276 = vrot.lane.b32.xlu0 %v142, 112
  %v277 = vpop.permute.xlu0 %276
  %278 = vrot.lane.b32.xlu0 %v143, 112
  %v279 = vpop.permute.xlu0 %278
  %280 = vrot.lane.b32.xlu0 %v144, 112
  %v281 = vpop.permute.xlu0 %280
  %282 = vrot.lane.b32.xlu0 %v145, 112
  %v283 = vpop.permute.xlu0 %282
  %284 = vrot.lane.b32.xlu0 %v146, 112
  %v285 = vpop.permute.xlu0 %284
  %286 = vrot.lane.b32.xlu0 %v147, 112
  %v287 = vpop.permute.xlu0 %286
  %288 = vrot.lane.b32.xlu0 %v148, 112
  %v289 = vpop.permute.xlu0 %288
  %290 = vrot.lane.b32.xlu0 %v149, 112
  %v291 = vpop.permute.xlu0 %290
  %292 = vrot.lane.b32.xlu0 %v150, 112
  %v293 = vpop.permute.xlu0 %292
  %294 = vrot.lane.b32.xlu0 %v151, 112
  %v295 = vpop.permute.xlu0 %294
  %296 = vrot.lane.b32.xlu0 %v152, 112
  %v297 = vpop.permute.xlu0 %296
  %298 = vrot.lane.b32.xlu0 %v153, 112
  %v299 = vpop.permute.xlu0 %298
  %300 = vrot.lane.b32.xlu0 %v154, 112
  %v301 = vpop.permute.xlu0 %300
  %302 = vrot.lane.b32.xlu0 %v155, 112
  %v303 = vpop.permute.xlu0 %302
  %304 = vrot.lane.b32.xlu0 %v156, 112
  %v305 = vpop.permute.xlu0 %304
  %306 = vrot.lane.b32.xlu0 %v157, 112
  %v307 = vpop.permute.xlu0 %306
  %308 = vrot.lane.b32.xlu0 %v158, 112
  %v309 = vpop.permute.xlu0 %308
  %310 = vrot.lane.b32.xlu0 %v159, 112
  %v311 = vpop.permute.xlu0 %310
  %312 = vrot.lane.b32.xlu0 %v160, 112
  %v313 = vpop.permute.xlu0 %312
  %314 = vrot.lane.b32.xlu0 %v161, 112
  %v315 = vpop.permute.xlu0 %314
  %316 = vrot.lane.b32.xlu0 %v162, 112
  %v317 = vpop.permute.xlu0 %316
  %318 = vrot.lane.b32.xlu0 %v163, 112
  %v319 = vpop.permute.xlu0 %318
  %v372 = vmax.f32 %v112, %v217
  %v373 = vmax.f32 %v113, %v219
  %v374 = vmax.f32 %v114, %v221
  %v375 = vmax.f32 %v115, %v223
  %v376 = vmax.f32 %v116, %v225
  %v377 = vmax.f32 %v117, %v227
  %v378 = vmax.f32 %v118, %v229
  %v379 = vmax.f32 %v119, %v231
  %v380 = vmax.f32 %v120, %v233
  %v381 = vmax.f32 %v121, %v235
  %v382 = vmax.f32 %v122, %v237
  %v383 = vmax.f32 %v123, %v239
  %v384 = vmax.f32 %v124, %v241
  %v385 = vmax.f32 %v125, %v243
  %v386 = vmax.f32 %v126, %v245
  %v387 = vmax.f32 %v127, %v247
  %v388 = vmax.f32 %v128, %v249
  %v389 = vmax.f32 %v129, %v251
  %v390 = vmax.f32 %v130, %v253
  %v391 = vmax.f32 %v131, %v255
  %v392 = vmax.f32 %v132, %v257
  %v393 = vmax.f32 %v133, %v259
  %v394 = vmax.f32 %v134, %v261
  %v395 = vmax.f32 %v135, %v263
  %v396 = vmax.f32 %v136, %v265
  %v397 = vmax.f32 %v137, %v267
  %v398 = vmax.f32 %v138, %v269
  %v399 = vmax.f32 %v139, %v271
  %v400 = vmax.f32 %v140, %v273
  %v401 = vmax.f32 %v141, %v275
  %v402 = vmax.f32 %v142, %v277
  %v403 = vmax.f32 %v143, %v279
  %v404 = vmax.f32 %v144, %v281
  %v405 = vmax.f32 %v145, %v283
  %v406 = vmax.f32 %v146, %v285
  %v407 = vmax.f32 %v147, %v287
  %v408 = vmax.f32 %v148, %v289
  %v409 = vmax.f32 %v149, %v291
  %v410 = vmax.f32 %v150, %v293
  %v411 = vmax.f32 %v151, %v295
  %v412 = vmax.f32 %v152, %v297
  %v413 = vmax.f32 %v153, %v299
  %v414 = vmax.f32 %v154, %v301
  %v415 = vmax.f32 %v155, %v303
  %v416 = vmax.f32 %v156, %v305
  %v417 = vmax.f32 %v157, %v307
  %v418 = vmax.f32 %v158, %v309
  %v419 = vmax.f32 %v159, %v311
  %v420 = vmax.f32 %v160, %v313
  %v421 = vmax.f32 %v161, %v315
  %v422 = vmax.f32 %v162, %v317
  %v423 = vmax.f32 %v163, %v319
  %vm424 = vcmask 130048
  %425 = vst.msk [vmem:[%s1] sm:$0xff] %vm424, %v372
  %vm426 = vcmask 126976
  %427 = vst.msk [vmem:[%s1 + $0x8] sm:$0x1f] %vm426, %v373
  %428 = vst.msk [vmem:[%s1 + $0x10] sm:$0xff] %vm424, %v374
  %429 = vst.msk [vmem:[%s1 + $0x18] sm:$0x1f] %vm426, %v375
  %430 = vst.msk [vmem:[%s1 + $0x20] sm:$0xff] %vm424, %v376
  %431 = vst.msk [vmem:[%s1 + $0x28] sm:$0x1f] %vm426, %v377
  %432 = vst.msk [vmem:[%s1 + $0x30] sm:$0xff] %vm424, %v378
  %433 = vst.msk [vmem:[%s1 + $0x38] sm:$0x1f] %vm426, %v379
  %434 = vst.msk [vmem:[%s1 + $0x40] sm:$0xff] %vm424, %v380
  %435 = vst.msk [vmem:[%s1 + $0x48] sm:$0x1f] %vm426, %v381
  %436 = vst.msk [vmem:[%s1 + $0x50] sm:$0xff] %vm424, %v382
  %437 = vst.msk [vmem:[%s1 + $0x58] sm:$0x1f] %vm426, %v383
  %438 = vst.msk [vmem:[%s1 + $0x60] sm:$0xff] %vm424, %v384
  %439 = vst.msk [vmem:[%s1 + $0x68] sm:$0x1f] %vm426, %v385
  %440 = vst.msk [vmem:[%s1 + $0x70] sm:$0xff] %vm424, %v386
  %441 = vst.msk [vmem:[%s1 + $0x78] sm:$0x1f] %vm426, %v387
  %442 = vst.msk [vmem:[%s1 + $0x80] sm:$0xff] %vm424, %v388
  %443 = vst.msk [vmem:[%s1 + $0x88] sm:$0x1f] %vm426, %v389
  %444 = vst.msk [vmem:[%s1 + $0x90] sm:$0xff] %vm424, %v390
  %445 = vst.msk [vmem:[%s1 + $0x98] sm:$0x1f] %vm426, %v391
  %446 = vst.msk [vmem:[%s1 + $0xa0] sm:$0xff] %vm424, %v392
  %447 = vst.msk [vmem:[%s1 + $0xa8] sm:$0x1f] %vm426, %v393
  %448 = vst.msk [vmem:[%s1 + $0xb0] sm:$0xff] %vm424, %v394
  %449 = vst.msk [vmem:[%s1 + $0xb8] sm:$0x1f] %vm426, %v395
  %450 = vst.msk [vmem:[%s1 + $0xc0] sm:$0xff] %vm424, %v396
  %451 = vst.msk [vmem:[%s1 + $0xc8] sm:$0x1f] %vm426, %v397
  %452 = vst.msk [vmem:[%s1 + $0xd0] sm:$0xff] %vm424, %v398
  %453 = vst.msk [vmem:[%s1 + $0xd8] sm:$0x1f] %vm426, %v399
  %454 = vst.msk [vmem:[%s1 + $0xe0] sm:$0xff] %vm424, %v400
  %455 = vst.msk [vmem:[%s1 + $0xe8] sm:$0x1f] %vm426, %v401
  %456 = vst.msk [vmem:[%s1 + $0xf0] sm:$0xff] %vm424, %v402
  %457 = vst.msk [vmem:[%s1 + $0xf8] sm:$0x1f] %vm426, %v403
  %458 = vst.msk [vmem:[%s1 + $0x100] sm:$0xff] %vm424, %v404
  %459 = vst.msk [vmem:[%s1 + $0x108] sm:$0x1f] %vm426, %v405
  %460 = vst.msk [vmem:[%s1 + $0x110] sm:$0xff] %vm424, %v406
  %461 = vst.msk [vmem:[%s1 + $0x118] sm:$0x1f] %vm426, %v407
  %462 = vst.msk [vmem:[%s1 + $0x120] sm:$0xff] %vm424, %v408
  %463 = vst.msk [vmem:[%s1 + $0x128] sm:$0x1f] %vm426, %v409
  %464 = vst.msk [vmem:[%s1 + $0x130] sm:$0xff] %vm424, %v410
  %465 = vst.msk [vmem:[%s1 + $0x138] sm:$0x1f] %vm426, %v411
  %466 = vst.msk [vmem:[%s1 + $0x140] sm:$0xff] %vm424, %v412
  %467 = vst.msk [vmem:[%s1 + $0x148] sm:$0x1f] %vm426, %v413
  %468 = vst.msk [vmem:[%s1 + $0x150] sm:$0xff] %vm424, %v414
  %469 = vst.msk [vmem:[%s1 + $0x158] sm:$0x1f] %vm426, %v415
  %470 = vst.msk [vmem:[%s1 + $0x160] sm:$0xff] %vm424, %v416
  %471 = vst.msk [vmem:[%s1 + $0x168] sm:$0x1f] %vm426, %v417
  %472 = vst.msk [vmem:[%s1 + $0x170] sm:$0xff] %vm424, %v418
  %473 = vst.msk [vmem:[%s1 + $0x178] sm:$0x1f] %vm426, %v419
  %474 = vst.msk [vmem:[%s1 + $0x180] sm:$0xff] %vm424, %v420
  %475 = vst.msk [vmem:[%s1 + $0x188] sm:$0x1f] %vm426, %v421
  %476 = vst.msk [vmem:[%s1 + $0x190] sm:$0xff] %vm424, %v422
  %477 = vst.msk [vmem:[%s1 + $0x198] sm:$0x1f] %vm426, %v423
  // Predicated region
  $region6: #{mnist_cnn_forward.8} parent=0 // pred_check
    _
  $region7: #{mnist_cnn_forward.8} parent=0 // pred_check_branch
    %479 = sbr.rel (0) target = $region9
  $region8: #{mnist_cnn_forward.8} parent=0 // pred_region
    _
  $region9: #{mnist_cnn_forward.8} parent=0 // pred_fallthru
    _
  // Predicated region
  $region10: #{mnist_cnn_forward.8} parent=0 // pred_check
    _
  $region11: #{mnist_cnn_forward.8} parent=0 // pred_check_branch
    %481 = sbr.rel (0) target = $region13
  $region12: #{mnist_cnn_forward.8} parent=0 // pred_region
    _
  $region13: #{mnist_cnn_forward.8} parent=0 // pred_fallthru
    _

// kernel: mnist_cnn_forward.7
$region0: #{mnist_cnn_forward.7}
  #allocation0 [shape = 'u32[]', space=smem, size = 0x4, offset = 0x4, fixed_abs, tag = 'smem constant byte address 0x4 - core index']
  #allocation1 [shape = 'u32[144,128]{1,0:T(1,128)}', space=vmem, size = 0x12000, scoped, tag = 'internal scratch']
  %s0 = inlined_call_operand.vmem [shape: f32[1352,25], index: 0, kind: input, shape index: {}]
  %s1 = inlined_call_operand.vmem [shape: f32[25,16], index: 1, kind: input, shape index: {}]
  %s2 = inlined_call_operand.vmem [shape: f32[1,16], index: 2, kind: input, shape index: {}]
  %s3 = inlined_call_operand.vmem [shape: f32[1352,16], index: 3, kind: output, shape index: {}]
  %s4 = sld [smem:[#allocation0]]
  $region93: #{mnist_cnn_forward.7} parent=0
    _
  %s6 = ssub.s32 1, %s4
  %s7 = scalar_select 0, %s6, %s4
  $region1: #{mnist_cnn_forward.7} parent=0
    #allocation2 [shape = 'u8[1048576]{0}', space=vmem, size = 0x100000, scoped, tag = 'output window, operand 0']
    loop: start=0, step=1, limit=4
    $region2: #{mnist_cnn_forward.7} parent=1 // loop_pre_header
      _
    $region3: #{mnist_cnn_forward.7} parent=1 // loop_header
      %s9 = sphi 0, %s13
      %p10 = scmp.ge.s32.totalorder %s9, 4
      %s19 = sphi 0, %s21
      %s22 = sphi 0, %s19
      %s23 = sphi 0, %s22
      %s39 = sphi 0, %s23
      %s43 = sphi 0, %s43
      %s45 = sphi 0, %s43
      %s46 = sphi 0, %s45
      %s60 = sphi 0, %s46
      %s64 = sphi 0, %s64
      %s66 = sphi 0, %s64
      %s67 = sphi 0, %s66
      %s81 = sphi 0, %s67
      %s87 = sphi 0, %s89
      %s90 = sphi 0, %s87
      %s91 = sphi 0, %s90
      %s107 = sphi 0, %s91
    $region4: #{mnist_cnn_forward.7} parent=1 // loop_header_branch
      %12 = sbr.rel (%p10) target = $region8
    $region5: #{mnist_cnn_forward.7} parent=1 // loop_body
      %s14 = ssub.s32 %s9, 1
      %s15 = ssub.s32 %s9, 2
      %s16 = sadd.s32 %s9, 1
      %s17 = ssub.s32 %s9, %s16
      %p18 = scmp.eq.s32.totalorder %s17, 0
      %s20 = sadd.s32 %s19, 1
      %s21 = scalar_select %p18, %s19, %s20
      %p24 = pneg %p18
      %p25 = scmp.eq.s32.totalorder %s9, 1
      %p26 = por %p24, %p25
      %p27 = scmp.ne.s32.totalorder %s19, %s22
      %p28 = scmp.eq.s32.totalorder %s9, 0
      %p29 = por %p27, %p28
      %p30 = scmp.ne.s32.totalorder %s19, %s22
      %p31 = scmp.eq.s32.totalorder %s14, 1
      %p32 = por %p30, %p31
      %p33 = scmp.ne.s32.totalorder %s22, %s23
      %p34 = scmp.eq.s32.totalorder %s14, 0
      %p35 = por %p33, %p34
      %p36 = scmp.ne.s32.totalorder %s22, %s23
      %p37 = scmp.eq.s32.totalorder %s15, 1
      %p38 = por %p36, %p37
      %p40 = scmp.ne.s32.totalorder %s23, %s39
      %p41 = scmp.eq.s32.totalorder %s15, 0
      %p42 = por %p40, %p41
      %s44 = sadd.s32 %s43, 1
      %p47 = scmp.eq.s32.totalorder %s9, 1
      %p48 = scmp.ne.s32.totalorder %s43, %s45
      %p49 = scmp.eq.s32.totalorder %s9, 0
      %p50 = por %p48, %p49
      %p51 = scmp.ne.s32.totalorder %s43, %s45
      %p52 = scmp.eq.s32.totalorder %s14, 1
      %p53 = por %p51, %p52
      %p54 = scmp.ne.s32.totalorder %s45, %s46
      %p55 = scmp.eq.s32.totalorder %s14, 0
      %p56 = por %p54, %p55
      %p57 = scmp.ne.s32.totalorder %s45, %s46
      %p58 = scmp.eq.s32.totalorder %s15, 1
      %p59 = por %p57, %p58
      %p61 = scmp.ne.s32.totalorder %s46, %s60
      %p62 = scmp.eq.s32.totalorder %s15, 0
      %p63 = por %p61, %p62
      %s65 = sadd.s32 %s64, 1
      %p68 = scmp.eq.s32.totalorder %s9, 1
      %p69 = scmp.ne.s32.totalorder %s64, %s66
      %p70 = scmp.eq.s32.totalorder %s9, 0
      %p71 = por %p69, %p70
      %p72 = scmp.ne.s32.totalorder %s64, %s66
      %p73 = scmp.eq.s32.totalorder %s14, 1
      %p74 = por %p72, %p73
      %p75 = scmp.ne.s32.totalorder %s66, %s67
      %p76 = scmp.eq.s32.totalorder %s14, 0
      %p77 = por %p75, %p76
      %p78 = scmp.ne.s32.totalorder %s66, %s67
      %p79 = scmp.eq.s32.totalorder %s15, 1
      %p80 = por %p78, %p79
      %p82 = scmp.ne.s32.totalorder %s67, %s81
      %p83 = scmp.eq.s32.totalorder %s15, 0
      %p84 = por %p82, %p83
      %s85 = ssub.s32 %s9, %s16
      %p86 = scmp.eq.s32.totalorder %s85, 0
      %s88 = sadd.s32 %s87, 1
      %s89 = scalar_select %p86, %s87, %s88
      %p92 = pneg %p86
      %p93 = scmp.eq.s32.totalorder %s9, 1
      %p94 = por %p92, %p93
      %p95 = scmp.ne.s32.totalorder %s87, %s90
      %p96 = scmp.eq.s32.totalorder %s9, 0
      %p97 = por %p95, %p96
      %p98 = scmp.ne.s32.totalorder %s87, %s90
      %p99 = scmp.eq.s32.totalorder %s14, 1
      %p100 = por %p98, %p99
      %p101 = scmp.ne.s32.totalorder %s90, %s91
      %p102 = scmp.eq.s32.totalorder %s14, 0
      %p103 = por %p101, %p102
      %p104 = scmp.ne.s32.totalorder %s90, %s91
      %p105 = scmp.eq.s32.totalorder %s15, 1
      %p106 = por %p104, %p105
      %p108 = scmp.ne.s32.totalorder %s91, %s107
      %p109 = scmp.eq.s32.totalorder %s15, 0
      %p110 = por %p108, %p109
      %p111 = scmp.le.s32.totalorder 1, %s9
      %p112 = scmp.lt.s32.totalorder %s9, 3
      %p113 = pnand %p111, %p112
      %p114 = pneg %p113
      // Predicated region
      $region9: #{mnist_cnn_forward.7} parent=5 // pred_check
        _
      $region10: #{mnist_cnn_forward.7} parent=5 // pred_check_branch
        %116 = sbr.rel (%p113) target = $region12
      $region11: #{mnist_cnn_forward.7} parent=5 // pred_region
        %s117 = ssub.s32 %s9, 1
        // Predicated region
        $region13: #{mnist_cnn_forward.7} parent=11 // pred_check
          %p118 = pneg %p56
        $region14: #{mnist_cnn_forward.7} parent=11 // pred_check_branch
          %120 = sbr.rel (%p118) target = $region16
        $region15: #{mnist_cnn_forward.7} parent=11 // pred_region
          _
        $region16: #{mnist_cnn_forward.7} parent=11 // pred_fallthru
          _
        // Predicated region
        $region17: #{mnist_cnn_forward.7} parent=11 // pred_check
          %p121 = pneg %p77
        $region18: #{mnist_cnn_forward.7} parent=11 // pred_check_branch
          %123 = sbr.rel (%p121) target = $region20
        $region19: #{mnist_cnn_forward.7} parent=11 // pred_region
          _
        $region20: #{mnist_cnn_forward.7} parent=11 // pred_fallthru
          _
      $region12: #{mnist_cnn_forward.7} parent=5 // pred_fallthru
        _
      %p124 = scmp.lt.s32.totalorder %s9, 2
      // Predicated region
      $region21: #{mnist_cnn_forward.7} parent=5 // pred_check
        %p125 = pneg %p124
      $region22: #{mnist_cnn_forward.7} parent=5 // pred_check_branch
        %127 = sbr.rel (%p125) target = $region24
      $region23: #{mnist_cnn_forward.7} parent=5 // pred_region
        // Predicated region
        $region25: #{mnist_cnn_forward.7} parent=23 // pred_check
          %p128 = pneg %p29
        $region26: #{mnist_cnn_forward.7} parent=23 // pred_check_branch
          %130 = sbr.rel (%p128) target = $region28
        $region27: #{mnist_cnn_forward.7} parent=23 // pred_region
          %s131 = smul.u32 128, %s9
          %s132 = ssub.s32 169, %s131
          %p133 = scmp.lt.s32.totalorder %s132, 128
          %s134 = scalar_select %p133, %s132, 128
          %s135 = smul.u32 128, %s134
          %p136 = scmp.lt.s32.totalorder %s131, 168
          %s137 = scalar_select %p136, %s131, 168
          %s138 = smul.addr %s137, 8
          %s139 = scalar_lea.vmem %s0, %s138
          %s140 = smul.u32 128, %s9
          %s141 = ssub.s32 169, %s140
          %p142 = scmp.lt.s32.totalorder %s141, 128
          %s143 = scalar_select %p142, %s141, 128
          %s144 = smul.u32 128, %s143
        $region28: #{mnist_cnn_forward.7} parent=23 // pred_fallthru
          _
      $region24: #{mnist_cnn_forward.7} parent=5 // pred_fallthru
        _
      %p145 = scmp.le.s32.totalorder 1, %s9
      %p146 = scmp.lt.s32.totalorder %s9, 3
      %p147 = pnand %p145, %p146
      %p148 = pneg %p147
      // Predicated region
      $region29: #{mnist_cnn_forward.7} parent=5 // pred_check
        _
      $region30: #{mnist_cnn_forward.7} parent=5 // pred_check_branch
        %150 = sbr.rel (%p147) target = $region32
      $region31: #{mnist_cnn_forward.7} parent=5 // pred_region
        %s151 = ssub.s32 %s9, 1
        %s152 = smul.u32 128, %s14
        %s153 = ssub.s32 169, %s152
        %p154 = scmp.lt.s32.totalorder %s153, 128
        %s155 = scalar_select %p154, %s153, 128
        %s156 = smul.u32 128, %s155
        %p157 = scmp.lt.s32.totalorder %s152, 168
        %s158 = scalar_select %p157, %s152, 168
        %s159 = smul.addr %s158, 8
        %s160 = scalar_lea.vmem %s0, %s159
        %p161 = pneg %p35
        %p162 = pneg %p32
        %p163 = pneg %p56
        %p164 = pneg %p53
        %p165 = pneg %p77
        %p166 = pneg %p74
        %p167 = pneg %p103
        %p168 = pneg %p100
        %s169 = sand.u32 %s90, 1
        %s170 = sand.u32 %s90, 1
        %s171 = smul.addr %s170, 1024
        %s172 = scalar_lea.vmem [#allocation2], %s171
        %s173 = smul.u32 128, %s14
        %s174 = ssub.s32 169, %s173
        %p175 = scmp.lt.s32.totalorder %s174, 128
        %s176 = scalar_select %p175, %s174, 128
        %s177 = smul.u32 128, %s176
        %p178 = scmp.lt.s32.totalorder %s173, 168
        %s179 = scalar_select %p178, %s173, 168
        %s180 = smul.addr %s179, 8
        %s181 = scalar_lea.vmem %s0, %s180
        %s182 = smul.u32 128, %s14
        %s183 = ssub.s32 169, %s182
        %p184 = scmp.lt.s32.totalorder %s183, 128
        %s185 = scalar_select %p184, %s183, 128
        %s186 = smul.u32 128, %s185
        %s187 = smul.u32 128, %s14
        %s188 = ssub.s32 169, %s187
        %p189 = scmp.lt.s32.totalorder %s188, 128
        %s190 = scalar_select %p189, %s188, 128
        %s191 = smul.u32 128, %s190
        %v192 = vld [vmem:[%s181] sm:$0xff]
        %v193 = vld [vmem:[%s181 + $0x8] sm:$0xff]
        %v194 = vld [vmem:[%s181 + $0x10] sm:$0xff]
        %v195 = vld [vmem:[%s181 + $0x18] sm:$0xff]
        %v196 = vld [vmem:[%s181 + $0x20] sm:$0xff]
        %v197 = vld [vmem:[%s181 + $0x28] sm:$0xff]
        %v198 = vld [vmem:[%s181 + $0x30] sm:$0xff]
        %v199 = vld [vmem:[%s181 + $0x38] sm:$0xff]
        %v200 = vld [vmem:[%s181 + $0x40] sm:$0xff]
        %v201 = vld [vmem:[%s181 + $0x48] sm:$0xff]
        %v202 = vld [vmem:[%s181 + $0x50] sm:$0xff]
        %v203 = vld [vmem:[%s181 + $0x58] sm:$0xff]
        %v204 = vld [vmem:[%s181 + $0x60] sm:$0xff]
        %v205 = vld [vmem:[%s181 + $0x68] sm:$0xff]
        %v206 = vld [vmem:[%s181 + $0x70] sm:$0xff]
        %v207 = vld [vmem:[%s181 + $0x78] sm:$0xff]
        %v208 = vld [vmem:[%s181 + $0x80] sm:$0xff]
        %v209 = vld [vmem:[%s181 + $0x88] sm:$0xff]
        %v210 = vld [vmem:[%s181 + $0x90] sm:$0xff]
        %v211 = vld [vmem:[%s181 + $0x98] sm:$0xff]
        %v212 = vld [vmem:[%s181 + $0xa0] sm:$0xff]
        %v213 = vld [vmem:[%s181 + $0xa8] sm:$0xff]
        %v214 = vld [vmem:[%s181 + $0xb0] sm:$0xff]
        %v215 = vld [vmem:[%s181 + $0xb8] sm:$0xff]
        %v216 = vld [vmem:[%s181 + $0xc0] sm:$0xff]
        %v217 = vld [vmem:[%s181 + $0xc8] sm:$0xff]
        %v218 = vld [vmem:[%s181 + $0xd0] sm:$0xff]
        %v219 = vld [vmem:[%s181 + $0xd8] sm:$0xff]
        %v220 = vld [vmem:[%s181 + $0xe0] sm:$0xff]
        %v221 = vld [vmem:[%s181 + $0xe8] sm:$0xff]
        %v222 = vld [vmem:[%s181 + $0xf0] sm:$0xff]
        %v223 = vld [vmem:[%s181 + $0xf8] sm:$0xff]
        %v224 = vld [vmem:[%s181 + $0x100] sm:$0xff]
        %v225 = vld [vmem:[%s181 + $0x108] sm:$0xff]
        %v226 = vld [vmem:[%s181 + $0x110] sm:$0xff]
        %v227 = vld [vmem:[%s181 + $0x118] sm:$0xff]
        %v228 = vld [vmem:[%s181 + $0x120] sm:$0xff]
        %v229 = vld [vmem:[%s181 + $0x128] sm:$0xff]
        %v230 = vld [vmem:[%s181 + $0x130] sm:$0xff]
        %v231 = vld [vmem:[%s181 + $0x138] sm:$0xff]
        %v232 = vld [vmem:[%s181 + $0x140] sm:$0xff]
        %v233 = vld [vmem:[%s181 + $0x148] sm:$0xff]
        %v234 = vld [vmem:[%s181 + $0x150] sm:$0xff]
        %v235 = vld [vmem:[%s181 + $0x158] sm:$0xff]
        %v236 = vld [vmem:[%s181 + $0x160] sm:$0xff]
        %v237 = vld [vmem:[%s181 + $0x168] sm:$0xff]
        %v238 = vld [vmem:[%s181 + $0x170] sm:$0xff]
        %v239 = vld [vmem:[%s181 + $0x178] sm:$0xff]
        %v240 = vld [vmem:[%s181 + $0x180] sm:$0xff]
        %v241 = vld [vmem:[%s181 + $0x188] sm:$0xff]
        %v242 = vld [vmem:[%s181 + $0x190] sm:$0xff]
        %v243 = vld [vmem:[%s181 + $0x198] sm:$0xff]
        %v244 = vld [vmem:[%s181 + $0x1a0] sm:$0xff]
        %v245 = vld [vmem:[%s181 + $0x1a8] sm:$0xff]
        %v246 = vld [vmem:[%s181 + $0x1b0] sm:$0xff]
        %v247 = vld [vmem:[%s181 + $0x1b8] sm:$0xff]
        %v248 = vld [vmem:[%s181 + $0x1c0] sm:$0xff]
        %v249 = vld [vmem:[%s181 + $0x1c8] sm:$0xff]
        %v250 = vld [vmem:[%s181 + $0x1d0] sm:$0xff]
        %v251 = vld [vmem:[%s181 + $0x1d8] sm:$0xff]
        %v252 = vld [vmem:[%s181 + $0x1e0] sm:$0xff]
        %v253 = vld [vmem:[%s181 + $0x1e8] sm:$0xff]
        %v254 = vld [vmem:[%s181 + $0x1f0] sm:$0xff]
        %v255 = vld [vmem:[%s181 + $0x1f8] sm:$0xff]
        %v256 = vld [vmem:[%s181 + $0x200] sm:$0xff]
        %v257 = vld [vmem:[%s181 + $0x208] sm:$0xff]
        %v258 = vld [vmem:[%s181 + $0x210] sm:$0xff]
        %v259 = vld [vmem:[%s181 + $0x218] sm:$0xff]
        %v260 = vld [vmem:[%s181 + $0x220] sm:$0xff]
        %v261 = vld [vmem:[%s181 + $0x228] sm:$0xff]
        %v262 = vld [vmem:[%s181 + $0x230] sm:$0xff]
        %v263 = vld [vmem:[%s181 + $0x238] sm:$0xff]
        %v264 = vld [vmem:[%s181 + $0x240] sm:$0xff]
        %v265 = vld [vmem:[%s181 + $0x248] sm:$0xff]
        %v266 = vld [vmem:[%s181 + $0x250] sm:$0xff]
        %v267 = vld [vmem:[%s181 + $0x258] sm:$0xff]
        %v268 = vld [vmem:[%s181 + $0x260] sm:$0xff]
        %v269 = vld [vmem:[%s181 + $0x268] sm:$0xff]
        %v270 = vld [vmem:[%s181 + $0x270] sm:$0xff]
        %v271 = vld [vmem:[%s181 + $0x278] sm:$0xff]
        %v272 = vld [vmem:[%s181 + $0x280] sm:$0xff]
        %v273 = vld [vmem:[%s181 + $0x288] sm:$0xff]
        %v274 = vld [vmem:[%s181 + $0x290] sm:$0xff]
        %v275 = vld [vmem:[%s181 + $0x298] sm:$0xff]
        %v276 = vld [vmem:[%s181 + $0x2a0] sm:$0xff]
        %v277 = vld [vmem:[%s181 + $0x2a8] sm:$0xff]
        %v278 = vld [vmem:[%s181 + $0x2b0] sm:$0xff]
        %v279 = vld [vmem:[%s181 + $0x2b8] sm:$0xff]
        %v280 = vld [vmem:[%s181 + $0x2c0] sm:$0xff]
        %v281 = vld [vmem:[%s181 + $0x2c8] sm:$0xff]
        %v282 = vld [vmem:[%s181 + $0x2d0] sm:$0xff]
        %v283 = vld [vmem:[%s181 + $0x2d8] sm:$0xff]
        %v284 = vld [vmem:[%s181 + $0x2e0] sm:$0xff]
        %v285 = vld [vmem:[%s181 + $0x2e8] sm:$0xff]
        %v286 = vld [vmem:[%s181 + $0x2f0] sm:$0xff]
        %v287 = vld [vmem:[%s181 + $0x2f8] sm:$0xff]
        %v288 = vld [vmem:[%s181 + $0x300] sm:$0xff]
        %v289 = vld [vmem:[%s181 + $0x308] sm:$0xff]
        %v290 = vld [vmem:[%s181 + $0x310] sm:$0xff]
        %v291 = vld [vmem:[%s181 + $0x318] sm:$0xff]
        %v292 = vld [vmem:[%s181 + $0x320] sm:$0xff]
        %v293 = vld [vmem:[%s181 + $0x328] sm:$0xff]
        %v294 = vld [vmem:[%s181 + $0x330] sm:$0xff]
        %v295 = vld [vmem:[%s181 + $0x338] sm:$0xff]
        %v296 = vld [vmem:[%s181 + $0x340] sm:$0xff]
        %v297 = vld [vmem:[%s181 + $0x348] sm:$0xff]
        %v298 = vld [vmem:[%s181 + $0x350] sm:$0xff]
        %v299 = vld [vmem:[%s181 + $0x358] sm:$0xff]
        %v300 = vld [vmem:[%s181 + $0x360] sm:$0xff]
        %v301 = vld [vmem:[%s181 + $0x368] sm:$0xff]
        %v302 = vld [vmem:[%s181 + $0x370] sm:$0xff]
        %v303 = vld [vmem:[%s181 + $0x378] sm:$0xff]
        %v304 = vld [vmem:[%s181 + $0x380] sm:$0xff]
        %v305 = vld [vmem:[%s181 + $0x388] sm:$0xff]
        %v306 = vld [vmem:[%s181 + $0x390] sm:$0xff]
        %v307 = vld [vmem:[%s181 + $0x398] sm:$0xff]
        %v308 = vld [vmem:[%s181 + $0x3a0] sm:$0xff]
        %v309 = vld [vmem:[%s181 + $0x3a8] sm:$0xff]
        %v310 = vld [vmem:[%s181 + $0x3b0] sm:$0xff]
        %v311 = vld [vmem:[%s181 + $0x3b8] sm:$0xff]
        %v312 = vld [vmem:[%s181 + $0x3c0] sm:$0xff]
        %v313 = vld [vmem:[%s181 + $0x3c8] sm:$0xff]
        %v314 = vld [vmem:[%s181 + $0x3d0] sm:$0xff]
        %v315 = vld [vmem:[%s181 + $0x3d8] sm:$0xff]
        %v316 = vld [vmem:[%s181 + $0x3e0] sm:$0xff]
        %v317 = vld [vmem:[%s181 + $0x3e8] sm:$0xff]
        %v318 = vld [vmem:[%s181 + $0x3f0] sm:$0xff]
        %v319 = vld [vmem:[%s181 + $0x3f8] sm:$0xff]
        %v320 = vld [vmem:[%s1] sm:$0xff]
        %v321 = vld [vmem:[%s1 + $0x8] sm:$0xff]
        %v322 = vld [vmem:[%s1 + $0x10] sm:$0xff]
        %v323 = vld [vmem:[%s1 + $0x18] sm:$0x1]
        %v324 = vld [vmem:[%s2] sm:$0x1]
        %v326 = vlaneseq
        %v327 = vshrl.u32 %v326, 7
        %v328 = vsub.s32 0, %v327
        %v329 = vrot.slane %v324, %v328
        %vm331 = vcmask 203776
        %v333 = vsel %vm331, %v192, 0
        %v336 = vsel %vm331, %v193, 0
        %v339 = vsel %vm331, %v194, 0
        %v342 = vsel %vm331, %v195, 0
        %v345 = vsel %vm331, %v196, 0
        %v348 = vsel %vm331, %v197, 0
        %v351 = vsel %vm331, %v198, 0
        %v354 = vsel %vm331, %v199, 0
        %v357 = vsel %vm331, %v200, 0
        %v360 = vsel %vm331, %v201, 0
        %v363 = vsel %vm331, %v202, 0
        %v366 = vsel %vm331, %v203, 0
        %v369 = vsel %vm331, %v204, 0
        %v372 = vsel %vm331, %v205, 0
        %v375 = vsel %vm331, %v206, 0
        %v378 = vsel %vm331, %v207, 0
        %v381 = vsel %vm331, %v208, 0
        %v384 = vsel %vm331, %v209, 0
        %v387 = vsel %vm331, %v210, 0
        %v390 = vsel %vm331, %v211, 0
        %v393 = vsel %vm331, %v212, 0
        %v396 = vsel %vm331, %v213, 0
        %v399 = vsel %vm331, %v214, 0
        %v402 = vsel %vm331, %v215, 0
        %v405 = vsel %vm331, %v216, 0
        %v408 = vsel %vm331, %v217, 0
        %v411 = vsel %vm331, %v218, 0
        %v414 = vsel %vm331, %v219, 0
        %v417 = vsel %vm331, %v220, 0
        %v420 = vsel %vm331, %v221, 0
        %v423 = vsel %vm331, %v222, 0
        %v426 = vsel %vm331, %v223, 0
        %v429 = vsel %vm331, %v224, 0
        %v432 = vsel %vm331, %v225, 0
        %v435 = vsel %vm331, %v226, 0
        %v438 = vsel %vm331, %v227, 0
        %v441 = vsel %vm331, %v228, 0
        %v444 = vsel %vm331, %v229, 0
        %v447 = vsel %vm331, %v230, 0
        %v450 = vsel %vm331, %v231, 0
        %v453 = vsel %vm331, %v232, 0
        %v456 = vsel %vm331, %v233, 0
        %v459 = vsel %vm331, %v234, 0
        %v462 = vsel %vm331, %v235, 0
        %v465 = vsel %vm331, %v236, 0
        %v468 = vsel %vm331, %v237, 0
        %v471 = vsel %vm331, %v238, 0
        %v474 = vsel %vm331, %v239, 0
        %v477 = vsel %vm331, %v240, 0
        %v480 = vsel %vm331, %v241, 0
        %v483 = vsel %vm331, %v242, 0
        %v486 = vsel %vm331, %v243, 0
        %v489 = vsel %vm331, %v244, 0
        %v492 = vsel %vm331, %v245, 0
        %v495 = vsel %vm331, %v246, 0
        %v498 = vsel %vm331, %v247, 0
        %v501 = vsel %vm331, %v248, 0
        %v504 = vsel %vm331, %v249, 0
        %v507 = vsel %vm331, %v250, 0
        %v510 = vsel %vm331, %v251, 0
        %v513 = vsel %vm331, %v252, 0
        %v516 = vsel %vm331, %v253, 0
        %v519 = vsel %vm331, %v254, 0
        %v522 = vsel %vm331, %v255, 0
        %v525 = vsel %vm331, %v256, 0
        %v528 = vsel %vm331, %v257, 0
        %v531 = vsel %vm331, %v258, 0
        %v534 = vsel %vm331, %v259, 0
        %v537 = vsel %vm331, %v260, 0
        %v540 = vsel %vm331, %v261, 0
        %v543 = vsel %vm331, %v262, 0
        %v546 = vsel %vm331, %v263, 0
        %v549 = vsel %vm331, %v264, 0
        %v552 = vsel %vm331, %v265, 0
        %v555 = vsel %vm331, %v266, 0
        %v558 = vsel %vm331, %v267, 0
        %v561 = vsel %vm331, %v268, 0
        %v564 = vsel %vm331, %v269, 0
        %v567 = vsel %vm331, %v270, 0
        %v570 = vsel %vm331, %v271, 0
        %v573 = vsel %vm331, %v272, 0
        %v576 = vsel %vm331, %v273, 0
        %v579 = vsel %vm331, %v274, 0
        %v582 = vsel %vm331, %v275, 0
        %v585 = vsel %vm331, %v276, 0
        %v588 = vsel %vm331, %v277, 0
        %v591 = vsel %vm331, %v278, 0
        %v594 = vsel %vm331, %v279, 0
        %v597 = vsel %vm331, %v280, 0
        %v600 = vsel %vm331, %v281, 0
        %v603 = vsel %vm331, %v282, 0
        %v606 = vsel %vm331, %v283, 0
        %v609 = vsel %vm331, %v284, 0
        %v612 = vsel %vm331, %v285, 0
        %v615 = vsel %vm331, %v286, 0
        %v618 = vsel %vm331, %v287, 0
        %v621 = vsel %vm331, %v288, 0
        %v624 = vsel %vm331, %v289, 0
        %v627 = vsel %vm331, %v290, 0
        %v630 = vsel %vm331, %v291, 0
        %v633 = vsel %vm331, %v292, 0
        %v636 = vsel %vm331, %v293, 0
        %v639 = vsel %vm331, %v294, 0
        %v642 = vsel %vm331, %v295, 0
        %v645 = vsel %vm331, %v296, 0
        %v648 = vsel %vm331, %v297, 0
        %v651 = vsel %vm331, %v298, 0
        %v654 = vsel %vm331, %v299, 0
        %v657 = vsel %vm331, %v300, 0
        %v660 = vsel %vm331, %v301, 0
        %v663 = vsel %vm331, %v302, 0
        %v666 = vsel %vm331, %v303, 0
        %v669 = vsel %vm331, %v304, 0
        %v672 = vsel %vm331, %v305, 0
        %v675 = vsel %vm331, %v306, 0
        %v678 = vsel %vm331, %v307, 0
        %v681 = vsel %vm331, %v308, 0
        %v684 = vsel %vm331, %v309, 0
        %v687 = vsel %vm331, %v310, 0
        %v690 = vsel %vm331, %v311, 0
        %v693 = vsel %vm331, %v312, 0
        %v696 = vsel %vm331, %v313, 0
        %v699 = vsel %vm331, %v314, 0
        %v702 = vsel %vm331, %v315, 0
        %v705 = vsel %vm331, %v316, 0
        %v708 = vsel %vm331, %v317, 0
        %v711 = vsel %vm331, %v318, 0
        %v714 = vsel %vm331, %v319, 0
        %vm716 = vcmask 1040384
        %v718 = vsel %vm716, %v323, 0
        %720 = vmatprep.subr.mxu0 0.0
        %721 = vmatpush1.msra.mxu0 %v320
        %722 = vmatprep.subr.mxu0 0.0
        %723 = vmatpush1.msra.mxu0 %v321
        %724 = vmatprep.subr.mxu0 0.0
        %725 = vmatpush1.msra.mxu0 %v322
        %726 = vmatprep.subr.mxu0 0.0
        %727 = vmatpush1.msra.mxu0 %v718
        %728 = vmatprep.subr.mxu0 0.0
        %729 = vmatpush1.msra.mxu0 0.0
        %730 = vmatprep.subr.mxu0 0.0
        %731 = vmatpush1.msra.mxu0 0.0
        %732 = vmatprep.subr.mxu0 0.0
        %733 = vmatpush1.msra.mxu0 0.0
        %734 = vmatprep.subr.mxu0 0.0
        %735 = vmatpush1.msra.mxu0 0.0
        %736 = vmatprep.subr.mxu0 0.0
        %737 = vmatpush1.msra.mxu0 0.0
        %738 = vmatprep.subr.mxu0 0.0
        %739 = vmatpush1.msra.mxu0 0.0
        %740 = vmatprep.subr.mxu0 0.0
        %741 = vmatpush1.msra.mxu0 0.0
        %742 = vmatprep.subr.mxu0 0.0
        %743 = vmatpush1.msra.mxu0 0.0
        %744 = vmatprep.subr.mxu0 0.0
        %745 = vmatpush1.msra.mxu0 0.0
        %746 = vmatprep.subr.mxu0 0.0
        %747 = vmatpush1.msra.mxu0 0.0
        %748 = vmatprep.subr.mxu0 0.0
        %749 = vmatpush1.msra.mxu0 0.0
        %750 = vmatprep.subr.mxu0 0.0
        %751 = vmatpush1.msra.mxu0 0.0
        %752 = vmatprep.subr.mxu0 0.0
        %753 = vmatpush1.msra.mxu0 0.0
        %754 = vmatprep.subr.mxu0 0.0
        %755 = vmatpush1.msra.mxu0 0.0
        %756 = vmatprep.subr.mxu0 0.0
        %757 = vmatpush1.msra.mxu0 0.0
        %758 = vmatprep.subr.mxu0 0.0
        %759 = vmatpush1.msra.mxu0 0.0
        %760 = vmatprep.subr.mxu0 0.0
        %761 = vmatpush1.msra.mxu0 0.0
        %762 = vmatprep.subr.mxu0 0.0
        %763 = vmatpush1.msra.mxu0 0.0
        %764 = vmatprep.subr.mxu0 0.0
        %765 = vmatpush1.msra.mxu0 0.0
        %766 = vmatprep.subr.mxu0 0.0
        %767 = vmatpush1.msra.mxu0 0.0
        %768 = vmatprep.subr.mxu0 0.0
        %769 = vmatpush1.msra.mxu0 0.0
        %770 = vmatprep.subr.mxu0 0.0
        %771 = vmatpush1.msra.mxu0 0.0
        %772 = vmatprep.subr.mxu0 0.0
        %773 = vmatpush1.msra.mxu0 0.0
        %774 = vmatprep.subr.mxu0 0.0
        %775 = vmatpush1.msra.mxu0 0.0
        %776 = vmatprep.subr.mxu0 0.0
        %777 = vmatpush1.msra.mxu0 0.0
        %778 = vmatprep.subr.mxu0 0.0
        %779 = vmatpush1.msra.mxu0 0.0
        %780 = vmatprep.subr.mxu0 0.0
        %781 = vmatpush1.msra.mxu0 0.0
        %782 = vmatprep.subr.mxu0 0.0
        %783 = vmatpush1.msra.mxu0 0.0
        %784 = vmatprep.mubr.f32.mxu0 0.0
        %785 = vmatmul.mubr.f32.gmra.mrb[0].mxu0 %v333
        %v786 = vpop.f32.mrb[0].mxu0
        %v787 = vadd.f32 %v329, %v786
        %v788 = vpop.f32.mrb[0].mxu0
        %789 = vmatprep.mubr.f32.mxu0 0.0
        %790 = vmatmul.mubr.f32.gmra.mrb[0].mxu0 %v336
        %v791 = vpop.f32.mrb[0].mxu0
        %v792 = vadd.f32 %v329, %v791
        %v793 = vpop.f32.mrb[0].mxu0
        %794 = vmatprep.mubr.f32.mxu0 0.0
        %795 = vmatmul.mubr.f32.gmra.mrb[0].mxu0 %v339
        %v796 = vpop.f32.mrb[0].mxu0
        %v797 = vadd.f32 %v329, %v796
        %v798 = vpop.f32.mrb[0].mxu0
        %799 = vmatprep.mubr.f32.mxu0 0.0
        %800 = vmatmul.mubr.f32.gmra.mrb[0].mxu0 %v342
        %v801 = vpop.f32.mrb[0].mxu0
        %v802 = vadd.f32 %v329, %v801
        %v803 = vpop.f32.mrb[0].mxu0
        %804 = vmatprep.mubr.f32.mxu0 0.0
        %805 = vmatmul.mubr.f32.gmra.mrb[0].mxu0 %v345
        %v806 = vpop.f32.mrb[0].mxu0
        %v807 = vadd.f32 %v329, %v806
        %v808 = vpop.f32.mrb[0].mxu0
        %809 = vmatprep.mubr.f32.mxu0 0.0
        %810 = vmatmul.mubr.f32.gmra.mrb[0].mxu0 %v348
        %v811 = vpop.f32.mrb[0].mxu0
        %v812 = vadd.f32 %v329, %v811
        %v813 = vpop.f32.mrb[0].mxu0
        %814 = vmatprep.mubr.f32.mxu0 0.0
        %815 = vmatmul.mubr.f32.gmra.mrb[0].mxu0 %v351
        %v816 = vpop.f32.mrb[0].mxu0
        %v817 = vadd.f32 %v329, %v816
        %v818 = vpop.f32.mrb[0].mxu0
        %819 = vmatprep.mubr.f32.mxu0 0.0
        %820 = vmatmul.mubr.f32.gmra.mrb[0].mxu0 %v354
        %v821 = vpop.f32.mrb[0].mxu0
        %v822 = vadd.f32 %v329, %v821
        %v823 = vpop.f32.mrb[0].mxu0
        %824 = vmatprep.mubr.f32.mxu0 0.0
        %825 = vmatmul.mubr.f32.gmra.mrb[0].mxu0 %v357
        %v826 = vpop.f32.mrb[0].mxu0
        %v827 = vadd.f32 %v329, %v826
        %v828 = vpop.f32.mrb[0].mxu0
        %829 = vmatprep.mubr.f32.mxu0 0.0
        %830 = vmatmul.mubr.f32.gmra.mrb[0].mxu0 %v360
        %v831 = vpop.f32.mrb[0].mxu0
        %v832 = vadd.f32 %v329, %v831
        %v833 = vpop.f32.mrb[0].mxu0
        %834 = vmatprep.mubr.f32.mxu0 0.0
        %835 = vmatmul.mubr.f32.gmra.mrb[0].mxu0 %v363
        %v836 = vpop.f32.mrb[0].mxu0
        %v837 = vadd.f32 %v329, %v836
        %v838 = vpop.f32.mrb[0].mxu0
        %839 = vmatprep.mubr.f32.mxu0 0.0
        %840 = vmatmul.mubr.f32.gmra.mrb[0].mxu0 %v366
        %v841 = vpop.f32.mrb[0].mxu0
        %v842 = vadd.f32 %v329, %v841
        %v843 = vpop.f32.mrb[0].mxu0
        %844 = vmatprep.mubr.f32.mxu0 0.0
        %845 = vmatmul.mubr.f32.gmra.mrb[0].mxu0 %v369
        %v846 = vpop.f32.mrb[0].mxu0
        %v847 = vadd.f32 %v329, %v846
        %v848 = vpop.f32.mrb[0].mxu0
        %849 = vmatprep.mubr.f32.mxu0 0.0
        %850 = vmatmul.mubr.f32.gmra.mrb[0].mxu0 %v372
        %v851 = vpop.f32.mrb[0].mxu0
        %v852 = vadd.f32 %v329, %v851
        %v853 = vpop.f32.mrb[0].mxu0
        %854 = vmatprep.mubr.f32.mxu0 0.0
        %855 = vmatmul.mubr.f32.gmra.mrb[0].mxu0 %v375
        %v856 = vpop.f32.mrb[0].mxu0
        %v857 = vadd.f32 %v329, %v856
        %v858 = vpop.f32.mrb[0].mxu0
        %859 = vmatprep.mubr.f32.mxu0 0.0
        %860 = vmatmul.mubr.f32.gmra.mrb[0].mxu0 %v378
        %v861 = vpop.f32.mrb[0].mxu0
        %v862 = vadd.f32 %v329, %v861
        %v863 = vpop.f32.mrb[0].mxu0
        %864 = vmatprep.mubr.f32.mxu0 0.0
        %865 = vmatmul.mubr.f32.gmra.mrb[0].mxu0 %v381
        %v866 = vpop.f32.mrb[0].mxu0
        %v867 = vadd.f32 %v329, %v866
        %v868 = vpop.f32.mrb[0].mxu0
        %869 = vmatprep.mubr.f32.mxu0 0.0
        %870 = vmatmul.mubr.f32.gmra.mrb[0].mxu0 %v384
        %v871 = vpop.f32.mrb[0].mxu0
        %v872 = vadd.f32 %v329, %v871
        %v873 = vpop.f32.mrb[0].mxu0
        %874 = vmatprep.mubr.f32.mxu0 0.0
        %875 = vmatmul.mubr.f32.gmra.mrb[0].mxu0 %v387
        %v876 = vpop.f32.mrb[0].mxu0
        %v877 = vadd.f32 %v329, %v876
        %v878 = vpop.f32.mrb[0].mxu0
        %879 = vmatprep.mubr.f32.mxu0 0.0
        %880 = vmatmul.mubr.f32.gmra.mrb[0].mxu0 %v390
        %v881 = vpop.f32.mrb[0].mxu0
        %v882 = vadd.f32 %v329, %v881
        %v883 = vpop.f32.mrb[0].mxu0
        %884 = vmatprep.mubr.f32.mxu0 0.0
        %885 = vmatmul.mubr.f32.gmra.mrb[0].mxu0 %v393
        %v886 = vpop.f32.mrb[0].mxu0
        %v887 = vadd.f32 %v329, %v886
        %v888 = vpop.f32.mrb[0].mxu0
        %889 = vmatprep.mubr.f32.mxu0 0.0
        %890 = vmatmul.mubr.f32.gmra.mrb[0].mxu0 %v396
        %v891 = vpop.f32.mrb[0].mxu0
        %v892 = vadd.f32 %v329, %v891
        %v893 = vpop.f32.mrb[0].mxu0
        %894 = vmatprep.mubr.f32.mxu0 0.0
        %895 = vmatmul.mubr.f32.gmra.mrb[0].mxu0 %v399
        %v896 = vpop.f32.mrb[0].mxu0
        %v897 = vadd.f32 %v329, %v896
        %v898 = vpop.f32.mrb[0].mxu0
        %899 = vmatprep.mubr.f32.mxu0 0.0
        %900 = vmatmul.mubr.f32.gmra.mrb[0].mxu0 %v402
        %v901 = vpop.f32.mrb[0].mxu0
        %v902 = vadd.f32 %v329, %v901
        %v903 = vpop.f32.mrb[0].mxu0
        %904 = vmatprep.mubr.f32.mxu0 0.0
        %905 = vmatmul.mubr.f32.gmra.mrb[0].mxu0 %v405
        %v906 = vpop.f32.mrb[0].mxu0
        %v907 = vadd.f32 %v329, %v906
        %v908 = vpop.f32.mrb[0].mxu0
        %909 = vmatprep.mubr.f32.mxu0 0.0
        %910 = vmatmul.mubr.f32.gmra.mrb[0].mxu0 %v408
        %v911 = vpop.f32.mrb[0].mxu0
        %v912 = vadd.f32 %v329, %v911
        %v913 = vpop.f32.mrb[0].mxu0
        %914 = vmatprep.mubr.f32.mxu0 0.0
        %915 = vmatmul.mubr.f32.gmra.mrb[0].mxu0 %v411
        %v916 = vpop.f32.mrb[0].mxu0
        %v917 = vadd.f32 %v329, %v916
        %v918 = vpop.f32.mrb[0].mxu0
        %919 = vmatprep.mubr.f32.mxu0 0.0
        %920 = vmatmul.mubr.f32.gmra.mrb[0].mxu0 %v414
        %v921 = vpop.f32.mrb[0].mxu0
        %v922 = vadd.f32 %v329, %v921
        %v923 = vpop.f32.mrb[0].mxu0
        %924 = vmatprep.mubr.f32.mxu0 0.0
        %925 = vmatmul.mubr.f32.gmra.mrb[0].mxu0 %v417
        %v926 = vpop.f32.mrb[0].mxu0
        %v927 = vadd.f32 %v329, %v926
        %v928 = vpop.f32.mrb[0].mxu0
        %929 = vmatprep.mubr.f32.mxu0 0.0
        %930 = vmatmul.mubr.f32.gmra.mrb[0].mxu0 %v420
        %v931 = vpop.f32.mrb[0].mxu0
        %v932 = vadd.f32 %v329, %v931
        %v933 = vpop.f32.mrb[0].mxu0
        %934 = vmatprep.mubr.f32.mxu0 0.0
        %935 = vmatmul.mubr.f32.gmra.mrb[0].mxu0 %v423
        %v936 = vpop.f32.mrb[0].mxu0
        %v937 = vadd.f32 %v329, %v936
        %v938 = vpop.f32.mrb[0].mxu0
        %939 = vmatprep.mubr.f32.mxu0 0.0
        %940 = vmatmul.mubr.f32.gmra.mrb[0].mxu0 %v426
        %v941 = vpop.f32.mrb[0].mxu0
        %v942 = vadd.f32 %v329, %v941
        %v943 = vpop.f32.mrb[0].mxu0
        %944 = vmatprep.mubr.f32.mxu0 0.0
        %945 = vmatmul.mubr.f32.gmra.mrb[0].mxu0 %v429
        %v946 = vpop.f32.mrb[0].mxu0
        %v947 = vadd.f32 %v329, %v946
        %v948 = vpop.f32.mrb[0].mxu0
        %949 = vmatprep.mubr.f32.mxu0 0.0
        %950 = vmatmul.mubr.f32.gmra.mrb[0].mxu0 %v432
        %v951 = vpop.f32.mrb[0].mxu0
        %v952 = vadd.f32 %v329, %v951
        %v953 = vpop.f32.mrb[0].mxu0
        %954 = vmatprep.mubr.f32.mxu0 0.0
        %955 = vmatmul.mubr.f32.gmra.mrb[0].mxu0 %v435
        %v956 = vpop.f32.mrb[0].mxu0
        %v957 = vadd.f32 %v329, %v956
        %v958 = vpop.f32.mrb[0].mxu0
        %959 = vmatprep.mubr.f32.mxu0 0.0
        %960 = vmatmul.mubr.f32.gmra.mrb[0].mxu0 %v438
        %v961 = vpop.f32.mrb[0].mxu0
        %v962 = vadd.f32 %v329, %v961
        %v963 = vpop.f32.mrb[0].mxu0
        %964 = vmatprep.mubr.f32.mxu0 0.0
        %965 = vmatmul.mubr.f32.gmra.mrb[0].mxu0 %v441
        %v966 = vpop.f32.mrb[0].mxu0
        %v967 = vadd.f32 %v329, %v966
        %v968 = vpop.f32.mrb[0].mxu0
        %969 = vmatprep.mubr.f32.mxu0 0.0
        %970 = vmatmul.mubr.f32.gmra.mrb[0].mxu0 %v444
        %v971 = vpop.f32.mrb[0].mxu0
        %v972 = vadd.f32 %v329, %v971
        %v973 = vpop.f32.mrb[0].mxu0
        %974 = vmatprep.mubr.f32.mxu0 0.0
        %975 = vmatmul.mubr.f32.gmra.mrb[0].mxu0 %v447
        %v976 = vpop.f32.mrb[0].mxu0
        %v977 = vadd.f32 %v329, %v976
        %v978 = vpop.f32.mrb[0].mxu0
        %979 = vmatprep.mubr.f32.mxu0 0.0
        %980 = vmatmul.mubr.f32.gmra.mrb[0].mxu0 %v450
        %v981 = vpop.f32.mrb[0].mxu0
        %v982 = vadd.f32 %v329, %v981
        %v983 = vpop.f32.mrb[0].mxu0
        %984 = vmatprep.mubr.f32.mxu0 0.0
        %985 = vmatmul.mubr.f32.gmra.mrb[0].mxu0 %v453
        %v986 = vpop.f32.mrb[0].mxu0
        %v987 = vadd.f32 %v329, %v986
        %v988 = vpop.f32.mrb[0].mxu0
        %989 = vmatprep.mubr.f32.mxu0 0.0
        %990 = vmatmul.mubr.f32.gmra.mrb[0].mxu0 %v456
        %v991 = vpop.f32.mrb[0].mxu0
        %v992 = vadd.f32 %v329, %v991
        %v993 = vpop.f32.mrb[0].mxu0
        %994 = vmatprep.mubr.f32.mxu0 0.0
        %995 = vmatmul.mubr.f32.gmra.mrb[0].mxu0 %v459
        %v996 = vpop.f32.mrb[0].mxu0
        %v997 = vadd.f32 %v329, %v996
        %v998 = vpop.f32.mrb[0].mxu0
        %999 = vmatprep.mubr.f32.mxu0 0.0
        %1000 = vmatmul.mubr.f32.gmra.mrb[0].mxu0 %v462
        %v1001 = vpop.f32.mrb[0].mxu0
        %v1002 = vadd.f32 %v329, %v1001
        %v1003 = vpop.f32.mrb[0].mxu0
        %1004 = vmatprep.mubr.f32.mxu0 0.0
        %1005 = vmatmul.mubr.f32.gmra.mrb[0].mxu0 %v465
        %v1006 = vpop.f32.mrb[0].mxu0
        %v1007 = vadd.f32 %v329, %v1006
        %v1008 = vpop.f32.mrb[0].mxu0
        %1009 = vmatprep.mubr.f32.mxu0 0.0
        %1010 = vmatmul.mubr.f32.gmra.mrb[0].mxu0 %v468
        %v1011 = vpop.f32.mrb[0].mxu0
        %v1012 = vadd.f32 %v329, %v1011
        %v1013 = vpop.f32.mrb[0].mxu0
        %1014 = vmatprep.mubr.f32.mxu0 0.0
        %1015 = vmatmul.mubr.f32.gmra.mrb[0].mxu0 %v471
        %v1016 = vpop.f32.mrb[0].mxu0
        %v1017 = vadd.f32 %v329, %v1016
        %v1018 = vpop.f32.mrb[0].mxu0
        %1019 = vmatprep.mubr.f32.mxu0 0.0
        %1020 = vmatmul.mubr.f32.gmra.mrb[0].mxu0 %v474
        %v1021 = vpop.f32.mrb[0].mxu0
        %v1022 = vadd.f32 %v329, %v1021
        %v1023 = vpop.f32.mrb[0].mxu0
        %1024 = vmatprep.mubr.f32.mxu0 0.0
        %1025 = vmatmul.mubr.f32.gmra.mrb[0].mxu0 %v477
        %v1026 = vpop.f32.mrb[0].mxu0
        %v1027 = vadd.f32 %v329, %v1026
        %v1028 = vpop.f32.mrb[0].mxu0
        %1029 = vmatprep.mubr.f32.mxu0 0.0
        %1030 = vmatmul.mubr.f32.gmra.mrb[0].mxu0 %v480
        %v1031 = vpop.f32.mrb[0].mxu0
        %v1032 = vadd.f32 %v329, %v1031
        %v1033 = vpop.f32.mrb[0].mxu0
        %1034 = vmatprep.mubr.f32.mxu0 0.0
        %1035 = vmatmul.mubr.f32.gmra.mrb[0].mxu0 %v483
        %v1036 = vpop.f32.mrb[0].mxu0
        %v1037 = vadd.f32 %v329, %v1036
        %v1038 = vpop.f32.mrb[0].mxu0
        %1039 = vmatprep.mubr.f32.mxu0 0.0
        %1040 = vmatmul.mubr.f32.gmra.mrb[0].mxu0 %v486
        %v1041 = vpop.f32.mrb[0].mxu0
        %v1042 = vadd.f32 %v329, %v1041
        %v1043 = vpop.f32.mrb[0].mxu0
        %1044 = vmatprep.mubr.f32.mxu0 0.0
        %1045 = vmatmul.mubr.f32.gmra.mrb[0].mxu0 %v489
        %v1046 = vpop.f32.mrb[0].mxu0
        %v1047 = vadd.f32 %v329, %v1046
        %v1048 = vpop.f32.mrb[0].mxu0
        %1049 = vmatprep.mubr.f32.mxu0 0.0
        %1050 = vmatmul.mubr.f32.gmra.mrb[0].mxu0 %v492
        %v1051 = vpop.f32.mrb[0].mxu0
        %v1052 = vadd.f32 %v329, %v1051
        %v1053 = vpop.f32.mrb[0].mxu0
        %1054 = vmatprep.mubr.f32.mxu0 0.0
        %1055 = vmatmul.mubr.f32.gmra.mrb[0].mxu0 %v495
        %v1056 = vpop.f32.mrb[0].mxu0
        %v1057 = vadd.f32 %v329, %v1056
        %v1058 = vpop.f32.mrb[0].mxu0
        %1059 = vmatprep.mubr.f32.mxu0 0.0
        %1060 = vmatmul.mubr.f32.gmra.mrb[0].mxu0 %v498
        %v1061 = vpop.f32.mrb[0].mxu0
        %v1062 = vadd.f32 %v329, %v1061
        %v1063 = vpop.f32.mrb[0].mxu0
        %1064 = vmatprep.mubr.f32.mxu0 0.0
        %1065 = vmatmul.mubr.f32.gmra.mrb[0].mxu0 %v501
        %v1066 = vpop.f32.mrb[0].mxu0
        %v1067 = vadd.f32 %v329, %v1066
        %v1068 = vpop.f32.mrb[0].mxu0
        %1069 = vmatprep.mubr.f32.mxu0 0.0
        %1070 = vmatmul.mubr.f32.gmra.mrb[0].mxu0 %v504
        %v1071 = vpop.f32.mrb[0].mxu0
        %v1072 = vadd.f32 %v329, %v1071
        %v1073 = vpop.f32.mrb[0].mxu0
        %1074 = vmatprep.mubr.f32.mxu0 0.0
        %1075 = vmatmul.mubr.f32.gmra.mrb[0].mxu0 %v507
        %v1076 = vpop.f32.mrb[0].mxu0
        %v1077 = vadd.f32 %v329, %v1076
        %v1078 = vpop.f32.mrb[0].mxu0
        %1079 = vmatprep.mubr.f32.mxu0 0.0
        %1080 = vmatmul.mubr.f32.gmra.mrb[0].mxu0 %v510
        %v1081 = vpop.f32.mrb[0].mxu0
        %v1082 = vadd.f32 %v329, %v1081
        %v1083 = vpop.f32.mrb[0].mxu0
        %1084 = vmatprep.mubr.f32.mxu0 0.0
        %1085 = vmatmul.mubr.f32.gmra.mrb[0].mxu0 %v513
        %v1086 = vpop.f32.mrb[0].mxu0
        %v1087 = vadd.f32 %v329, %v1086
        %v1088 = vpop.f32.mrb[0].mxu0
        %1089 = vmatprep.mubr.f32.mxu0 0.0
        %1090 = vmatmul.mubr.f32.gmra.mrb[0].mxu0 %v516
        %v1091 = vpop.f32.mrb[0].mxu0
        %v1092 = vadd.f32 %v329, %v1091
        %v1093 = vpop.f32.mrb[0].mxu0
        %1094 = vmatprep.mubr.f32.mxu0 0.0
        %1095 = vmatmul.mubr.f32.gmra.mrb[0].mxu0 %v519
        %v1096 = vpop.f32.mrb[0].mxu0
        %v1097 = vadd.f32 %v329, %v1096
        %v1098 = vpop.f32.mrb[0].mxu0
        %1099 = vmatprep.mubr.f32.mxu0 0.0
        %1100 = vmatmul.mubr.f32.gmra.mrb[0].mxu0 %v522
        %v1101 = vpop.f32.mrb[0].mxu0
        %v1102 = vadd.f32 %v329, %v1101
        %v1103 = vpop.f32.mrb[0].mxu0
        %1104 = vmatprep.mubr.f32.mxu0 0.0
        %1105 = vmatmul.mubr.f32.gmra.mrb[0].mxu0 %v525
        %v1106 = vpop.f32.mrb[0].mxu0
        %v1107 = vadd.f32 %v329, %v1106
        %v1108 = vpop.f32.mrb[0].mxu0
        %1109 = vmatprep.mubr.f32.mxu0 0.0
        %1110 = vmatmul.mubr.f32.gmra.mrb[0].mxu0 %v528
        %v1111 = vpop.f32.mrb[0].mxu0
        %v1112 = vadd.f32 %v329, %v1111
        %v1113 = vpop.f32.mrb[0].mxu0
        %1114 = vmatprep.mubr.f32.mxu0 0.0
        %1115 = vmatmul.mubr.f32.gmra.mrb[0].mxu0 %v531
        %v1116 = vpop.f32.mrb[0].mxu0
        %v1117 = vadd.f32 %v329, %v1116
        %v1118 = vpop.f32.mrb[0].mxu0
        %1119 = vmatprep.mubr.f32.mxu0 0.0
        %1120 = vmatmul.mubr.f32.gmra.mrb[0].mxu0 %v534
        %v1121 = vpop.f32.mrb[0].mxu0
        %v1122 = vadd.f32 %v329, %v1121
        %v1123 = vpop.f32.mrb[0].mxu0
        %1124 = vmatprep.mubr.f32.mxu0 0.0
        %1125 = vmatmul.mubr.f32.gmra.mrb[0].mxu0 %v537
        %v1126 = vpop.f32.mrb[0].mxu0
        %v1127 = vadd.f32 %v329, %v1126
        %v1128 = vpop.f32.mrb[0].mxu0
        %1129 = vmatprep.mubr.f32.mxu0 0.0
        %1130 = vmatmul.mubr.f32.gmra.mrb[0].mxu0 %v540
        %v1131 = vpop.f32.mrb[0].mxu0
        %v1132 = vadd.f32 %v329, %v1131
        %v1133 = vpop.f32.mrb[0].mxu0
        %1134 = vmatprep.mubr.f32.mxu0 0.0
        %1135 = vmatmul.mubr.f32.gmra.mrb[0].mxu0 %v543
        %v1136 = vpop.f32.mrb[0].mxu0
        %v1137 = vadd.f32 %v329, %v1136
        %v1138 = vpop.f32.mrb[0].mxu0
        %1139 = vmatprep.mubr.f32.mxu0 0.0
        %1140 = vmatmul.mubr.f32.gmra.mrb[0].mxu0 %v546
        %v1141 = vpop.f32.mrb[0].mxu0
        %v1142 = vadd.f32 %v329, %v1141
        %v1143 = vpop.f32.mrb[0].mxu0
        %1144 = vmatprep.mubr.f32.mxu0 0.0
        %1145 = vmatmul.mubr.f32.gmra.mrb[0].mxu0 %v549
        %v1146 = vpop.f32.mrb[0].mxu0
        %v1147 = vadd.f32 %v329, %v1146
        %v1148 = vpop.f32.mrb[0].mxu0
        %1149 = vmatprep.mubr.f32.mxu0 0.0
        %1150 = vmatmul.mubr.f32.gmra.mrb[0].mxu0 %v552
        %v1151 = vpop.f32.mrb[0].mxu0
        %v1152 = vadd.f32 %v329, %v1151
        %v1153 = vpop.f32.mrb[0].mxu0
        %1154 = vmatprep.mubr.f32.mxu0 0.0
        %1155 = vmatmul.mubr.f32.gmra.mrb[0].mxu0 %v555
        %v1156 = vpop.f32.mrb[0].mxu0
        %v1157 = vadd.f32 %v329, %v1156
        %v1158 = vpop.f32.mrb[0].mxu0
        %1159 = vmatprep.mubr.f32.mxu0 0.0
        %1160 = vmatmul.mubr.f32.gmra.mrb[0].mxu0 %v558
        %v1161 = vpop.f32.mrb[0].mxu0
        %v1162 = vadd.f32 %v329, %v1161
        %v1163 = vpop.f32.mrb[0].mxu0
        %1164 = vmatprep.mubr.f32.mxu0 0.0
        %1165 = vmatmul.mubr.f32.gmra.mrb[0].mxu0 %v561
        %v1166 = vpop.f32.mrb[0].mxu0
        %v1167 = vadd.f32 %v329, %v1166
        %v1168 = vpop.f32.mrb[0].mxu0
        %1169 = vmatprep.mubr.f32.mxu0 0.0
        %1170 = vmatmul.mubr.f32.gmra.mrb[0].mxu0 %v564
        %v1171 = vpop.f32.mrb[0].mxu0
        %v1172 = vadd.f32 %v329, %v1171
        %v1173 = vpop.f32.mrb[0].mxu0
        %1174 = vmatprep.mubr.f32.mxu0 0.0
        %1175 = vmatmul.mubr.f32.gmra.mrb[0].mxu0 %v567
        %v1176 = vpop.f32.mrb[0].mxu0
        %v1177 = vadd.f32 %v329, %v1176
        %v1178 = vpop.f32.mrb[0].mxu0
        %1179 = vmatprep.mubr.f32.mxu0 0.0
        %1180 = vmatmul.mubr.f32.gmra.mrb[0].mxu0 %v570
        %v1181 = vpop.f32.mrb[0].mxu0
        %v1182 = vadd.f32 %v329, %v1181
        %v1183 = vpop.f32.mrb[0].mxu0
        %1184 = vmatprep.mubr.f32.mxu0 0.0
        %1185 = vmatmul.mubr.f32.gmra.mrb[0].mxu0 %v573
        %v1186 = vpop.f32.mrb[0].mxu0
        %v1187 = vadd.f32 %v329, %v1186
        %v1188 = vpop.f32.mrb[0].mxu0
        %1189 = vmatprep.mubr.f32.mxu0 0.0
        %1190 = vmatmul.mubr.f32.gmra.mrb[0].mxu0 %v576
        %v1191 = vpop.f32.mrb[0].mxu0
        %v1192 = vadd.f32 %v329, %v1191
        %v1193 = vpop.f32.mrb[0].mxu0
        %1194 = vmatprep.mubr.f32.mxu0 0.0
        %1195 = vmatmul.mubr.f32.gmra.mrb[0].mxu0 %v579
        %v1196 = vpop.f32.mrb[0].mxu0
        %v1197 = vadd.f32 %v329, %v1196
        %v1198 = vpop.f32.mrb[0].mxu0
        %1199 = vmatprep.mubr.f32.mxu0 0.0
        %1200 = vmatmul.mubr.f32.gmra.mrb[0].mxu0 %v582
        %v1201 = vpop.f32.mrb[0].mxu0
        %v1202 = vadd.f32 %v329, %v1201
        %v1203 = vpop.f32.mrb[0].mxu0
        %1204 = vmatprep.mubr.f32.mxu0 0.0
        %1205 = vmatmul.mubr.f32.gmra.mrb[0].mxu0 %v585
        %v1206 = vpop.f32.mrb[0].mxu0
        %v1207 = vadd.f32 %v329, %v1206
        %v1208 = vpop.f32.mrb[0].mxu0
        %1209 = vmatprep.mubr.f32.mxu0 0.0
        %1210 = vmatmul.mubr.f32.gmra.mrb[0].mxu0 %v588
        %v1211 = vpop.f32.mrb[0].mxu0
        %v1212 = vadd.f32 %v329, %v1211
        %v1213 = vpop.f32.mrb[0].mxu0
        %1214 = vmatprep.mubr.f32.mxu0 0.0
        %1215 = vmatmul.mubr.f32.gmra.mrb[0].mxu0 %v591
        %v1216 = vpop.f32.mrb[0].mxu0
        %v1217 = vadd.f32 %v329, %v1216
        %v1218 = vpop.f32.mrb[0].mxu0
        %1219 = vmatprep.mubr.f32.mxu0 0.0
        %1220 = vmatmul.mubr.f32.gmra.mrb[0].mxu0 %v594
        %v1221 = vpop.f32.mrb[0].mxu0
        %v1222 = vadd.f32 %v329, %v1221
        %v1223 = vpop.f32.mrb[0].mxu0
        %1224 = vmatprep.mubr.f32.mxu0 0.0
        %1225 = vmatmul.mubr.f32.gmra.mrb[0].mxu0 %v597
        %v1226 = vpop.f32.mrb[0].mxu0
        %v1227 = vadd.f32 %v329, %v1226
        %v1228 = vpop.f32.mrb[0].mxu0
        %1229 = vmatprep.mubr.f32.mxu0 0.0
        %1230 = vmatmul.mubr.f32.gmra.mrb[0].mxu0 %v600
        %v1231 = vpop.f32.mrb[0].mxu0
        %v1232 = vadd.f32 %v329, %v1231
        %v1233 = vpop.f32.mrb[0].mxu0
        %1234 = vmatprep.mubr.f32.mxu0 0.0
        %1235 = vmatmul.mubr.f32.gmra.mrb[0].mxu0 %v603
        %v1236 = vpop.f32.mrb[0].mxu0
        %v1237 = vadd.f32 %v329, %v1236
        %v1238 = vpop.f32.mrb[0].mxu0
        %1239 = vmatprep.mubr.f32.mxu0 0.0
        %1240 = vmatmul.mubr.f32.gmra.mrb[0].mxu0 %v606
        %v1241 = vpop.f32.mrb[0].mxu0
        %v1242 = vadd.f32 %v329, %v1241
        %v1243 = vpop.f32.mrb[0].mxu0
        %1244 = vmatprep.mubr.f32.mxu0 0.0
        %1245 = vmatmul.mubr.f32.gmra.mrb[0].mxu0 %v609
        %v1246 = vpop.f32.mrb[0].mxu0
        %v1247 = vadd.f32 %v329, %v1246
        %v1248 = vpop.f32.mrb[0].mxu0
        %1249 = vmatprep.mubr.f32.mxu0 0.0
        %1250 = vmatmul.mubr.f32.gmra.mrb[0].mxu0 %v612
        %v1251 = vpop.f32.mrb[0].mxu0
        %v1252 = vadd.f32 %v329, %v1251
        %v1253 = vpop.f32.mrb[0].mxu0
        %1254 = vmatprep.mubr.f32.mxu0 0.0
        %1255 = vmatmul.mubr.f32.gmra.mrb[0].mxu0 %v615
        %v1256 = vpop.f32.mrb[0].mxu0
        %v1257 = vadd.f32 %v329, %v1256
        %v1258 = vpop.f32.mrb[0].mxu0
        %1259 = vmatprep.mubr.f32.mxu0 0.0
        %1260 = vmatmul.mubr.f32.gmra.mrb[0].mxu0 %v618
        %v1261 = vpop.f32.mrb[0].mxu0
        %v1262 = vadd.f32 %v329, %v1261
        %v1263 = vpop.f32.mrb[0].mxu0
        %1264 = vmatprep.mubr.f32.mxu0 0.0
        %1265 = vmatmul.mubr.f32.gmra.mrb[0].mxu0 %v621
        %v1266 = vpop.f32.mrb[0].mxu0
        %v1267 = vadd.f32 %v329, %v1266
        %v1268 = vpop.f32.mrb[0].mxu0
        %1269 = vmatprep.mubr.f32.mxu0 0.0
        %1270 = vmatmul.mubr.f32.gmra.mrb[0].mxu0 %v624
        %v1271 = vpop.f32.mrb[0].mxu0
        %v1272 = vadd.f32 %v329, %v1271
        %v1273 = vpop.f32.mrb[0].mxu0
        %1274 = vmatprep.mubr.f32.mxu0 0.0
        %1275 = vmatmul.mubr.f32.gmra.mrb[0].mxu0 %v627
        %v1276 = vpop.f32.mrb[0].mxu0
        %v1277 = vadd.f32 %v329, %v1276
        %v1278 = vpop.f32.mrb[0].mxu0
        %1279 = vmatprep.mubr.f32.mxu0 0.0
        %1280 = vmatmul.mubr.f32.gmra.mrb[0].mxu0 %v630
        %v1281 = vpop.f32.mrb[0].mxu0
        %v1282 = vadd.f32 %v329, %v1281
        %v1283 = vpop.f32.mrb[0].mxu0
        %1284 = vmatprep.mubr.f32.mxu0 0.0
        %1285 = vmatmul.mubr.f32.gmra.mrb[0].mxu0 %v633
        %v1286 = vpop.f32.mrb[0].mxu0
        %v1287 = vadd.f32 %v329, %v1286
        %v1288 = vpop.f32.mrb[0].mxu0
        %1289 = vmatprep.mubr.f32.mxu0 0.0
        %1290 = vmatmul.mubr.f32.gmra.mrb[0].mxu0 %v636
        %v1291 = vpop.f32.mrb[0].mxu0
        %v1292 = vadd.f32 %v329, %v1291
        %v1293 = vpop.f32.mrb[0].mxu0
        %1294 = vmatprep.mubr.f32.mxu0 0.0
        %1295 = vmatmul.mubr.f32.gmra.mrb[0].mxu0 %v639
        %v1296 = vpop.f32.mrb[0].mxu0
        %v1297 = vadd.f32 %v329, %v1296
        %v1298 = vpop.f32.mrb[0].mxu0
        %1299 = vmatprep.mubr.f32.mxu0 0.0
        %1300 = vmatmul.mubr.f32.gmra.mrb[0].mxu0 %v642
        %v1301 = vpop.f32.mrb[0].mxu0
        %v1302 = vadd.f32 %v329, %v1301
        %v1303 = vpop.f32.mrb[0].mxu0
        %1304 = vmatprep.mubr.f32.mxu0 0.0
        %1305 = vmatmul.mubr.f32.gmra.mrb[0].mxu0 %v645
        %v1306 = vpop.f32.mrb[0].mxu0
        %v1307 = vadd.f32 %v329, %v1306
        %v1308 = vpop.f32.mrb[0].mxu0
        %1309 = vmatprep.mubr.f32.mxu0 0.0
        %1310 = vmatmul.mubr.f32.gmra.mrb[0].mxu0 %v648
        %v1311 = vpop.f32.mrb[0].mxu0
        %v1312 = vadd.f32 %v329, %v1311
        %v1313 = vpop.f32.mrb[0].mxu0
        %1314 = vmatprep.mubr.f32.mxu0 0.0
        %1315 = vmatmul.mubr.f32.gmra.mrb[0].mxu0 %v651
        %v1316 = vpop.f32.mrb[0].mxu0
        %v1317 = vadd.f32 %v329, %v1316
        %v1318 = vpop.f32.mrb[0].mxu0
        %1319 = vmatprep.mubr.f32.mxu0 0.0
        %1320 = vmatmul.mubr.f32.gmra.mrb[0].mxu0 %v654
        %v1321 = vpop.f32.mrb[0].mxu0
        %v1322 = vadd.f32 %v329, %v1321
        %v1323 = vpop.f32.mrb[0].mxu0
        %1324 = vmatprep.mubr.f32.mxu0 0.0
        %1325 = vmatmul.mubr.f32.gmra.mrb[0].mxu0 %v657
        %v1326 = vpop.f32.mrb[0].mxu0
        %v1327 = vadd.f32 %v329, %v1326
        %v1328 = vpop.f32.mrb[0].mxu0
        %1329 = vmatprep.mubr.f32.mxu0 0.0
        %1330 = vmatmul.mubr.f32.gmra.mrb[0].mxu0 %v660
        %v1331 = vpop.f32.mrb[0].mxu0
        %v1332 = vadd.f32 %v329, %v1331
        %v1333 = vpop.f32.mrb[0].mxu0
        %1334 = vmatprep.mubr.f32.mxu0 0.0
        %1335 = vmatmul.mubr.f32.gmra.mrb[0].mxu0 %v663
        %v1336 = vpop.f32.mrb[0].mxu0
        %v1337 = vadd.f32 %v329, %v1336
        %v1338 = vpop.f32.mrb[0].mxu0
        %1339 = vmatprep.mubr.f32.mxu0 0.0
        %1340 = vmatmul.mubr.f32.gmra.mrb[0].mxu0 %v666
        %v1341 = vpop.f32.mrb[0].mxu0
        %v1342 = vadd.f32 %v329, %v1341
        %v1343 = vpop.f32.mrb[0].mxu0
        %1344 = vmatprep.mubr.f32.mxu0 0.0
        %1345 = vmatmul.mubr.f32.gmra.mrb[0].mxu0 %v669
        %v1346 = vpop.f32.mrb[0].mxu0
        %v1347 = vadd.f32 %v329, %v1346
        %v1348 = vpop.f32.mrb[0].mxu0
        %1349 = vmatprep.mubr.f32.mxu0 0.0
        %1350 = vmatmul.mubr.f32.gmra.mrb[0].mxu0 %v672
        %v1351 = vpop.f32.mrb[0].mxu0
        %v1352 = vadd.f32 %v329, %v1351
        %v1353 = vpop.f32.mrb[0].mxu0
        %1354 = vmatprep.mubr.f32.mxu0 0.0
        %1355 = vmatmul.mubr.f32.gmra.mrb[0].mxu0 %v675
        %v1356 = vpop.f32.mrb[0].mxu0
        %v1357 = vadd.f32 %v329, %v1356
        %v1358 = vpop.f32.mrb[0].mxu0
        %1359 = vmatprep.mubr.f32.mxu0 0.0
        %1360 = vmatmul.mubr.f32.gmra.mrb[0].mxu0 %v678
        %v1361 = vpop.f32.mrb[0].mxu0
        %v1362 = vadd.f32 %v329, %v1361
        %v1363 = vpop.f32.mrb[0].mxu0
        %1364 = vmatprep.mubr.f32.mxu0 0.0
        %1365 = vmatmul.mubr.f32.gmra.mrb[0].mxu0 %v681
        %v1366 = vpop.f32.mrb[0].mxu0
        %v1367 = vadd.f32 %v329, %v1366
        %v1368 = vpop.f32.mrb[0].mxu0
        %1369 = vmatprep.mubr.f32.mxu0 0.0
        %1370 = vmatmul.mubr.f32.gmra.mrb[0].mxu0 %v684
        %v1371 = vpop.f32.mrb[0].mxu0
        %v1372 = vadd.f32 %v329, %v1371
        %v1373 = vpop.f32.mrb[0].mxu0
        %1374 = vmatprep.mubr.f32.mxu0 0.0
        %1375 = vmatmul.mubr.f32.gmra.mrb[0].mxu0 %v687
        %v1376 = vpop.f32.mrb[0].mxu0
        %v1377 = vadd.f32 %v329, %v1376
        %v1378 = vpop.f32.mrb[0].mxu0
        %1379 = vmatprep.mubr.f32.mxu0 0.0
        %1380 = vmatmul.mubr.f32.gmra.mrb[0].mxu0 %v690
        %v1381 = vpop.f32.mrb[0].mxu0
        %v1382 = vadd.f32 %v329, %v1381
        %v1383 = vpop.f32.mrb[0].mxu0
        %1384 = vmatprep.mubr.f32.mxu0 0.0
        %1385 = vmatmul.mubr.f32.gmra.mrb[0].mxu0 %v693
        %v1386 = vpop.f32.mrb[0].mxu0
        %v1387 = vadd.f32 %v329, %v1386
        %v1388 = vpop.f32.mrb[0].mxu0
        %1389 = vmatprep.mubr.f32.mxu0 0.0
        %1390 = vmatmul.mubr.f32.gmra.mrb[0].mxu0 %v696
        %v1391 = vpop.f32.mrb[0].mxu0
        %v1392 = vadd.f32 %v329, %v1391
        %v1393 = vpop.f32.mrb[0].mxu0
        %1394 = vmatprep.mubr.f32.mxu0 0.0
        %1395 = vmatmul.mubr.f32.gmra.mrb[0].mxu0 %v699
        %v1396 = vpop.f32.mrb[0].mxu0
        %v1397 = vadd.f32 %v329, %v1396
        %v1398 = vpop.f32.mrb[0].mxu0
        %1399 = vmatprep.mubr.f32.mxu0 0.0
        %1400 = vmatmul.mubr.f32.gmra.mrb[0].mxu0 %v702
        %v1401 = vpop.f32.mrb[0].mxu0
        %v1402 = vadd.f32 %v329, %v1401
        %v1403 = vpop.f32.mrb[0].mxu0
        %1404 = vmatprep.mubr.f32.mxu0 0.0
        %1405 = vmatmul.mubr.f32.gmra.mrb[0].mxu0 %v705
        %v1406 = vpop.f32.mrb[0].mxu0
        %v1407 = vadd.f32 %v329, %v1406
        %v1408 = vpop.f32.mrb[0].mxu0
        %1409 = vmatprep.mubr.f32.mxu0 0.0
        %1410 = vmatmul.mubr.f32.gmra.mrb[0].mxu0 %v708
        %v1411 = vpop.f32.mrb[0].mxu0
        %v1412 = vadd.f32 %v329, %v1411
        %v1413 = vpop.f32.mrb[0].mxu0
        %1414 = vmatprep.mubr.f32.mxu0 0.0
        %1415 = vmatmul.mubr.f32.gmra.mrb[0].mxu0 %v711
        %v1416 = vpop.f32.mrb[0].mxu0
        %v1417 = vadd.f32 %v329, %v1416
        %v1418 = vpop.f32.mrb[0].mxu0
        %1419 = vmatprep.mubr.f32.mxu0 0.0
        %1420 = vmatmul.mubr.f32.gmra.mrb[0].mxu0 %v714
        %v1421 = vpop.f32.mrb[0].mxu0
        %v1422 = vadd.f32 %v329, %v1421
        %v1423 = vpop.f32.mrb[0].mxu0
        %1424 = vdwg.mxu0
        %vm1425 = vcmask 130048
        %1426 = vst.msk [vmem:[%s172] sm:$0xff] %vm1425, %v787
        %1427 = vst.msk [vmem:[%s172 + $0x8] sm:$0xff] %vm1425, %v792
        %1428 = vst.msk [vmem:[%s172 + $0x10] sm:$0xff] %vm1425, %v797
        %1429 = vst.msk [vmem:[%s172 + $0x18] sm:$0xff] %vm1425, %v802
        %1430 = vst.msk [vmem:[%s172 + $0x20] sm:$0xff] %vm1425, %v807
        %1431 = vst.msk [vmem:[%s172 + $0x28] sm:$0xff] %vm1425, %v812
        %1432 = vst.msk [vmem:[%s172 + $0x30] sm:$0xff] %vm1425, %v817
        %1433 = vst.msk [vmem:[%s172 + $0x38] sm:$0xff] %vm1425, %v822
        %1434 = vst.msk [vmem:[%s172 + $0x40] sm:$0xff] %vm1425, %v827
        %1435 = vst.msk [vmem:[%s172 + $0x48] sm:$0xff] %vm1425, %v832
        %1436 = vst.msk [vmem:[%s172 + $0x50] sm:$0xff] %vm1425, %v837
        %1437 = vst.msk [vmem:[%s172 + $0x58] sm:$0xff] %vm1425, %v842
        %1438 = vst.msk [vmem:[%s172 + $0x60] sm:$0xff] %vm1425, %v847
        %1439 = vst.msk [vmem:[%s172 + $0x68] sm:$0xff] %vm1425, %v852
        %1440 = vst.msk [vmem:[%s172 + $0x70] sm:$0xff] %vm1425, %v857
        %1441 = vst.msk [vmem:[%s172 + $0x78] sm:$0xff] %vm1425, %v862
        %1442 = vst.msk [vmem:[%s172 + $0x80] sm:$0xff] %vm1425, %v867
        %1443 = vst.msk [vmem:[%s172 + $0x88] sm:$0xff] %vm1425, %v872
        %1444 = vst.msk [vmem:[%s172 + $0x90] sm:$0xff] %vm1425, %v877
        %1445 = vst.msk [vmem:[%s172 + $0x98] sm:$0xff] %vm1425, %v882
        %1446 = vst.msk [vmem:[%s172 + $0xa0] sm:$0xff] %vm1425, %v887
        %1447 = vst.msk [vmem:[%s172 + $0xa8] sm:$0xff] %vm1425, %v892
        %1448 = vst.msk [vmem:[%s172 + $0xb0] sm:$0xff] %vm1425, %v897
        %1449 = vst.msk [vmem:[%s172 + $0xb8] sm:$0xff] %vm1425, %v902
        %1450 = vst.msk [vmem:[%s172 + $0xc0] sm:$0xff] %vm1425, %v907
        %1451 = vst.msk [vmem:[%s172 + $0xc8] sm:$0xff] %vm1425, %v912
        %1452 = vst.msk [vmem:[%s172 + $0xd0] sm:$0xff] %vm1425, %v917
        %1453 = vst.msk [vmem:[%s172 + $0xd8] sm:$0xff] %vm1425, %v922
        %1454 = vst.msk [vmem:[%s172 + $0xe0] sm:$0xff] %vm1425, %v927
        %1455 = vst.msk [vmem:[%s172 + $0xe8] sm:$0xff] %vm1425, %v932
        %1456 = vst.msk [vmem:[%s172 + $0xf0] sm:$0xff] %vm1425, %v937
        %1457 = vst.msk [vmem:[%s172 + $0xf8] sm:$0xff] %vm1425, %v942
        %1458 = vst.msk [vmem:[%s172 + $0x100] sm:$0xff] %vm1425, %v947
        %1459 = vst.msk [vmem:[%s172 + $0x108] sm:$0xff] %vm1425, %v952
        %1460 = vst.msk [vmem:[%s172 + $0x110] sm:$0xff] %vm1425, %v957
        %1461 = vst.msk [vmem:[%s172 + $0x118] sm:$0xff] %vm1425, %v962
        %1462 = vst.msk [vmem:[%s172 + $0x120] sm:$0xff] %vm1425, %v967
        %1463 = vst.msk [vmem:[%s172 + $0x128] sm:$0xff] %vm1425, %v972
        %1464 = vst.msk [vmem:[%s172 + $0x130] sm:$0xff] %vm1425, %v977
        %1465 = vst.msk [vmem:[%s172 + $0x138] sm:$0xff] %vm1425, %v982
        %1466 = vst.msk [vmem:[%s172 + $0x140] sm:$0xff] %vm1425, %v987
        %1467 = vst.msk [vmem:[%s172 + $0x148] sm:$0xff] %vm1425, %v992
        %1468 = vst.msk [vmem:[%s172 + $0x150] sm:$0xff] %vm1425, %v997
        %1469 = vst.msk [vmem:[%s172 + $0x158] sm:$0xff] %vm1425, %v1002
        %1470 = vst.msk [vmem:[%s172 + $0x160] sm:$0xff] %vm1425, %v1007
        %1471 = vst.msk [vmem:[%s172 + $0x168] sm:$0xff] %vm1425, %v1012
        %1472 = vst.msk [vmem:[%s172 + $0x170] sm:$0xff] %vm1425, %v1017
        %1473 = vst.msk [vmem:[%s172 + $0x178] sm:$0xff] %vm1425, %v1022
        %1474 = vst.msk [vmem:[%s172 + $0x180] sm:$0xff] %vm1425, %v1027
        %1475 = vst.msk [vmem:[%s172 + $0x188] sm:$0xff] %vm1425, %v1032
        %1476 = vst.msk [vmem:[%s172 + $0x190] sm:$0xff] %vm1425, %v1037
        %1477 = vst.msk [vmem:[%s172 + $0x198] sm:$0xff] %vm1425, %v1042
        %1478 = vst.msk [vmem:[%s172 + $0x1a0] sm:$0xff] %vm1425, %v1047
        %1479 = vst.msk [vmem:[%s172 + $0x1a8] sm:$0xff] %vm1425, %v1052
        %1480 = vst.msk [vmem:[%s172 + $0x1b0] sm:$0xff] %vm1425, %v1057
        %1481 = vst.msk [vmem:[%s172 + $0x1b8] sm:$0xff] %vm1425, %v1062
        %1482 = vst.msk [vmem:[%s172 + $0x1c0] sm:$0xff] %vm1425, %v1067
        %1483 = vst.msk [vmem:[%s172 + $0x1c8] sm:$0xff] %vm1425, %v1072
        %1484 = vst.msk [vmem:[%s172 + $0x1d0] sm:$0xff] %vm1425, %v1077
        %1485 = vst.msk [vmem:[%s172 + $0x1d8] sm:$0xff] %vm1425, %v1082
        %1486 = vst.msk [vmem:[%s172 + $0x1e0] sm:$0xff] %vm1425, %v1087
        %1487 = vst.msk [vmem:[%s172 + $0x1e8] sm:$0xff] %vm1425, %v1092
        %1488 = vst.msk [vmem:[%s172 + $0x1f0] sm:$0xff] %vm1425, %v1097
        %1489 = vst.msk [vmem:[%s172 + $0x1f8] sm:$0xff] %vm1425, %v1102
        %1490 = vst.msk [vmem:[%s172 + $0x200] sm:$0xff] %vm1425, %v1107
        %1491 = vst.msk [vmem:[%s172 + $0x208] sm:$0xff] %vm1425, %v1112
        %1492 = vst.msk [vmem:[%s172 + $0x210] sm:$0xff] %vm1425, %v1117
        %1493 = vst.msk [vmem:[%s172 + $0x218] sm:$0xff] %vm1425, %v1122
        %1494 = vst.msk [vmem:[%s172 + $0x220] sm:$0xff] %vm1425, %v1127
        %1495 = vst.msk [vmem:[%s172 + $0x228] sm:$0xff] %vm1425, %v1132
        %1496 = vst.msk [vmem:[%s172 + $0x230] sm:$0xff] %vm1425, %v1137
        %1497 = vst.msk [vmem:[%s172 + $0x238] sm:$0xff] %vm1425, %v1142
        %1498 = vst.msk [vmem:[%s172 + $0x240] sm:$0xff] %vm1425, %v1147
        %1499 = vst.msk [vmem:[%s172 + $0x248] sm:$0xff] %vm1425, %v1152
        %1500 = vst.msk [vmem:[%s172 + $0x250] sm:$0xff] %vm1425, %v1157
        %1501 = vst.msk [vmem:[%s172 + $0x258] sm:$0xff] %vm1425, %v1162
        %1502 = vst.msk [vmem:[%s172 + $0x260] sm:$0xff] %vm1425, %v1167
        %1503 = vst.msk [vmem:[%s172 + $0x268] sm:$0xff] %vm1425, %v1172
        %1504 = vst.msk [vmem:[%s172 + $0x270] sm:$0xff] %vm1425, %v1177
        %1505 = vst.msk [vmem:[%s172 + $0x278] sm:$0xff] %vm1425, %v1182
        %1506 = vst.msk [vmem:[%s172 + $0x280] sm:$0xff] %vm1425, %v1187
        %1507 = vst.msk [vmem:[%s172 + $0x288] sm:$0xff] %vm1425, %v1192
        %1508 = vst.msk [vmem:[%s172 + $0x290] sm:$0xff] %vm1425, %v1197
        %1509 = vst.msk [vmem:[%s172 + $0x298] sm:$0xff] %vm1425, %v1202
        %1510 = vst.msk [vmem:[%s172 + $0x2a0] sm:$0xff] %vm1425, %v1207
        %1511 = vst.msk [vmem:[%s172 + $0x2a8] sm:$0xff] %vm1425, %v1212
        %1512 = vst.msk [vmem:[%s172 + $0x2b0] sm:$0xff] %vm1425, %v1217
        %1513 = vst.msk [vmem:[%s172 + $0x2b8] sm:$0xff] %vm1425, %v1222
        %1514 = vst.msk [vmem:[%s172 + $0x2c0] sm:$0xff] %vm1425, %v1227
        %1515 = vst.msk [vmem:[%s172 + $0x2c8] sm:$0xff] %vm1425, %v1232
        %1516 = vst.msk [vmem:[%s172 + $0x2d0] sm:$0xff] %vm1425, %v1237
        %1517 = vst.msk [vmem:[%s172 + $0x2d8] sm:$0xff] %vm1425, %v1242
        %1518 = vst.msk [vmem:[%s172 + $0x2e0] sm:$0xff] %vm1425, %v1247
        %1519 = vst.msk [vmem:[%s172 + $0x2e8] sm:$0xff] %vm1425, %v1252
        %1520 = vst.msk [vmem:[%s172 + $0x2f0] sm:$0xff] %vm1425, %v1257
        %1521 = vst.msk [vmem:[%s172 + $0x2f8] sm:$0xff] %vm1425, %v1262
        %1522 = vst.msk [vmem:[%s172 + $0x300] sm:$0xff] %vm1425, %v1267
        %1523 = vst.msk [vmem:[%s172 + $0x308] sm:$0xff] %vm1425, %v1272
        %1524 = vst.msk [vmem:[%s172 + $0x310] sm:$0xff] %vm1425, %v1277
        %1525 = vst.msk [vmem:[%s172 + $0x318] sm:$0xff] %vm1425, %v1282
        %1526 = vst.msk [vmem:[%s172 + $0x320] sm:$0xff] %vm1425, %v1287
        %1527 = vst.msk [vmem:[%s172 + $0x328] sm:$0xff] %vm1425, %v1292
        %1528 = vst.msk [vmem:[%s172 + $0x330] sm:$0xff] %vm1425, %v1297
        %1529 = vst.msk [vmem:[%s172 + $0x338] sm:$0xff] %vm1425, %v1302
        %1530 = vst.msk [vmem:[%s172 + $0x340] sm:$0xff] %vm1425, %v1307
        %1531 = vst.msk [vmem:[%s172 + $0x348] sm:$0xff] %vm1425, %v1312
        %1532 = vst.msk [vmem:[%s172 + $0x350] sm:$0xff] %vm1425, %v1317
        %1533 = vst.msk [vmem:[%s172 + $0x358] sm:$0xff] %vm1425, %v1322
        %1534 = vst.msk [vmem:[%s172 + $0x360] sm:$0xff] %vm1425, %v1327
        %1535 = vst.msk [vmem:[%s172 + $0x368] sm:$0xff] %vm1425, %v1332
        %1536 = vst.msk [vmem:[%s172 + $0x370] sm:$0xff] %vm1425, %v1337
        %1537 = vst.msk [vmem:[%s172 + $0x378] sm:$0xff] %vm1425, %v1342
        %1538 = vst.msk [vmem:[%s172 + $0x380] sm:$0xff] %vm1425, %v1347
        %1539 = vst.msk [vmem:[%s172 + $0x388] sm:$0xff] %vm1425, %v1352
        %1540 = vst.msk [vmem:[%s172 + $0x390] sm:$0xff] %vm1425, %v1357
        %1541 = vst.msk [vmem:[%s172 + $0x398] sm:$0xff] %vm1425, %v1362
        %1542 = vst.msk [vmem:[%s172 + $0x3a0] sm:$0xff] %vm1425, %v1367
        %1543 = vst.msk [vmem:[%s172 + $0x3a8] sm:$0xff] %vm1425, %v1372
        %1544 = vst.msk [vmem:[%s172 + $0x3b0] sm:$0xff] %vm1425, %v1377
        %1545 = vst.msk [vmem:[%s172 + $0x3b8] sm:$0xff] %vm1425, %v1382
        %1546 = vst.msk [vmem:[%s172 + $0x3c0] sm:$0xff] %vm1425, %v1387
        %1547 = vst.msk [vmem:[%s172 + $0x3c8] sm:$0xff] %vm1425, %v1392
        %1548 = vst.msk [vmem:[%s172 + $0x3d0] sm:$0xff] %vm1425, %v1397
        %1549 = vst.msk [vmem:[%s172 + $0x3d8] sm:$0xff] %vm1425, %v1402
        %1550 = vst.msk [vmem:[%s172 + $0x3e0] sm:$0xff] %vm1425, %v1407
        %1551 = vst.msk [vmem:[%s172 + $0x3e8] sm:$0xff] %vm1425, %v1412
        %1552 = vst.msk [vmem:[%s172 + $0x3f0] sm:$0xff] %vm1425, %v1417
        %1553 = vst.msk [vmem:[%s172 + $0x3f8] sm:$0xff] %vm1425, %v1422
        %s1554 = sand.u32 %s90, 1
        %s1555 = sand.u32 %s90, 1
        %s1556 = smul.addr %s1555, 1024
        %s1557 = scalar_lea.vmem [#allocation2], %s1556
        // Predicated region
        $region33: #{mnist_cnn_forward.7} parent=31 // pred_check
          %p1558 = pneg %p100
        $region34: #{mnist_cnn_forward.7} parent=31 // pred_check_branch
          %1560 = sbr.rel (%p1558) target = $region36
        $region35: #{mnist_cnn_forward.7} parent=31 // pred_region
          %s1561 = smul.u32 128, %s14
          %s1562 = ssub.s32 169, %s1561
          %p1563 = scmp.lt.s32.totalorder %s1562, 128
          %s1564 = scalar_select %p1563, %s1562, 128
          %s1565 = smul.u32 128, %s1564
          %p1566 = scmp.ne.s32.totalorder 0, %s1565
          %s1567 = smul.addr %s1561, 8
          %s1568 = scalar_lea.vmem %s3, %s1567
          // Predicated region
          $region37: #{mnist_cnn_forward.7} parent=35 // pred_check
            %p1569 = pneg %p1566
          $region38: #{mnist_cnn_forward.7} parent=35 // pred_check_branch
            %1571 = sbr.rel (%p1569) target = $region40
          $region39: #{mnist_cnn_forward.7} parent=35 // pred_region
            // Predicated region
            $region41: #{mnist_cnn_forward.7} parent=39 // pred_check
              _
            $region42: #{mnist_cnn_forward.7} parent=39 // pred_check_branch
              %1573 = sbr.rel (0) target = $region44
            $region43: #{mnist_cnn_forward.7} parent=39 // pred_region
              // Predicated region
              $region63: #{mnist_cnn_forward.7} parent=43 // pred_check
                _
              $region64: #{mnist_cnn_forward.7} parent=43 // pred_check_branch
                %1748 = sbr.rel (0) target = $region66
              $region65: #{mnist_cnn_forward.7} parent=43 // pred_region
                %s1749 = sshrl.u32 %s1564, 6
                // While loop
                $region67: #{mnist_cnn_forward.7} parent=65 // loop_pre_header
                  _
                $region68: #{mnist_cnn_forward.7} parent=65 // loop_header
                  %s1751 = sphi 0, %s1753
                  %p1752 = scmp.ge.s32.totalorder %s1751, %s1749
                  %s1756 = sphi 0, %s1889
                  %s1757 = sphi %s1557, %s1892
                  %s1758 = sphi %s1568, %s1893
                $region69: #{mnist_cnn_forward.7} parent=65 // loop_header_branch
                  %1755 = sbr.rel (%p1752) target = $region73
                $region70: #{mnist_cnn_forward.7} parent=65 // loop_body
                  %v1759 = vld [vmem:[%s1757] sm:$0xff]
                  %1760 = vst [vmem:[%s1758] sm:$0xff] %v1759
                  %v1761 = vld [vmem:[%s1757 + $0x8] sm:$0xff]
                  %1762 = vst [vmem:[%s1758 + $0x8] sm:$0xff] %v1761
                  %v1763 = vld [vmem:[%s1757 + $0x10] sm:$0xff]
                  %1764 = vst [vmem:[%s1758 + $0x10] sm:$0xff] %v1763
                  %v1765 = vld [vmem:[%s1757 + $0x18] sm:$0xff]
                  %1766 = vst [vmem:[%s1758 + $0x18] sm:$0xff] %v1765
                  %v1767 = vld [vmem:[%s1757 + $0x20] sm:$0xff]
                  %1768 = vst [vmem:[%s1758 + $0x20] sm:$0xff] %v1767
                  %v1769 = vld [vmem:[%s1757 + $0x28] sm:$0xff]
                  %1770 = vst [vmem:[%s1758 + $0x28] sm:$0xff] %v1769
                  %v1771 = vld [vmem:[%s1757 + $0x30] sm:$0xff]
                  %1772 = vst [vmem:[%s1758 + $0x30] sm:$0xff] %v1771
                  %v1773 = vld [vmem:[%s1757 + $0x38] sm:$0xff]
                  %1774 = vst [vmem:[%s1758 + $0x38] sm:$0xff] %v1773
                  %v1775 = vld [vmem:[%s1757 + $0x40] sm:$0xff]
                  %1776 = vst [vmem:[%s1758 + $0x40] sm:$0xff] %v1775
                  %v1777 = vld [vmem:[%s1757 + $0x48] sm:$0xff]
                  %1778 = vst [vmem:[%s1758 + $0x48] sm:$0xff] %v1777
                  %v1779 = vld [vmem:[%s1757 + $0x50] sm:$0xff]
                  %1780 = vst [vmem:[%s1758 + $0x50] sm:$0xff] %v1779
                  %v1781 = vld [vmem:[%s1757 + $0x58] sm:$0xff]
                  %1782 = vst [vmem:[%s1758 + $0x58] sm:$0xff] %v1781
                  %v1783 = vld [vmem:[%s1757 + $0x60] sm:$0xff]
                  %1784 = vst [vmem:[%s1758 + $0x60] sm:$0xff] %v1783
                  %v1785 = vld [vmem:[%s1757 + $0x68] sm:$0xff]
                  %1786 = vst [vmem:[%s1758 + $0x68] sm:$0xff] %v1785
                  %v1787 = vld [vmem:[%s1757 + $0x70] sm:$0xff]
                  %1788 = vst [vmem:[%s1758 + $0x70] sm:$0xff] %v1787
                  %v1789 = vld [vmem:[%s1757 + $0x78] sm:$0xff]
                  %1790 = vst [vmem:[%s1758 + $0x78] sm:$0xff] %v1789
                  %v1791 = vld [vmem:[%s1757 + $0x80] sm:$0xff]
                  %1792 = vst [vmem:[%s1758 + $0x80] sm:$0xff] %v1791
                  %v1793 = vld [vmem:[%s1757 + $0x88] sm:$0xff]
                  %1794 = vst [vmem:[%s1758 + $0x88] sm:$0xff] %v1793
                  %v1795 = vld [vmem:[%s1757 + $0x90] sm:$0xff]
                  %1796 = vst [vmem:[%s1758 + $0x90] sm:$0xff] %v1795
                  %v1797 = vld [vmem:[%s1757 + $0x98] sm:$0xff]
                  %1798 = vst [vmem:[%s1758 + $0x98] sm:$0xff] %v1797
                  %v1799 = vld [vmem:[%s1757 + $0xa0] sm:$0xff]
                  %1800 = vst [vmem:[%s1758 + $0xa0] sm:$0xff] %v1799
                  %v1801 = vld [vmem:[%s1757 + $0xa8] sm:$0xff]
                  %1802 = vst [vmem:[%s1758 + $0xa8] sm:$0xff] %v1801
                  %v1803 = vld [vmem:[%s1757 + $0xb0] sm:$0xff]
                  %1804 = vst [vmem:[%s1758 + $0xb0] sm:$0xff] %v1803
                  %v1805 = vld [vmem:[%s1757 + $0xb8] sm:$0xff]
                  %1806 = vst [vmem:[%s1758 + $0xb8] sm:$0xff] %v1805
                  %v1807 = vld [vmem:[%s1757 + $0xc0] sm:$0xff]
                  %1808 = vst [vmem:[%s1758 + $0xc0] sm:$0xff] %v1807
                  %v1809 = vld [vmem:[%s1757 + $0xc8] sm:$0xff]
                  %1810 = vst [vmem:[%s1758 + $0xc8] sm:$0xff] %v1809
                  %v1811 = vld [vmem:[%s1757 + $0xd0] sm:$0xff]
                  %1812 = vst [vmem:[%s1758 + $0xd0] sm:$0xff] %v1811
                  %v1813 = vld [vmem:[%s1757 + $0xd8] sm:$0xff]
                  %1814 = vst [vmem:[%s1758 + $0xd8] sm:$0xff] %v1813
                  %v1815 = vld [vmem:[%s1757 + $0xe0] sm:$0xff]
                  %1816 = vst [vmem:[%s1758 + $0xe0] sm:$0xff] %v1815
                  %v1817 = vld [vmem:[%s1757 + $0xe8] sm:$0xff]
                  %1818 = vst [vmem:[%s1758 + $0xe8] sm:$0xff] %v1817
                  %v1819 = vld [vmem:[%s1757 + $0xf0] sm:$0xff]
                  %1820 = vst [vmem:[%s1758 + $0xf0] sm:$0xff] %v1819
                  %v1821 = vld [vmem:[%s1757 + $0xf8] sm:$0xff]
                  %1822 = vst [vmem:[%s1758 + $0xf8] sm:$0xff] %v1821
                  %v1823 = vld [vmem:[%s1757 + $0x100] sm:$0xff]
                  %1824 = vst [vmem:[%s1758 + $0x100] sm:$0xff] %v1823
                  %v1825 = vld [vmem:[%s1757 + $0x108] sm:$0xff]
                  %1826 = vst [vmem:[%s1758 + $0x108] sm:$0xff] %v1825
                  %v1827 = vld [vmem:[%s1757 + $0x110] sm:$0xff]
                  %1828 = vst [vmem:[%s1758 + $0x110] sm:$0xff] %v1827
                  %v1829 = vld [vmem:[%s1757 + $0x118] sm:$0xff]
                  %1830 = vst [vmem:[%s1758 + $0x118] sm:$0xff] %v1829
                  %v1831 = vld [vmem:[%s1757 + $0x120] sm:$0xff]
                  %1832 = vst [vmem:[%s1758 + $0x120] sm:$0xff] %v1831
                  %v1833 = vld [vmem:[%s1757 + $0x128] sm:$0xff]
                  %1834 = vst [vmem:[%s1758 + $0x128] sm:$0xff] %v1833
                  %v1835 = vld [vmem:[%s1757 + $0x130] sm:$0xff]
                  %1836 = vst [vmem:[%s1758 + $0x130] sm:$0xff] %v1835
                  %v1837 = vld [vmem:[%s1757 + $0x138] sm:$0xff]
                  %1838 = vst [vmem:[%s1758 + $0x138] sm:$0xff] %v1837
                  %v1839 = vld [vmem:[%s1757 + $0x140] sm:$0xff]
                  %1840 = vst [vmem:[%s1758 + $0x140] sm:$0xff] %v1839
                  %v1841 = vld [vmem:[%s1757 + $0x148] sm:$0xff]
                  %1842 = vst [vmem:[%s1758 + $0x148] sm:$0xff] %v1841
                  %v1843 = vld [vmem:[%s1757 + $0x150] sm:$0xff]
                  %1844 = vst [vmem:[%s1758 + $0x150] sm:$0xff] %v1843
                  %v1845 = vld [vmem:[%s1757 + $0x158] sm:$0xff]
                  %1846 = vst [vmem:[%s1758 + $0x158] sm:$0xff] %v1845
                  %v1847 = vld [vmem:[%s1757 + $0x160] sm:$0xff]
                  %1848 = vst [vmem:[%s1758 + $0x160] sm:$0xff] %v1847
                  %v1849 = vld [vmem:[%s1757 + $0x168] sm:$0xff]
                  %1850 = vst [vmem:[%s1758 + $0x168] sm:$0xff] %v1849
                  %v1851 = vld [vmem:[%s1757 + $0x170] sm:$0xff]
                  %1852 = vst [vmem:[%s1758 + $0x170] sm:$0xff] %v1851
                  %v1853 = vld [vmem:[%s1757 + $0x178] sm:$0xff]
                  %1854 = vst [vmem:[%s1758 + $0x178] sm:$0xff] %v1853
                  %v1855 = vld [vmem:[%s1757 + $0x180] sm:$0xff]
                  %1856 = vst [vmem:[%s1758 + $0x180] sm:$0xff] %v1855
                  %v1857 = vld [vmem:[%s1757 + $0x188] sm:$0xff]
                  %1858 = vst [vmem:[%s1758 + $0x188] sm:$0xff] %v1857
                  %v1859 = vld [vmem:[%s1757 + $0x190] sm:$0xff]
                  %1860 = vst [vmem:[%s1758 + $0x190] sm:$0xff] %v1859
                  %v1861 = vld [vmem:[%s1757 + $0x198] sm:$0xff]
                  %1862 = vst [vmem:[%s1758 + $0x198] sm:$0xff] %v1861
                  %v1863 = vld [vmem:[%s1757 + $0x1a0] sm:$0xff]
                  %1864 = vst [vmem:[%s1758 + $0x1a0] sm:$0xff] %v1863
                  %v1865 = vld [vmem:[%s1757 + $0x1a8] sm:$0xff]
                  %1866 = vst [vmem:[%s1758 + $0x1a8] sm:$0xff] %v1865
                  %v1867 = vld [vmem:[%s1757 + $0x1b0] sm:$0xff]
                  %1868 = vst [vmem:[%s1758 + $0x1b0] sm:$0xff] %v1867
                  %v1869 = vld [vmem:[%s1757 + $0x1b8] sm:$0xff]
                  %1870 = vst [vmem:[%s1758 + $0x1b8] sm:$0xff] %v1869
                  %v1871 = vld [vmem:[%s1757 + $0x1c0] sm:$0xff]
                  %1872 = vst [vmem:[%s1758 + $0x1c0] sm:$0xff] %v1871
                  %v1873 = vld [vmem:[%s1757 + $0x1c8] sm:$0xff]
                  %1874 = vst [vmem:[%s1758 + $0x1c8] sm:$0xff] %v1873
                  %v1875 = vld [vmem:[%s1757 + $0x1d0] sm:$0xff]
                  %1876 = vst [vmem:[%s1758 + $0x1d0] sm:$0xff] %v1875
                  %v1877 = vld [vmem:[%s1757 + $0x1d8] sm:$0xff]
                  %1878 = vst [vmem:[%s1758 + $0x1d8] sm:$0xff] %v1877
                  %v1879 = vld [vmem:[%s1757 + $0x1e0] sm:$0xff]
                  %1880 = vst [vmem:[%s1758 + $0x1e0] sm:$0xff] %v1879
                  %v1881 = vld [vmem:[%s1757 + $0x1e8] sm:$0xff]
                  %1882 = vst [vmem:[%s1758 + $0x1e8] sm:$0xff] %v1881
                  %v1883 = vld [vmem:[%s1757 + $0x1f0] sm:$0xff]
                  %1884 = vst [vmem:[%s1758 + $0x1f0] sm:$0xff] %v1883
                  %v1885 = vld [vmem:[%s1757 + $0x1f8] sm:$0xff]
                  %1886 = vst [vmem:[%s1758 + $0x1f8] sm:$0xff] %v1885
                  %s1887 = sadd.s32 1, %s1756
                  %p1888 = scmp.ge.s32.totalorder %s1887, %s1749
                  %s1889 = scalar_select %p1888, 0, %s1887
                  %s1890 = smul.u32 %s1889, 512
                  %s1891 = smul.u32 %s1889, 512
                  %s1892 = scalar_lea.vmem %s1557, %s1890 [#allocation2]
                  %s1893 = scalar_lea.vmem %s1568, %s1891
                $region71: #{mnist_cnn_forward.7} parent=65 // loop_footer
                  %s1753 = sadd.s32 %s1751, 1
                $region72: #{mnist_cnn_forward.7} parent=65 // loop_footer_branch
                  %1750 = sbr.rel target = $region68
                $region73: #{mnist_cnn_forward.7} parent=65 // loop_exit
                  _
                %s1894 = sshrl.u32 %s1564, 6
                %s1895 = sand.u32 %s1564, 63
                %s1896 = smul.u32 %s1894, 64
                %s1897 = smul.u32 8, %s1896
                %s1898 = scalar_lea.vmem %s1557, %s1897 [#allocation2]
                %s1899 = smul.u32 8, %s1896
                %s1900 = scalar_lea.vmem %s1568, %s1899
                // While loop
                $region74: #{mnist_cnn_forward.7} parent=65 // loop_pre_header
                  _
                $region75: #{mnist_cnn_forward.7} parent=65 // loop_header
                  %s1902 = sphi 0, %s1904
                  %p1903 = scmp.ge.s32.totalorder %s1902, %s1895
                  %s1907 = sphi 0, %s1914
                  %s1908 = sphi %s1898, %s1917
                  %s1909 = sphi %s1900, %s1918
                $region76: #{mnist_cnn_forward.7} parent=65 // loop_header_branch
                  %1906 = sbr.rel (%p1903) target = $region80
                $region77: #{mnist_cnn_forward.7} parent=65 // loop_body
                  %v1910 = vld [vmem:[%s1908] sm:$0xff]
                  %1911 = vst [vmem:[%s1909] sm:$0xff] %v1910
                  %s1912 = sadd.s32 1, %s1907
                  %p1913 = scmp.ge.s32.totalorder %s1912, %s1895
                  %s1914 = scalar_select %p1913, 0, %s1912
                  %s1915 = smul.u32 %s1914, 8
                  %s1916 = smul.u32 %s1914, 8
                  %s1917 = scalar_lea.vmem %s1898, %s1915 [#allocation2]
                  %s1918 = scalar_lea.vmem %s1900, %s1916
                $region78: #{mnist_cnn_forward.7} parent=65 // loop_footer
                  %s1904 = sadd.s32 %s1902, 1
                $region79: #{mnist_cnn_forward.7} parent=65 // loop_footer_branch
                  %1901 = sbr.rel target = $region75
                $region80: #{mnist_cnn_forward.7} parent=65 // loop_exit
                  _
              $region66: #{mnist_cnn_forward.7} parent=43 // pred_fallthru
                _
              // Predicated region
              $region81: #{mnist_cnn_forward.7} parent=43 // pred_check
                _
              $region82: #{mnist_cnn_forward.7} parent=43 // pred_check_branch
                %1920 = sbr.rel target = $region84
              $region83: #{mnist_cnn_forward.7} parent=43 // pred_region
                _
              $region84: #{mnist_cnn_forward.7} parent=43 // pred_fallthru
                _
            $region44: #{mnist_cnn_forward.7} parent=39 // pred_fallthru
              _
            // Predicated region
            $region45: #{mnist_cnn_forward.7} parent=39 // pred_check
              _
            $region46: #{mnist_cnn_forward.7} parent=39 // pred_check_branch
              %1575 = sbr.rel target = $region48
            $region47: #{mnist_cnn_forward.7} parent=39 // pred_region
              %s1577 = sshrl.u32 %s1564, 6
              // While loop
              $region49: #{mnist_cnn_forward.7} parent=47 // loop_pre_header
                _
              $region50: #{mnist_cnn_forward.7} parent=47 // loop_header
                %s1579 = sphi 0, %s1581
                %p1580 = scmp.ge.s32.totalorder %s1579, %s1577
                %s1584 = sphi 0, %s1717
                %s1585 = sphi %s1557, %s1720
                %s1586 = sphi %s1568, %s1721
              $region51: #{mnist_cnn_forward.7} parent=47 // loop_header_branch
                %1583 = sbr.rel (%p1580) target = $region55
              $region52: #{mnist_cnn_forward.7} parent=47 // loop_body
                %v1587 = vld [vmem:[%s1585] sm:$0xff]
                %1588 = vst [vmem:[%s1586] sm:$0xff] %v1587
                %v1589 = vld [vmem:[%s1585 + $0x8] sm:$0xff]
                %1590 = vst [vmem:[%s1586 + $0x8] sm:$0xff] %v1589
                %v1591 = vld [vmem:[%s1585 + $0x10] sm:$0xff]
                %1592 = vst [vmem:[%s1586 + $0x10] sm:$0xff] %v1591
                %v1593 = vld [vmem:[%s1585 + $0x18] sm:$0xff]
                %1594 = vst [vmem:[%s1586 + $0x18] sm:$0xff] %v1593
                %v1595 = vld [vmem:[%s1585 + $0x20] sm:$0xff]
                %1596 = vst [vmem:[%s1586 + $0x20] sm:$0xff] %v1595
                %v1597 = vld [vmem:[%s1585 + $0x28] sm:$0xff]
                %1598 = vst [vmem:[%s1586 + $0x28] sm:$0xff] %v1597
                %v1599 = vld [vmem:[%s1585 + $0x30] sm:$0xff]
                %1600 = vst [vmem:[%s1586 + $0x30] sm:$0xff] %v1599
                %v1601 = vld [vmem:[%s1585 + $0x38] sm:$0xff]
                %1602 = vst [vmem:[%s1586 + $0x38] sm:$0xff] %v1601
                %v1603 = vld [vmem:[%s1585 + $0x40] sm:$0xff]
                %1604 = vst [vmem:[%s1586 + $0x40] sm:$0xff] %v1603
                %v1605 = vld [vmem:[%s1585 + $0x48] sm:$0xff]
                %1606 = vst [vmem:[%s1586 + $0x48] sm:$0xff] %v1605
                %v1607 = vld [vmem:[%s1585 + $0x50] sm:$0xff]
                %1608 = vst [vmem:[%s1586 + $0x50] sm:$0xff] %v1607
                %v1609 = vld [vmem:[%s1585 + $0x58] sm:$0xff]
                %1610 = vst [vmem:[%s1586 + $0x58] sm:$0xff] %v1609
                %v1611 = vld [vmem:[%s1585 + $0x60] sm:$0xff]
                %1612 = vst [vmem:[%s1586 + $0x60] sm:$0xff] %v1611
                %v1613 = vld [vmem:[%s1585 + $0x68] sm:$0xff]
                %1614 = vst [vmem:[%s1586 + $0x68] sm:$0xff] %v1613
                %v1615 = vld [vmem:[%s1585 + $0x70] sm:$0xff]
                %1616 = vst [vmem:[%s1586 + $0x70] sm:$0xff] %v1615
                %v1617 = vld [vmem:[%s1585 + $0x78] sm:$0xff]
                %1618 = vst [vmem:[%s1586 + $0x78] sm:$0xff] %v1617
                %v1619 = vld [vmem:[%s1585 + $0x80] sm:$0xff]
                %1620 = vst [vmem:[%s1586 + $0x80] sm:$0xff] %v1619
                %v1621 = vld [vmem:[%s1585 + $0x88] sm:$0xff]
                %1622 = vst [vmem:[%s1586 + $0x88] sm:$0xff] %v1621
                %v1623 = vld [vmem:[%s1585 + $0x90] sm:$0xff]
                %1624 = vst [vmem:[%s1586 + $0x90] sm:$0xff] %v1623
                %v1625 = vld [vmem:[%s1585 + $0x98] sm:$0xff]
                %1626 = vst [vmem:[%s1586 + $0x98] sm:$0xff] %v1625
                %v1627 = vld [vmem:[%s1585 + $0xa0] sm:$0xff]
                %1628 = vst [vmem:[%s1586 + $0xa0] sm:$0xff] %v1627
                %v1629 = vld [vmem:[%s1585 + $0xa8] sm:$0xff]
                %1630 = vst [vmem:[%s1586 + $0xa8] sm:$0xff] %v1629
                %v1631 = vld [vmem:[%s1585 + $0xb0] sm:$0xff]
                %1632 = vst [vmem:[%s1586 + $0xb0] sm:$0xff] %v1631
                %v1633 = vld [vmem:[%s1585 + $0xb8] sm:$0xff]
                %1634 = vst [vmem:[%s1586 + $0xb8] sm:$0xff] %v1633
                %v1635 = vld [vmem:[%s1585 + $0xc0] sm:$0xff]
                %1636 = vst [vmem:[%s1586 + $0xc0] sm:$0xff] %v1635
                %v1637 = vld [vmem:[%s1585 + $0xc8] sm:$0xff]
                %1638 = vst [vmem:[%s1586 + $0xc8] sm:$0xff] %v1637
                %v1639 = vld [vmem:[%s1585 + $0xd0] sm:$0xff]
                %1640 = vst [vmem:[%s1586 + $0xd0] sm:$0xff] %v1639
                %v1641 = vld [vmem:[%s1585 + $0xd8] sm:$0xff]
                %1642 = vst [vmem:[%s1586 + $0xd8] sm:$0xff] %v1641
                %v1643 = vld [vmem:[%s1585 + $0xe0] sm:$0xff]
                %1644 = vst [vmem:[%s1586 + $0xe0] sm:$0xff] %v1643
                %v1645 = vld [vmem:[%s1585 + $0xe8] sm:$0xff]
                %1646 = vst [vmem:[%s1586 + $0xe8] sm:$0xff] %v1645
                %v1647 = vld [vmem:[%s1585 + $0xf0] sm:$0xff]
                %1648 = vst [vmem:[%s1586 + $0xf0] sm:$0xff] %v1647
                %v1649 = vld [vmem:[%s1585 + $0xf8] sm:$0xff]
                %1650 = vst [vmem:[%s1586 + $0xf8] sm:$0xff] %v1649
                %v1651 = vld [vmem:[%s1585 + $0x100] sm:$0xff]
                %1652 = vst [vmem:[%s1586 + $0x100] sm:$0xff] %v1651
                %v1653 = vld [vmem:[%s1585 + $0x108] sm:$0xff]
                %1654 = vst [vmem:[%s1586 + $0x108] sm:$0xff] %v1653
                %v1655 = vld [vmem:[%s1585 + $0x110] sm:$0xff]
                %1656 = vst [vmem:[%s1586 + $0x110] sm:$0xff] %v1655
                %v1657 = vld [vmem:[%s1585 + $0x118] sm:$0xff]
                %1658 = vst [vmem:[%s1586 + $0x118] sm:$0xff] %v1657
                %v1659 = vld [vmem:[%s1585 + $0x120] sm:$0xff]
                %1660 = vst [vmem:[%s1586 + $0x120] sm:$0xff] %v1659
                %v1661 = vld [vmem:[%s1585 + $0x128] sm:$0xff]
                %1662 = vst [vmem:[%s1586 + $0x128] sm:$0xff] %v1661
                %v1663 = vld [vmem:[%s1585 + $0x130] sm:$0xff]
                %1664 = vst [vmem:[%s1586 + $0x130] sm:$0xff] %v1663
                %v1665 = vld [vmem:[%s1585 + $0x138] sm:$0xff]
                %1666 = vst [vmem:[%s1586 + $0x138] sm:$0xff] %v1665
                %v1667 = vld [vmem:[%s1585 + $0x140] sm:$0xff]
                %1668 = vst [vmem:[%s1586 + $0x140] sm:$0xff] %v1667
                %v1669 = vld [vmem:[%s1585 + $0x148] sm:$0xff]
                %1670 = vst [vmem:[%s1586 + $0x148] sm:$0xff] %v1669
                %v1671 = vld [vmem:[%s1585 + $0x150] sm:$0xff]
                %1672 = vst [vmem:[%s1586 + $0x150] sm:$0xff] %v1671
                %v1673 = vld [vmem:[%s1585 + $0x158] sm:$0xff]
                %1674 = vst [vmem:[%s1586 + $0x158] sm:$0xff] %v1673
                %v1675 = vld [vmem:[%s1585 + $0x160] sm:$0xff]
                %1676 = vst [vmem:[%s1586 + $0x160] sm:$0xff] %v1675
                %v1677 = vld [vmem:[%s1585 + $0x168] sm:$0xff]
                %1678 = vst [vmem:[%s1586 + $0x168] sm:$0xff] %v1677
                %v1679 = vld [vmem:[%s1585 + $0x170] sm:$0xff]
                %1680 = vst [vmem:[%s1586 + $0x170] sm:$0xff] %v1679
                %v1681 = vld [vmem:[%s1585 + $0x178] sm:$0xff]
                %1682 = vst [vmem:[%s1586 + $0x178] sm:$0xff] %v1681
                %v1683 = vld [vmem:[%s1585 + $0x180] sm:$0xff]
                %1684 = vst [vmem:[%s1586 + $0x180] sm:$0xff] %v1683
                %v1685 = vld [vmem:[%s1585 + $0x188] sm:$0xff]
                %1686 = vst [vmem:[%s1586 + $0x188] sm:$0xff] %v1685
                %v1687 = vld [vmem:[%s1585 + $0x190] sm:$0xff]
                %1688 = vst [vmem:[%s1586 + $0x190] sm:$0xff] %v1687
                %v1689 = vld [vmem:[%s1585 + $0x198] sm:$0xff]
                %1690 = vst [vmem:[%s1586 + $0x198] sm:$0xff] %v1689
                %v1691 = vld [vmem:[%s1585 + $0x1a0] sm:$0xff]
                %1692 = vst [vmem:[%s1586 + $0x1a0] sm:$0xff] %v1691
                %v1693 = vld [vmem:[%s1585 + $0x1a8] sm:$0xff]
                %1694 = vst [vmem:[%s1586 + $0x1a8] sm:$0xff] %v1693
                %v1695 = vld [vmem:[%s1585 + $0x1b0] sm:$0xff]
                %1696 = vst [vmem:[%s1586 + $0x1b0] sm:$0xff] %v1695
                %v1697 = vld [vmem:[%s1585 + $0x1b8] sm:$0xff]
                %1698 = vst [vmem:[%s1586 + $0x1b8] sm:$0xff] %v1697
                %v1699 = vld [vmem:[%s1585 + $0x1c0] sm:$0xff]
                %1700 = vst [vmem:[%s1586 + $0x1c0] sm:$0xff] %v1699
                %v1701 = vld [vmem:[%s1585 + $0x1c8] sm:$0xff]
                %1702 = vst [vmem:[%s1586 + $0x1c8] sm:$0xff] %v1701
                %v1703 = vld [vmem:[%s1585 + $0x1d0] sm:$0xff]
                %1704 = vst [vmem:[%s1586 + $0x1d0] sm:$0xff] %v1703
                %v1705 = vld [vmem:[%s1585 + $0x1d8] sm:$0xff]
                %1706 = vst [vmem:[%s1586 + $0x1d8] sm:$0xff] %v1705
                %v1707 = vld [vmem:[%s1585 + $0x1e0] sm:$0xff]
                %1708 = vst [vmem:[%s1586 + $0x1e0] sm:$0xff] %v1707
                %v1709 = vld [vmem:[%s1585 + $0x1e8] sm:$0xff]
                %1710 = vst [vmem:[%s1586 + $0x1e8] sm:$0xff] %v1709
                %v1711 = vld [vmem:[%s1585 + $0x1f0] sm:$0xff]
                %1712 = vst [vmem:[%s1586 + $0x1f0] sm:$0xff] %v1711
                %v1713 = vld [vmem:[%s1585 + $0x1f8] sm:$0xff]
                %1714 = vst [vmem:[%s1586 + $0x1f8] sm:$0xff] %v1713
                %s1715 = sadd.s32 1, %s1584
                %p1716 = scmp.ge.s32.totalorder %s1715, %s1577
                %s1717 = scalar_select %p1716, 0, %s1715
                %s1718 = smul.u32 %s1717, 512
                %s1719 = smul.u32 %s1717, 512
                %s1720 = scalar_lea.vmem %s1557, %s1718 [#allocation2]
                %s1721 = scalar_lea.vmem %s1568, %s1719
              $region53: #{mnist_cnn_forward.7} parent=47 // loop_footer
                %s1581 = sadd.s32 %s1579, 1
              $region54: #{mnist_cnn_forward.7} parent=47 // loop_footer_branch
                %1578 = sbr.rel target = $region50
              $region55: #{mnist_cnn_forward.7} parent=47 // loop_exit
                _
              %s1722 = sshrl.u32 %s1564, 6
              %s1723 = sand.u32 %s1564, 63
              %s1724 = smul.u32 %s1722, 64
              %s1725 = smul.u32 8, %s1724
              %s1726 = scalar_lea.vmem %s1557, %s1725 [#allocation2]
              %s1727 = smul.u32 8, %s1724
              %s1728 = scalar_lea.vmem %s1568, %s1727
              // While loop
              $region56: #{mnist_cnn_forward.7} parent=47 // loop_pre_header
                _
              $region57: #{mnist_cnn_forward.7} parent=47 // loop_header
                %s1730 = sphi 0, %s1732
                %p1731 = scmp.ge.s32.totalorder %s1730, %s1723
                %s1735 = sphi 0, %s1742
                %s1736 = sphi %s1726, %s1745
                %s1737 = sphi %s1728, %s1746
              $region58: #{mnist_cnn_forward.7} parent=47 // loop_header_branch
                %1734 = sbr.rel (%p1731) target = $region62
              $region59: #{mnist_cnn_forward.7} parent=47 // loop_body
                %v1738 = vld [vmem:[%s1736] sm:$0xff]
                %1739 = vst [vmem:[%s1737] sm:$0xff] %v1738
                %s1740 = sadd.s32 1, %s1735
                %p1741 = scmp.ge.s32.totalorder %s1740, %s1723
                %s1742 = scalar_select %p1741, 0, %s1740
                %s1743 = smul.u32 %s1742, 8
                %s1744 = smul.u32 %s1742, 8
                %s1745 = scalar_lea.vmem %s1726, %s1743 [#allocation2]
                %s1746 = scalar_lea.vmem %s1728, %s1744
              $region60: #{mnist_cnn_forward.7} parent=47 // loop_footer
                %s1732 = sadd.s32 %s1730, 1
              $region61: #{mnist_cnn_forward.7} parent=47 // loop_footer_branch
                %1729 = sbr.rel target = $region57
              $region62: #{mnist_cnn_forward.7} parent=47 // loop_exit
                _
            $region48: #{mnist_cnn_forward.7} parent=39 // pred_fallthru
              _
          $region40: #{mnist_cnn_forward.7} parent=35 // pred_fallthru
            _
          %1921 = vnop
        $region36: #{mnist_cnn_forward.7} parent=31 // pred_fallthru
          _
      $region32: #{mnist_cnn_forward.7} parent=5 // pred_fallthru
        _
      %p1922 = scmp.le.s32.totalorder 2, %s9
      // Predicated region
      $region85: #{mnist_cnn_forward.7} parent=5 // pred_check
        %p1923 = pneg %p1922
      $region86: #{mnist_cnn_forward.7} parent=5 // pred_check_branch
        %1925 = sbr.rel (%p1923) target = $region88
      $region87: #{mnist_cnn_forward.7} parent=5 // pred_region
        %s1926 = ssub.s32 %s9, 2
        // Predicated region
        $region89: #{mnist_cnn_forward.7} parent=87 // pred_check
          %p1927 = pneg %p106
        $region90: #{mnist_cnn_forward.7} parent=87 // pred_check_branch
          %1929 = sbr.rel (%p1927) target = $region92
        $region91: #{mnist_cnn_forward.7} parent=87 // pred_region
          %s1930 = sand.u32 %s91, 1
          %s1931 = sand.u32 %s91, 1
          %s1932 = smul.addr %s1931, 1024
          %s1933 = scalar_lea.vmem [#allocation2], %s1932
        $region92: #{mnist_cnn_forward.7} parent=87 // pred_fallthru
          _
      $region88: #{mnist_cnn_forward.7} parent=5 // pred_fallthru
        _
    $region6: #{mnist_cnn_forward.7} parent=1 // loop_footer
      %s13 = sadd.s32 1, %s9
    $region7: #{mnist_cnn_forward.7} parent=1 // loop_footer_branch
      %8 = sbr.rel target = $region3
    $region8: #{mnist_cnn_forward.7} parent=1 // loop_exit
      _

// kernel: mnist_cnn_forward.9
$region0: #{mnist_cnn_forward.9}
  #allocation0 [shape = 'u32[]', space=smem, size = 0x4, offset = 0x4, fixed_abs, tag = 'smem constant byte address 0x4 - core index']
  #allocation1 [shape = 'u32[144,128]{1,0:T(1,128)}', space=vmem, size = 0x12000, scoped, tag = 'internal scratch']
  %s0 = inlined_call_operand.vmem [shape: f32[392,64], index: 0, kind: input, shape index: {}]
  %s1 = inlined_call_operand.vmem [shape: f32[64,32], index: 1, kind: input, shape index: {}]
  %s2 = inlined_call_operand.vmem [shape: f32[1,32], index: 2, kind: input, shape index: {}]
  %s3 = inlined_call_operand.vmem [shape: f32[392,32], index: 3, kind: output, shape index: {0}]
  %s4 = inlined_call_operand.vmem [shape: f32[8,32], index: 4, kind: output, shape index: {1}]
  %5 = xla_tuple %s3, %s4
  %s6 = sld [smem:[#allocation0]]
  $region30: #{mnist_cnn_forward.9} parent=0
    _
  %s8 = ssub.s32 1, %s6
  %s9 = scalar_select 0, %s8, %s6
  // Predicated region
  $region2: #{mnist_cnn_forward.9} parent=0 // pred_check
    _
  $region3: #{mnist_cnn_forward.9} parent=0 // pred_check_branch
    %11 = sbr.rel (0) target = $region5
  $region4: #{mnist_cnn_forward.9} parent=0 // pred_region
    _
  $region5: #{mnist_cnn_forward.9} parent=0 // pred_fallthru
    _
  // Predicated region
  $region6: #{mnist_cnn_forward.9} parent=0 // pred_check
    _
  $region7: #{mnist_cnn_forward.9} parent=0 // pred_check_branch
    %13 = sbr.rel (0) target = $region9
  $region8: #{mnist_cnn_forward.9} parent=0 // pred_region
    _
  $region9: #{mnist_cnn_forward.9} parent=0 // pred_fallthru
    _
  // Predicated region
  $region10: #{mnist_cnn_forward.9} parent=0 // pred_check
    _
  $region11: #{mnist_cnn_forward.9} parent=0 // pred_check_branch
    %15 = sbr.rel (0) target = $region13
  $region12: #{mnist_cnn_forward.9} parent=0 // pred_region
    _
  $region13: #{mnist_cnn_forward.9} parent=0 // pred_fallthru
    _
  %v16 = vld [vmem:[%s0] sm:$0xff]
  %v17 = vld [vmem:[%s0 + $0x8] sm:$0xff]
  %v18 = vld [vmem:[%s0 + $0x10] sm:$0xff]
  %v19 = vld [vmem:[%s0 + $0x18] sm:$0xff]
  %v20 = vld [vmem:[%s0 + $0x20] sm:$0xff]
  %v21 = vld [vmem:[%s0 + $0x28] sm:$0xff]
  %v22 = vld [vmem:[%s0 + $0x30] sm:$0xff]
  %v23 = vld [vmem:[%s0 + $0x38] sm:$0xff]
  %v24 = vld [vmem:[%s0 + $0x40] sm:$0xff]
  %v25 = vld [vmem:[%s0 + $0x48] sm:$0xff]
  %v26 = vld [vmem:[%s0 + $0x50] sm:$0xff]
  %v27 = vld [vmem:[%s0 + $0x58] sm:$0xff]
  %v28 = vld [vmem:[%s0 + $0x60] sm:$0xff]
  %v29 = vld [vmem:[%s0 + $0x68] sm:$0xff]
  %v30 = vld [vmem:[%s0 + $0x70] sm:$0xff]
  %v31 = vld [vmem:[%s0 + $0x78] sm:$0xff]
  %v32 = vld [vmem:[%s0 + $0x80] sm:$0xff]
  %v33 = vld [vmem:[%s0 + $0x88] sm:$0xff]
  %v34 = vld [vmem:[%s0 + $0x90] sm:$0xff]
  %v35 = vld [vmem:[%s0 + $0x98] sm:$0xff]
  %v36 = vld [vmem:[%s0 + $0xa0] sm:$0xff]
  %v37 = vld [vmem:[%s0 + $0xa8] sm:$0xff]
  %v38 = vld [vmem:[%s0 + $0xb0] sm:$0xff]
  %v39 = vld [vmem:[%s0 + $0xb8] sm:$0xff]
  %v40 = vld [vmem:[%s0 + $0xc0] sm:$0xff]
  %v41 = vld [vmem:[%s0 + $0xc8] sm:$0xff]
  %v42 = vld [vmem:[%s0 + $0xd0] sm:$0xff]
  %v43 = vld [vmem:[%s0 + $0xd8] sm:$0xff]
  %v44 = vld [vmem:[%s0 + $0xe0] sm:$0xff]
  %v45 = vld [vmem:[%s0 + $0xe8] sm:$0xff]
  %v46 = vld [vmem:[%s0 + $0xf0] sm:$0xff]
  %v47 = vld [vmem:[%s0 + $0xf8] sm:$0xff]
  %v48 = vld [vmem:[%s0 + $0x100] sm:$0xff]
  %v49 = vld [vmem:[%s0 + $0x108] sm:$0xff]
  %v50 = vld [vmem:[%s0 + $0x110] sm:$0xff]
  %v51 = vld [vmem:[%s0 + $0x118] sm:$0xff]
  %v52 = vld [vmem:[%s0 + $0x120] sm:$0xff]
  %v53 = vld [vmem:[%s0 + $0x128] sm:$0xff]
  %v54 = vld [vmem:[%s0 + $0x130] sm:$0xff]
  %v55 = vld [vmem:[%s0 + $0x138] sm:$0xff]
  %v56 = vld [vmem:[%s0 + $0x140] sm:$0xff]
  %v57 = vld [vmem:[%s0 + $0x148] sm:$0xff]
  %v58 = vld [vmem:[%s0 + $0x150] sm:$0xff]
  %v59 = vld [vmem:[%s0 + $0x158] sm:$0xff]
  %v60 = vld [vmem:[%s0 + $0x160] sm:$0xff]
  %v61 = vld [vmem:[%s0 + $0x168] sm:$0xff]
  %v62 = vld [vmem:[%s0 + $0x170] sm:$0xff]
  %v63 = vld [vmem:[%s0 + $0x178] sm:$0xff]
  %v64 = vld [vmem:[%s0 + $0x180] sm:$0xff]
  %v65 = vld [vmem:[%s1] sm:$0xff]
  %v66 = vld [vmem:[%s1 + $0x8] sm:$0xff]
  %v67 = vld [vmem:[%s1 + $0x10] sm:$0xff]
  %v68 = vld [vmem:[%s1 + $0x18] sm:$0xff]
  %v69 = vld [vmem:[%s1 + $0x20] sm:$0xff]
  %v70 = vld [vmem:[%s1 + $0x28] sm:$0xff]
  %v71 = vld [vmem:[%s1 + $0x30] sm:$0xff]
  %v72 = vld [vmem:[%s1 + $0x38] sm:$0xff]
  %v73 = vld [vmem:[%s2] sm:$0x1]
  %v75 = vlaneseq
  %v76 = vshrl.u32 %v75, 7
  %v77 = vsub.s32 0, %v76
  %v78 = vrot.slane %v73, %v77
  %vm80 = vcmask 523264
  %v82 = vsel %vm80, %v16, 0
  %v85 = vsel %vm80, %v17, 0
  %v88 = vsel %vm80, %v18, 0
  %v91 = vsel %vm80, %v19, 0
  %v94 = vsel %vm80, %v20, 0
  %v97 = vsel %vm80, %v21, 0
  %v100 = vsel %vm80, %v22, 0
  %v103 = vsel %vm80, %v23, 0
  %v106 = vsel %vm80, %v24, 0
  %v109 = vsel %vm80, %v25, 0
  %v112 = vsel %vm80, %v26, 0
  %v115 = vsel %vm80, %v27, 0
  %v118 = vsel %vm80, %v28, 0
  %v121 = vsel %vm80, %v29, 0
  %v124 = vsel %vm80, %v30, 0
  %v127 = vsel %vm80, %v31, 0
  %v130 = vsel %vm80, %v32, 0
  %v133 = vsel %vm80, %v33, 0
  %v136 = vsel %vm80, %v34, 0
  %v139 = vsel %vm80, %v35, 0
  %v142 = vsel %vm80, %v36, 0
  %v145 = vsel %vm80, %v37, 0
  %v148 = vsel %vm80, %v38, 0
  %v151 = vsel %vm80, %v39, 0
  %v154 = vsel %vm80, %v40, 0
  %v157 = vsel %vm80, %v41, 0
  %v160 = vsel %vm80, %v42, 0
  %v163 = vsel %vm80, %v43, 0
  %v166 = vsel %vm80, %v44, 0
  %v169 = vsel %vm80, %v45, 0
  %v172 = vsel %vm80, %v46, 0
  %v175 = vsel %vm80, %v47, 0
  %v178 = vsel %vm80, %v48, 0
  %v181 = vsel %vm80, %v49, 0
  %v184 = vsel %vm80, %v50, 0
  %v187 = vsel %vm80, %v51, 0
  %v190 = vsel %vm80, %v52, 0
  %v193 = vsel %vm80, %v53, 0
  %v196 = vsel %vm80, %v54, 0
  %v199 = vsel %vm80, %v55, 0
  %v202 = vsel %vm80, %v56, 0
  %v205 = vsel %vm80, %v57, 0
  %v208 = vsel %vm80, %v58, 0
  %v211 = vsel %vm80, %v59, 0
  %v214 = vsel %vm80, %v60, 0
  %v217 = vsel %vm80, %v61, 0
  %v220 = vsel %vm80, %v62, 0
  %v223 = vsel %vm80, %v63, 0
  %v226 = vsel %vm80, %v64, 0
  %228 = vmatprep.subr.mxu0 0.0
  %229 = vmatpush1.msra.mxu0 %v65
  %230 = vmatprep.subr.mxu0 0.0
  %231 = vmatpush1.msra.mxu0 %v66
  %232 = vmatprep.subr.mxu0 0.0
  %233 = vmatpush1.msra.mxu0 %v67
  %234 = vmatprep.subr.mxu0 0.0
  %235 = vmatpush1.msra.mxu0 %v68
  %236 = vmatprep.subr.mxu0 0.0
  %237 = vmatpush1.msra.mxu0 %v69
  %238 = vmatprep.subr.mxu0 0.0
  %239 = vmatpush1.msra.mxu0 %v70
  %240 = vmatprep.subr.mxu0 0.0
  %241 = vmatpush1.msra.mxu0 %v71
  %242 = vmatprep.subr.mxu0 0.0
  %243 = vmatpush1.msra.mxu0 %v72
  %244 = vmatprep.subr.mxu0 0.0
  %245 = vmatpush1.msra.mxu0 0.0
  %246 = vmatprep.subr.mxu0 0.0
  %247 = vmatpush1.msra.mxu0 0.0
  %248 = vmatprep.subr.mxu0 0.0
  %249 = vmatpush1.msra.mxu0 0.0
  %250 = vmatprep.subr.mxu0 0.0
  %251 = vmatpush1.msra.mxu0 0.0
  %252 = vmatprep.subr.mxu0 0.0
  %253 = vmatpush1.msra.mxu0 0.0
  %254 = vmatprep.subr.mxu0 0.0
  %255 = vmatpush1.msra.mxu0 0.0
  %256 = vmatprep.subr.mxu0 0.0
  %257 = vmatpush1.msra.mxu0 0.0
  %258 = vmatprep.subr.mxu0 0.0
  %259 = vmatpush1.msra.mxu0 0.0
  %260 = vmatprep.subr.mxu0 0.0
  %261 = vmatpush1.msra.mxu0 0.0
  %262 = vmatprep.subr.mxu0 0.0
  %263 = vmatpush1.msra.mxu0 0.0
  %264 = vmatprep.subr.mxu0 0.0
  %265 = vmatpush1.msra.mxu0 0.0
  %266 = vmatprep.subr.mxu0 0.0
  %267 = vmatpush1.msra.mxu0 0.0
  %268 = vmatprep.subr.mxu0 0.0
  %269 = vmatpush1.msra.mxu0 0.0
  %270 = vmatprep.subr.mxu0 0.0
  %271 = vmatpush1.msra.mxu0 0.0
  %272 = vmatprep.subr.mxu0 0.0
  %273 = vmatpush1.msra.mxu0 0.0
  %274 = vmatprep.subr.mxu0 0.0
  %275 = vmatpush1.msra.mxu0 0.0
  %276 = vmatprep.subr.mxu0 0.0
  %277 = vmatpush1.msra.mxu0 0.0
  %278 = vmatprep.subr.mxu0 0.0
  %279 = vmatpush1.msra.mxu0 0.0
  %280 = vmatprep.subr.mxu0 0.0
  %281 = vmatpush1.msra.mxu0 0.0
  %282 = vmatprep.subr.mxu0 0.0
  %283 = vmatpush1.msra.mxu0 0.0
  %284 = vmatprep.subr.mxu0 0.0
  %285 = vmatpush1.msra.mxu0 0.0
  %286 = vmatprep.subr.mxu0 0.0
  %287 = vmatpush1.msra.mxu0 0.0
  %288 = vmatprep.subr.mxu0 0.0
  %289 = vmatpush1.msra.mxu0 0.0
  %290 = vmatprep.subr.mxu0 0.0
  %291 = vmatpush1.msra.mxu0 0.0
  %292 = vmatprep.mubr.f32.mxu0 0.0
  %293 = vmatmul.mubr.f32.gmra.mrb[0].mxu0 %v82
  %v294 = vpop.f32.mrb[0].mxu0
  %v295 = vadd.f32 %v78, %v294
  %v296 = vpop.f32.mrb[0].mxu0
  %297 = vmatprep.mubr.f32.mxu0 0.0
  %298 = vmatmul.mubr.f32.gmra.mrb[0].mxu0 %v85
  %v299 = vpop.f32.mrb[0].mxu0
  %v300 = vadd.f32 %v78, %v299
  %v301 = vpop.f32.mrb[0].mxu0
  %302 = vmatprep.mubr.f32.mxu0 0.0
  %303 = vmatmul.mubr.f32.gmra.mrb[0].mxu0 %v88
  %v304 = vpop.f32.mrb[0].mxu0
  %v305 = vadd.f32 %v78, %v304
  %v306 = vpop.f32.mrb[0].mxu0
  %307 = vmatprep.mubr.f32.mxu0 0.0
  %308 = vmatmul.mubr.f32.gmra.mrb[0].mxu0 %v91
  %v309 = vpop.f32.mrb[0].mxu0
  %v310 = vadd.f32 %v78, %v309
  %v311 = vpop.f32.mrb[0].mxu0
  %312 = vmatprep.mubr.f32.mxu0 0.0
  %313 = vmatmul.mubr.f32.gmra.mrb[0].mxu0 %v94
  %v314 = vpop.f32.mrb[0].mxu0
  %v315 = vadd.f32 %v78, %v314
  %v316 = vpop.f32.mrb[0].mxu0
  %317 = vmatprep.mubr.f32.mxu0 0.0
  %318 = vmatmul.mubr.f32.gmra.mrb[0].mxu0 %v97
  %v319 = vpop.f32.mrb[0].mxu0
  %v320 = vadd.f32 %v78, %v319
  %v321 = vpop.f32.mrb[0].mxu0
  %322 = vmatprep.mubr.f32.mxu0 0.0
  %323 = vmatmul.mubr.f32.gmra.mrb[0].mxu0 %v100
  %v324 = vpop.f32.mrb[0].mxu0
  %v325 = vadd.f32 %v78, %v324
  %v326 = vpop.f32.mrb[0].mxu0
  %327 = vmatprep.mubr.f32.mxu0 0.0
  %328 = vmatmul.mubr.f32.gmra.mrb[0].mxu0 %v103
  %v329 = vpop.f32.mrb[0].mxu0
  %v330 = vadd.f32 %v78, %v329
  %v331 = vpop.f32.mrb[0].mxu0
  %332 = vmatprep.mubr.f32.mxu0 0.0
  %333 = vmatmul.mubr.f32.gmra.mrb[0].mxu0 %v106
  %v334 = vpop.f32.mrb[0].mxu0
  %v335 = vadd.f32 %v78, %v334
  %v336 = vpop.f32.mrb[0].mxu0
  %337 = vmatprep.mubr.f32.mxu0 0.0
  %338 = vmatmul.mubr.f32.gmra.mrb[0].mxu0 %v109
  %v339 = vpop.f32.mrb[0].mxu0
  %v340 = vadd.f32 %v78, %v339
  %v341 = vpop.f32.mrb[0].mxu0
  %342 = vmatprep.mubr.f32.mxu0 0.0
  %343 = vmatmul.mubr.f32.gmra.mrb[0].mxu0 %v112
  %v344 = vpop.f32.mrb[0].mxu0
  %v345 = vadd.f32 %v78, %v344
  %v346 = vpop.f32.mrb[0].mxu0
  %347 = vmatprep.mubr.f32.mxu0 0.0
  %348 = vmatmul.mubr.f32.gmra.mrb[0].mxu0 %v115
  %v349 = vpop.f32.mrb[0].mxu0
  %v350 = vadd.f32 %v78, %v349
  %v351 = vpop.f32.mrb[0].mxu0
  %352 = vmatprep.mubr.f32.mxu0 0.0
  %353 = vmatmul.mubr.f32.gmra.mrb[0].mxu0 %v118
  %v354 = vpop.f32.mrb[0].mxu0
  %v355 = vadd.f32 %v78, %v354
  %v356 = vpop.f32.mrb[0].mxu0
  %357 = vmatprep.mubr.f32.mxu0 0.0
  %358 = vmatmul.mubr.f32.gmra.mrb[0].mxu0 %v121
  %v359 = vpop.f32.mrb[0].mxu0
  %v360 = vadd.f32 %v78, %v359
  %v361 = vpop.f32.mrb[0].mxu0
  %362 = vmatprep.mubr.f32.mxu0 0.0
  %363 = vmatmul.mubr.f32.gmra.mrb[0].mxu0 %v124
  %v364 = vpop.f32.mrb[0].mxu0
  %v365 = vadd.f32 %v78, %v364
  %v366 = vpop.f32.mrb[0].mxu0
  %367 = vmatprep.mubr.f32.mxu0 0.0
  %368 = vmatmul.mubr.f32.gmra.mrb[0].mxu0 %v127
  %v369 = vpop.f32.mrb[0].mxu0
  %v370 = vadd.f32 %v78, %v369
  %v371 = vpop.f32.mrb[0].mxu0
  %372 = vmatprep.mubr.f32.mxu0 0.0
  %373 = vmatmul.mubr.f32.gmra.mrb[0].mxu0 %v130
  %v374 = vpop.f32.mrb[0].mxu0
  %v375 = vadd.f32 %v78, %v374
  %v376 = vpop.f32.mrb[0].mxu0
  %377 = vmatprep.mubr.f32.mxu0 0.0
  %378 = vmatmul.mubr.f32.gmra.mrb[0].mxu0 %v133
  %v379 = vpop.f32.mrb[0].mxu0
  %v380 = vadd.f32 %v78, %v379
  %v381 = vpop.f32.mrb[0].mxu0
  %382 = vmatprep.mubr.f32.mxu0 0.0
  %383 = vmatmul.mubr.f32.gmra.mrb[0].mxu0 %v136
  %v384 = vpop.f32.mrb[0].mxu0
  %v385 = vadd.f32 %v78, %v384
  %v386 = vpop.f32.mrb[0].mxu0
  %387 = vmatprep.mubr.f32.mxu0 0.0
  %388 = vmatmul.mubr.f32.gmra.mrb[0].mxu0 %v139
  %v389 = vpop.f32.mrb[0].mxu0
  %v390 = vadd.f32 %v78, %v389
  %v391 = vpop.f32.mrb[0].mxu0
  %392 = vmatprep.mubr.f32.mxu0 0.0
  %393 = vmatmul.mubr.f32.gmra.mrb[0].mxu0 %v142
  %v394 = vpop.f32.mrb[0].mxu0
  %v395 = vadd.f32 %v78, %v394
  %v396 = vpop.f32.mrb[0].mxu0
  %397 = vmatprep.mubr.f32.mxu0 0.0
  %398 = vmatmul.mubr.f32.gmra.mrb[0].mxu0 %v145
  %v399 = vpop.f32.mrb[0].mxu0
  %v400 = vadd.f32 %v78, %v399
  %v401 = vpop.f32.mrb[0].mxu0
  %402 = vmatprep.mubr.f32.mxu0 0.0
  %403 = vmatmul.mubr.f32.gmra.mrb[0].mxu0 %v148
  %v404 = vpop.f32.mrb[0].mxu0
  %v405 = vadd.f32 %v78, %v404
  %v406 = vpop.f32.mrb[0].mxu0
  %407 = vmatprep.mubr.f32.mxu0 0.0
  %408 = vmatmul.mubr.f32.gmra.mrb[0].mxu0 %v151
  %v409 = vpop.f32.mrb[0].mxu0
  %v410 = vadd.f32 %v78, %v409
  %v411 = vpop.f32.mrb[0].mxu0
  %412 = vmatprep.mubr.f32.mxu0 0.0
  %413 = vmatmul.mubr.f32.gmra.mrb[0].mxu0 %v154
  %v414 = vpop.f32.mrb[0].mxu0
  %v415 = vadd.f32 %v78, %v414
  %v416 = vpop.f32.mrb[0].mxu0
  %417 = vmatprep.mubr.f32.mxu0 0.0
  %418 = vmatmul.mubr.f32.gmra.mrb[0].mxu0 %v157
  %v419 = vpop.f32.mrb[0].mxu0
  %v420 = vadd.f32 %v78, %v419
  %v421 = vpop.f32.mrb[0].mxu0
  %422 = vmatprep.mubr.f32.mxu0 0.0
  %423 = vmatmul.mubr.f32.gmra.mrb[0].mxu0 %v160
  %v424 = vpop.f32.mrb[0].mxu0
  %v425 = vadd.f32 %v78, %v424
  %v426 = vpop.f32.mrb[0].mxu0
  %427 = vmatprep.mubr.f32.mxu0 0.0
  %428 = vmatmul.mubr.f32.gmra.mrb[0].mxu0 %v163
  %v429 = vpop.f32.mrb[0].mxu0
  %v430 = vadd.f32 %v78, %v429
  %v431 = vpop.f32.mrb[0].mxu0
  %432 = vmatprep.mubr.f32.mxu0 0.0
  %433 = vmatmul.mubr.f32.gmra.mrb[0].mxu0 %v166
  %v434 = vpop.f32.mrb[0].mxu0
  %v435 = vadd.f32 %v78, %v434
  %v436 = vpop.f32.mrb[0].mxu0
  %437 = vmatprep.mubr.f32.mxu0 0.0
  %438 = vmatmul.mubr.f32.gmra.mrb[0].mxu0 %v169
  %v439 = vpop.f32.mrb[0].mxu0
  %v440 = vadd.f32 %v78, %v439
  %v441 = vpop.f32.mrb[0].mxu0
  %442 = vmatprep.mubr.f32.mxu0 0.0
  %443 = vmatmul.mubr.f32.gmra.mrb[0].mxu0 %v172
  %v444 = vpop.f32.mrb[0].mxu0
  %v445 = vadd.f32 %v78, %v444
  %v446 = vpop.f32.mrb[0].mxu0
  %447 = vmatprep.mubr.f32.mxu0 0.0
  %448 = vmatmul.mubr.f32.gmra.mrb[0].mxu0 %v175
  %v449 = vpop.f32.mrb[0].mxu0
  %v450 = vadd.f32 %v78, %v449
  %v451 = vpop.f32.mrb[0].mxu0
  %452 = vmatprep.mubr.f32.mxu0 0.0
  %453 = vmatmul.mubr.f32.gmra.mrb[0].mxu0 %v178
  %v454 = vpop.f32.mrb[0].mxu0
  %v455 = vadd.f32 %v78, %v454
  %v456 = vpop.f32.mrb[0].mxu0
  %457 = vmatprep.mubr.f32.mxu0 0.0
  %458 = vmatmul.mubr.f32.gmra.mrb[0].mxu0 %v181
  %v459 = vpop.f32.mrb[0].mxu0
  %v460 = vadd.f32 %v78, %v459
  %v461 = vpop.f32.mrb[0].mxu0
  %462 = vmatprep.mubr.f32.mxu0 0.0
  %463 = vmatmul.mubr.f32.gmra.mrb[0].mxu0 %v184
  %v464 = vpop.f32.mrb[0].mxu0
  %v465 = vadd.f32 %v78, %v464
  %v466 = vpop.f32.mrb[0].mxu0
  %467 = vmatprep.mubr.f32.mxu0 0.0
  %468 = vmatmul.mubr.f32.gmra.mrb[0].mxu0 %v187
  %v469 = vpop.f32.mrb[0].mxu0
  %v470 = vadd.f32 %v78, %v469
  %v471 = vpop.f32.mrb[0].mxu0
  %472 = vmatprep.mubr.f32.mxu0 0.0
  %473 = vmatmul.mubr.f32.gmra.mrb[0].mxu0 %v190
  %v474 = vpop.f32.mrb[0].mxu0
  %v475 = vadd.f32 %v78, %v474
  %v476 = vpop.f32.mrb[0].mxu0
  %477 = vmatprep.mubr.f32.mxu0 0.0
  %478 = vmatmul.mubr.f32.gmra.mrb[0].mxu0 %v193
  %v479 = vpop.f32.mrb[0].mxu0
  %v480 = vadd.f32 %v78, %v479
  %v481 = vpop.f32.mrb[0].mxu0
  %482 = vmatprep.mubr.f32.mxu0 0.0
  %483 = vmatmul.mubr.f32.gmra.mrb[0].mxu0 %v196
  %v484 = vpop.f32.mrb[0].mxu0
  %v485 = vadd.f32 %v78, %v484
  %v486 = vpop.f32.mrb[0].mxu0
  %487 = vmatprep.mubr.f32.mxu0 0.0
  %488 = vmatmul.mubr.f32.gmra.mrb[0].mxu0 %v199
  %v489 = vpop.f32.mrb[0].mxu0
  %v490 = vadd.f32 %v78, %v489
  %v491 = vpop.f32.mrb[0].mxu0
  %492 = vmatprep.mubr.f32.mxu0 0.0
  %493 = vmatmul.mubr.f32.gmra.mrb[0].mxu0 %v202
  %v494 = vpop.f32.mrb[0].mxu0
  %v495 = vadd.f32 %v78, %v494
  %v496 = vpop.f32.mrb[0].mxu0
  %497 = vmatprep.mubr.f32.mxu0 0.0
  %498 = vmatmul.mubr.f32.gmra.mrb[0].mxu0 %v205
  %v499 = vpop.f32.mrb[0].mxu0
  %v500 = vadd.f32 %v78, %v499
  %v501 = vpop.f32.mrb[0].mxu0
  %502 = vmatprep.mubr.f32.mxu0 0.0
  %503 = vmatmul.mubr.f32.gmra.mrb[0].mxu0 %v208
  %v504 = vpop.f32.mrb[0].mxu0
  %v505 = vadd.f32 %v78, %v504
  %v506 = vpop.f32.mrb[0].mxu0
  %507 = vmatprep.mubr.f32.mxu0 0.0
  %508 = vmatmul.mubr.f32.gmra.mrb[0].mxu0 %v211
  %v509 = vpop.f32.mrb[0].mxu0
  %v510 = vadd.f32 %v78, %v509
  %v511 = vpop.f32.mrb[0].mxu0
  %512 = vmatprep.mubr.f32.mxu0 0.0
  %513 = vmatmul.mubr.f32.gmra.mrb[0].mxu0 %v214
  %v514 = vpop.f32.mrb[0].mxu0
  %v515 = vadd.f32 %v78, %v514
  %v516 = vpop.f32.mrb[0].mxu0
  %517 = vmatprep.mubr.f32.mxu0 0.0
  %518 = vmatmul.mubr.f32.gmra.mrb[0].mxu0 %v217
  %v519 = vpop.f32.mrb[0].mxu0
  %v520 = vadd.f32 %v78, %v519
  %v521 = vpop.f32.mrb[0].mxu0
  %522 = vmatprep.mubr.f32.mxu0 0.0
  %523 = vmatmul.mubr.f32.gmra.mrb[0].mxu0 %v220
  %v524 = vpop.f32.mrb[0].mxu0
  %v525 = vadd.f32 %v78, %v524
  %v526 = vpop.f32.mrb[0].mxu0
  %527 = vmatprep.mubr.f32.mxu0 0.0
  %528 = vmatmul.mubr.f32.gmra.mrb[0].mxu0 %v223
  %v529 = vpop.f32.mrb[0].mxu0
  %v530 = vadd.f32 %v78, %v529
  %v531 = vpop.f32.mrb[0].mxu0
  %532 = vmatprep.mubr.f32.mxu0 0.0
  %533 = vmatmul.mubr.f32.gmra.mrb[0].mxu0 %v226
  %v534 = vpop.f32.mrb[0].mxu0
  %v535 = vadd.f32 %v78, %v534
  %v536 = vpop.f32.mrb[0].mxu0
  %537 = vdwg.mxu0
  %vm538 = vcmask 261120
  %539 = vst.msk [vmem:[%s3] sm:$0xff] %vm538, %v295
  %540 = vst.msk [vmem:[%s3 + $0x8] sm:$0xff] %vm538, %v300
  %541 = vst.msk [vmem:[%s3 + $0x10] sm:$0xff] %vm538, %v305
  %542 = vst.msk [vmem:[%s3 + $0x18] sm:$0xff] %vm538, %v310
  %543 = vst.msk [vmem:[%s3 + $0x20] sm:$0xff] %vm538, %v315
  %544 = vst.msk [vmem:[%s3 + $0x28] sm:$0xff] %vm538, %v320
  %545 = vst.msk [vmem:[%s3 + $0x30] sm:$0xff] %vm538, %v325
  %546 = vst.msk [vmem:[%s3 + $0x38] sm:$0xff] %vm538, %v330
  %547 = vst.msk [vmem:[%s3 + $0x40] sm:$0xff] %vm538, %v335
  %548 = vst.msk [vmem:[%s3 + $0x48] sm:$0xff] %vm538, %v340
  %549 = vst.msk [vmem:[%s3 + $0x50] sm:$0xff] %vm538, %v345
  %550 = vst.msk [vmem:[%s3 + $0x58] sm:$0xff] %vm538, %v350
  %551 = vst.msk [vmem:[%s3 + $0x60] sm:$0xff] %vm538, %v355
  %552 = vst.msk [vmem:[%s3 + $0x68] sm:$0xff] %vm538, %v360
  %553 = vst.msk [vmem:[%s3 + $0x70] sm:$0xff] %vm538, %v365
  %554 = vst.msk [vmem:[%s3 + $0x78] sm:$0xff] %vm538, %v370
  %555 = vst.msk [vmem:[%s3 + $0x80] sm:$0xff] %vm538, %v375
  %556 = vst.msk [vmem:[%s3 + $0x88] sm:$0xff] %vm538, %v380
  %557 = vst.msk [vmem:[%s3 + $0x90] sm:$0xff] %vm538, %v385
  %558 = vst.msk [vmem:[%s3 + $0x98] sm:$0xff] %vm538, %v390
  %559 = vst.msk [vmem:[%s3 + $0xa0] sm:$0xff] %vm538, %v395
  %560 = vst.msk [vmem:[%s3 + $0xa8] sm:$0xff] %vm538, %v400
  %561 = vst.msk [vmem:[%s3 + $0xb0] sm:$0xff] %vm538, %v405
  %562 = vst.msk [vmem:[%s3 + $0xb8] sm:$0xff] %vm538, %v410
  %563 = vst.msk [vmem:[%s3 + $0xc0] sm:$0xff] %vm538, %v415
  %564 = vst.msk [vmem:[%s3 + $0xc8] sm:$0xff] %vm538, %v420
  %565 = vst.msk [vmem:[%s3 + $0xd0] sm:$0xff] %vm538, %v425
  %566 = vst.msk [vmem:[%s3 + $0xd8] sm:$0xff] %vm538, %v430
  %567 = vst.msk [vmem:[%s3 + $0xe0] sm:$0xff] %vm538, %v435
  %568 = vst.msk [vmem:[%s3 + $0xe8] sm:$0xff] %vm538, %v440
  %569 = vst.msk [vmem:[%s3 + $0xf0] sm:$0xff] %vm538, %v445
  %570 = vst.msk [vmem:[%s3 + $0xf8] sm:$0xff] %vm538, %v450
  %571 = vst.msk [vmem:[%s3 + $0x100] sm:$0xff] %vm538, %v455
  %572 = vst.msk [vmem:[%s3 + $0x108] sm:$0xff] %vm538, %v460
  %573 = vst.msk [vmem:[%s3 + $0x110] sm:$0xff] %vm538, %v465
  %574 = vst.msk [vmem:[%s3 + $0x118] sm:$0xff] %vm538, %v470
  %575 = vst.msk [vmem:[%s3 + $0x120] sm:$0xff] %vm538, %v475
  %576 = vst.msk [vmem:[%s3 + $0x128] sm:$0xff] %vm538, %v480
  %577 = vst.msk [vmem:[%s3 + $0x130] sm:$0xff] %vm538, %v485
  %578 = vst.msk [vmem:[%s3 + $0x138] sm:$0xff] %vm538, %v490
  %579 = vst.msk [vmem:[%s3 + $0x140] sm:$0xff] %vm538, %v495
  %580 = vst.msk [vmem:[%s3 + $0x148] sm:$0xff] %vm538, %v500
  %581 = vst.msk [vmem:[%s3 + $0x150] sm:$0xff] %vm538, %v505
  %582 = vst.msk [vmem:[%s3 + $0x158] sm:$0xff] %vm538, %v510
  %583 = vst.msk [vmem:[%s3 + $0x160] sm:$0xff] %vm538, %v515
  %584 = vst.msk [vmem:[%s3 + $0x168] sm:$0xff] %vm538, %v520
  %585 = vst.msk [vmem:[%s3 + $0x170] sm:$0xff] %vm538, %v525
  %586 = vst.msk [vmem:[%s3 + $0x178] sm:$0xff] %vm538, %v530
  %587 = vst.msk [vmem:[%s3 + $0x180] sm:$0xff] %vm538, %v535
  %v588 = vsel %vm538, %v295, 0.0
  %v589 = vsel %vm538, %v300, 0.0
  %v590 = vadd.f32 %v588, %v589
  %v591 = vsel %vm538, %v305, 0.0
  %v592 = vadd.f32 %v590, %v591
  %v593 = vsel %vm538, %v310, 0.0
  %v594 = vadd.f32 %v592, %v593
  %v595 = vsel %vm538, %v315, 0.0
  %v596 = vadd.f32 %v594, %v595
  %v597 = vsel %vm538, %v320, 0.0
  %v598 = vadd.f32 %v596, %v597
  %v599 = vsel %vm538, %v325, 0.0
  %v600 = vadd.f32 %v598, %v599
  %v601 = vsel %vm538, %v330, 0.0
  %v602 = vadd.f32 %v600, %v601
  %v603 = vsel %vm538, %v335, 0.0
  %v604 = vadd.f32 %v602, %v603
  %v605 = vsel %vm538, %v340, 0.0
  %v606 = vadd.f32 %v604, %v605
  %v607 = vsel %vm538, %v345, 0.0
  %v608 = vadd.f32 %v606, %v607
  %v609 = vsel %vm538, %v350, 0.0
  %v610 = vadd.f32 %v608, %v609
  %v611 = vsel %vm538, %v355, 0.0
  %v612 = vadd.f32 %v610, %v611
  %v613 = vsel %vm538, %v360, 0.0
  %v614 = vadd.f32 %v612, %v613
  %v615 = vsel %vm538, %v365, 0.0
  %v616 = vadd.f32 %v614, %v615
  %v617 = vsel %vm538, %v370, 0.0
  %v618 = vadd.f32 %v616, %v617
  %v619 = vsel %vm538, %v375, 0.0
  %v620 = vadd.f32 %v618, %v619
  %v621 = vsel %vm538, %v380, 0.0
  %v622 = vadd.f32 %v620, %v621
  %v623 = vsel %vm538, %v385, 0.0
  %v624 = vadd.f32 %v622, %v623
  %v625 = vsel %vm538, %v390, 0.0
  %v626 = vadd.f32 %v624, %v625
  %v627 = vsel %vm538, %v395, 0.0
  %v628 = vadd.f32 %v626, %v627
  %v629 = vsel %vm538, %v400, 0.0
  %v630 = vadd.f32 %v628, %v629
  %v631 = vsel %vm538, %v405, 0.0
  %v632 = vadd.f32 %v630, %v631
  %v633 = vsel %vm538, %v410, 0.0
  %v634 = vadd.f32 %v632, %v633
  %v635 = vsel %vm538, %v415, 0.0
  %v636 = vadd.f32 %v634, %v635
  %v637 = vsel %vm538, %v420, 0.0
  %v638 = vadd.f32 %v636, %v637
  %v639 = vsel %vm538, %v425, 0.0
  %v640 = vadd.f32 %v638, %v639
  %v641 = vsel %vm538, %v430, 0.0
  %v642 = vadd.f32 %v640, %v641
  %v643 = vsel %vm538, %v435, 0.0
  %v644 = vadd.f32 %v642, %v643
  %v645 = vsel %vm538, %v440, 0.0
  %v646 = vadd.f32 %v644, %v645
  %v647 = vsel %vm538, %v445, 0.0
  %v648 = vadd.f32 %v646, %v647
  %v649 = vsel %vm538, %v450, 0.0
  %v650 = vadd.f32 %v648, %v649
  %v651 = vsel %vm538, %v455, 0.0
  %v652 = vadd.f32 %v650, %v651
  %v653 = vsel %vm538, %v460, 0.0
  %v654 = vadd.f32 %v652, %v653
  %v655 = vsel %vm538, %v465, 0.0
  %v656 = vadd.f32 %v654, %v655
  %v657 = vsel %vm538, %v470, 0.0
  %v658 = vadd.f32 %v656, %v657
  %v659 = vsel %vm538, %v475, 0.0
  %v660 = vadd.f32 %v658, %v659
  %v661 = vsel %vm538, %v480, 0.0
  %v662 = vadd.f32 %v660, %v661
  %v663 = vsel %vm538, %v485, 0.0
  %v664 = vadd.f32 %v662, %v663
  %v665 = vsel %vm538, %v490, 0.0
  %v666 = vadd.f32 %v664, %v665
  %v667 = vsel %vm538, %v495, 0.0
  %v668 = vadd.f32 %v666, %v667
  %v669 = vsel %vm538, %v500, 0.0
  %v670 = vadd.f32 %v668, %v669
  %v671 = vsel %vm538, %v505, 0.0
  %v672 = vadd.f32 %v670, %v671
  %v673 = vsel %vm538, %v510, 0.0
  %v674 = vadd.f32 %v672, %v673
  %v675 = vsel %vm538, %v515, 0.0
  %v676 = vadd.f32 %v674, %v675
  %v677 = vsel %vm538, %v520, 0.0
  %v678 = vadd.f32 %v676, %v677
  %v679 = vsel %vm538, %v525, 0.0
  %v680 = vadd.f32 %v678, %v679
  %v681 = vsel %vm538, %v530, 0.0
  %v682 = vadd.f32 %v680, %v681
  %v683 = vsel %vm538, %v535, 0.0
  %v684 = vadd.f32 %v682, %v683
  %v685 = vrot.slane %v684, 4
  %v686 = vadd.f32 %v684, %v685
  %v687 = vrot.slane %v686, 2
  %v688 = vadd.f32 %v686, %v687
  %v689 = vrot.slane %v688, 1
  %v690 = vadd.f32 %v688, %v689
  %v691 = vmul.f32 %v295, %v295
  %v692 = vmul.f32 %v300, %v300
  %v693 = vmul.f32 %v305, %v305
  %v694 = vmul.f32 %v310, %v310
  %v695 = vmul.f32 %v315, %v315
  %v696 = vmul.f32 %v320, %v320
  %v697 = vmul.f32 %v325, %v325
  %v698 = vmul.f32 %v330, %v330
  %v699 = vmul.f32 %v335, %v335
  %v700 = vmul.f32 %v340, %v340
  %v701 = vmul.f32 %v345, %v345
  %v702 = vmul.f32 %v350, %v350
  %v703 = vmul.f32 %v355, %v355
  %v704 = vmul.f32 %v360, %v360
  %v705 = vmul.f32 %v365, %v365
  %v706 = vmul.f32 %v370, %v370
  %v707 = vmul.f32 %v375, %v375
  %v708 = vmul.f32 %v380, %v380
  %v709 = vmul.f32 %v385, %v385
  %v710 = vmul.f32 %v390, %v390
  %v711 = vmul.f32 %v395, %v395
  %v712 = vmul.f32 %v400, %v400
  %v713 = vmul.f32 %v405, %v405
  %v714 = vmul.f32 %v410, %v410
  %v715 = vmul.f32 %v415, %v415
  %v716 = vmul.f32 %v420, %v420
  %v717 = vmul.f32 %v425, %v425
  %v718 = vmul.f32 %v430, %v430
  %v719 = vmul.f32 %v435, %v435
  %v720 = vmul.f32 %v440, %v440
  %v721 = vmul.f32 %v445, %v445
  %v722 = vmul.f32 %v450, %v450
  %v723 = vmul.f32 %v455, %v455
  %v724 = vmul.f32 %v460, %v460
  %v725 = vmul.f32 %v465, %v465
  %v726 = vmul.f32 %v470, %v470
  %v727 = vmul.f32 %v475, %v475
  %v728 = vmul.f32 %v480, %v480
  %v729 = vmul.f32 %v485, %v485
  %v730 = vmul.f32 %v490, %v490
  %v731 = vmul.f32 %v495, %v495
  %v732 = vmul.f32 %v500, %v500
  %v733 = vmul.f32 %v505, %v505
  %v734 = vmul.f32 %v510, %v510
  %v735 = vmul.f32 %v515, %v515
  %v736 = vmul.f32 %v520, %v520
  %v737 = vmul.f32 %v525, %v525
  %v738 = vmul.f32 %v530, %v530
  %v739 = vmul.f32 %v535, %v535
  %v740 = vsel %vm538, %v691, 0.0
  %v741 = vsel %vm538, %v692, 0.0
  %v742 = vadd.f32 %v740, %v741
  %v743 = vsel %vm538, %v693, 0.0
  %v744 = vadd.f32 %v742, %v743
  %v745 = vsel %vm538, %v694, 0.0
  %v746 = vadd.f32 %v744, %v745
  %v747 = vsel %vm538, %v695, 0.0
  %v748 = vadd.f32 %v746, %v747
  %v749 = vsel %vm538, %v696, 0.0
  %v750 = vadd.f32 %v748, %v749
  %v751 = vsel %vm538, %v697, 0.0
  %v752 = vadd.f32 %v750, %v751
  %v753 = vsel %vm538, %v698, 0.0
  %v754 = vadd.f32 %v752, %v753
  %v755 = vsel %vm538, %v699, 0.0
  %v756 = vadd.f32 %v754, %v755
  %v757 = vsel %vm538, %v700, 0.0
  %v758 = vadd.f32 %v756, %v757
  %v759 = vsel %vm538, %v701, 0.0
  %v760 = vadd.f32 %v758, %v759
  %v761 = vsel %vm538, %v702, 0.0
  %v762 = vadd.f32 %v760, %v761
  %v763 = vsel %vm538, %v703, 0.0
  %v764 = vadd.f32 %v762, %v763
  %v765 = vsel %vm538, %v704, 0.0
  %v766 = vadd.f32 %v764, %v765
  %v767 = vsel %vm538, %v705, 0.0
  %v768 = vadd.f32 %v766, %v767
  %v769 = vsel %vm538, %v706, 0.0
  %v770 = vadd.f32 %v768, %v769
  %v771 = vsel %vm538, %v707, 0.0
  %v772 = vadd.f32 %v770, %v771
  %v773 = vsel %vm538, %v708, 0.0
  %v774 = vadd.f32 %v772, %v773
  %v775 = vsel %vm538, %v709, 0.0
  %v776 = vadd.f32 %v774, %v775
  %v777 = vsel %vm538, %v710, 0.0
  %v778 = vadd.f32 %v776, %v777
  %v779 = vsel %vm538, %v711, 0.0
  %v780 = vadd.f32 %v778, %v779
  %v781 = vsel %vm538, %v712, 0.0
  %v782 = vadd.f32 %v780, %v781
  %v783 = vsel %vm538, %v713, 0.0
  %v784 = vadd.f32 %v782, %v783
  %v785 = vsel %vm538, %v714, 0.0
  %v786 = vadd.f32 %v784, %v785
  %v787 = vsel %vm538, %v715, 0.0
  %v788 = vadd.f32 %v786, %v787
  %v789 = vsel %vm538, %v716, 0.0
  %v790 = vadd.f32 %v788, %v789
  %v791 = vsel %vm538, %v717, 0.0
  %v792 = vadd.f32 %v790, %v791
  %v793 = vsel %vm538, %v718, 0.0
  %v794 = vadd.f32 %v792, %v793
  %v795 = vsel %vm538, %v719, 0.0
  %v796 = vadd.f32 %v794, %v795
  %v797 = vsel %vm538, %v720, 0.0
  %v798 = vadd.f32 %v796, %v797
  %v799 = vsel %vm538, %v721, 0.0
  %v800 = vadd.f32 %v798, %v799
  %v801 = vsel %vm538, %v722, 0.0
  %v802 = vadd.f32 %v800, %v801
  %v803 = vsel %vm538, %v723, 0.0
  %v804 = vadd.f32 %v802, %v803
  %v805 = vsel %vm538, %v724, 0.0
  %v806 = vadd.f32 %v804, %v805
  %v807 = vsel %vm538, %v725, 0.0
  %v808 = vadd.f32 %v806, %v807
  %v809 = vsel %vm538, %v726, 0.0
  %v810 = vadd.f32 %v808, %v809
  %v811 = vsel %vm538, %v727, 0.0
  %v812 = vadd.f32 %v810, %v811
  %v813 = vsel %vm538, %v728, 0.0
  %v814 = vadd.f32 %v812, %v813
  %v815 = vsel %vm538, %v729, 0.0
  %v816 = vadd.f32 %v814, %v815
  %v817 = vsel %vm538, %v730, 0.0
  %v818 = vadd.f32 %v816, %v817
  %v819 = vsel %vm538, %v731, 0.0
  %v820 = vadd.f32 %v818, %v819
  %v821 = vsel %vm538, %v732, 0.0
  %v822 = vadd.f32 %v820, %v821
  %v823 = vsel %vm538, %v733, 0.0
  %v824 = vadd.f32 %v822, %v823
  %v825 = vsel %vm538, %v734, 0.0
  %v826 = vadd.f32 %v824, %v825
  %v827 = vsel %vm538, %v735, 0.0
  %v828 = vadd.f32 %v826, %v827
  %v829 = vsel %vm538, %v736, 0.0
  %v830 = vadd.f32 %v828, %v829
  %v831 = vsel %vm538, %v737, 0.0
  %v832 = vadd.f32 %v830, %v831
  %v833 = vsel %vm538, %v738, 0.0
  %v834 = vadd.f32 %v832, %v833
  %v835 = vsel %vm538, %v739, 0.0
  %v836 = vadd.f32 %v834, %v835
  %v837 = vrot.slane %v836, 4
  %v838 = vadd.f32 %v836, %v837
  %v839 = vrot.slane %v838, 2
  %v840 = vadd.f32 %v838, %v839
  %v841 = vrot.slane %v840, 1
  %v842 = vadd.f32 %v840, %v841
  %v843 = vlaneseq
  %v844 = vshrl.u32 %v843, 7
  %vm845 = vcmp.eq.s32.totalorder %v844, 0
  %v846 = vsel %vm845, %v690, 0.0
  %vm847 = vcmp.eq.s32.totalorder %v844, 1
  %v848 = vsel %vm847, %v842, 0.0
  %v849 = vadd.f32 %v846, %v848
  %850 = vst.msk [vmem:[%s4] sm:$0xff] %vm538, %v849
  // Predicated region
  $region14: #{mnist_cnn_forward.9} parent=0 // pred_check
    _
  $region15: #{mnist_cnn_forward.9} parent=0 // pred_check_branch
    %852 = sbr.rel (0) target = $region17
  $region16: #{mnist_cnn_forward.9} parent=0 // pred_region
    _
  $region17: #{mnist_cnn_forward.9} parent=0 // pred_fallthru
    _
  // Predicated region
  $region18: #{mnist_cnn_forward.9} parent=0 // pred_check
    _
  $region19: #{mnist_cnn_forward.9} parent=0 // pred_check_branch
    %854 = sbr.rel (0) target = $region21
  $region20: #{mnist_cnn_forward.9} parent=0 // pred_region
    _
  $region21: #{mnist_cnn_forward.9} parent=0 // pred_fallthru
    _
  // Predicated region
  $region22: #{mnist_cnn_forward.9} parent=0 // pred_check
    _
  $region23: #{mnist_cnn_forward.9} parent=0 // pred_check_branch
    %856 = sbr.rel (0) target = $region25
  $region24: #{mnist_cnn_forward.9} parent=0 // pred_region
    _
  $region25: #{mnist_cnn_forward.9} parent=0 // pred_fallthru
    _
  // Predicated region
  $region26: #{mnist_cnn_forward.9} parent=0 // pred_check
    _
  $region27: #{mnist_cnn_forward.9} parent=0 // pred_check_branch
    %858 = sbr.rel (0) target = $region29
  $region28: #{mnist_cnn_forward.9} parent=0 // pred_region
    _
  $region29: #{mnist_cnn_forward.9} parent=0 // pred_fallthru
    _

// kernel: mnist_cnn_forward.10
$region0: #{mnist_cnn_forward.10}
  #allocation0 [shape = 'u32[]', space=smem, size = 0x4, offset = 0x4, fixed_abs, tag = 'smem constant byte address 0x4 - core index']
  #allocation1 [shape = 'u32[144,128]{1,0:T(1,128)}', space=vmem, size = 0x12000, scoped, tag = 'internal scratch']
  %s0 = inlined_call_operand.vmem [shape: f32[392,32], index: 0, kind: input, shape index: {}]
  %s1 = inlined_call_operand.vmem [shape: f32[32,8], index: 1, kind: input, shape index: {}]
  %s2 = inlined_call_operand.vmem [shape: f32[1,8], index: 2, kind: input, shape index: {}]
  %s3 = inlined_call_operand.vmem [shape: f32[392,8], index: 3, kind: output, shape index: {}]
  %s4 = sld [smem:[#allocation0]]
  $region22: #{mnist_cnn_forward.10} parent=0
    _
  %s6 = ssub.s32 1, %s4
  %s7 = scalar_select 0, %s6, %s4
  // Predicated region
  $region2: #{mnist_cnn_forward.10} parent=0 // pred_check
    _
  $region3: #{mnist_cnn_forward.10} parent=0 // pred_check_branch
    %9 = sbr.rel (0) target = $region5
  $region4: #{mnist_cnn_forward.10} parent=0 // pred_region
    _
  $region5: #{mnist_cnn_forward.10} parent=0 // pred_fallthru
    _
  // Predicated region
  $region6: #{mnist_cnn_forward.10} parent=0 // pred_check
    _
  $region7: #{mnist_cnn_forward.10} parent=0 // pred_check_branch
    %11 = sbr.rel (0) target = $region9
  $region8: #{mnist_cnn_forward.10} parent=0 // pred_region
    _
  $region9: #{mnist_cnn_forward.10} parent=0 // pred_fallthru
    _
  // Predicated region
  $region10: #{mnist_cnn_forward.10} parent=0 // pred_check
    _
  $region11: #{mnist_cnn_forward.10} parent=0 // pred_check_branch
    %13 = sbr.rel (0) target = $region13
  $region12: #{mnist_cnn_forward.10} parent=0 // pred_region
    _
  $region13: #{mnist_cnn_forward.10} parent=0 // pred_fallthru
    _
  %v14 = vld [vmem:[%s0] sm:$0xff]
  %v15 = vld [vmem:[%s0 + $0x8] sm:$0xff]
  %v16 = vld [vmem:[%s0 + $0x10] sm:$0xff]
  %v17 = vld [vmem:[%s0 + $0x18] sm:$0xff]
  %v18 = vld [vmem:[%s0 + $0x20] sm:$0xff]
  %v19 = vld [vmem:[%s0 + $0x28] sm:$0xff]
  %v20 = vld [vmem:[%s0 + $0x30] sm:$0xff]
  %v21 = vld [vmem:[%s0 + $0x38] sm:$0xff]
  %v22 = vld [vmem:[%s0 + $0x40] sm:$0xff]
  %v23 = vld [vmem:[%s0 + $0x48] sm:$0xff]
  %v24 = vld [vmem:[%s0 + $0x50] sm:$0xff]
  %v25 = vld [vmem:[%s0 + $0x58] sm:$0xff]
  %v26 = vld [vmem:[%s0 + $0x60] sm:$0xff]
  %v27 = vld [vmem:[%s0 + $0x68] sm:$0xff]
  %v28 = vld [vmem:[%s0 + $0x70] sm:$0xff]
  %v29 = vld [vmem:[%s0 + $0x78] sm:$0xff]
  %v30 = vld [vmem:[%s0 + $0x80] sm:$0xff]
  %v31 = vld [vmem:[%s0 + $0x88] sm:$0xff]
  %v32 = vld [vmem:[%s0 + $0x90] sm:$0xff]
  %v33 = vld [vmem:[%s0 + $0x98] sm:$0xff]
  %v34 = vld [vmem:[%s0 + $0xa0] sm:$0xff]
  %v35 = vld [vmem:[%s0 + $0xa8] sm:$0xff]
  %v36 = vld [vmem:[%s0 + $0xb0] sm:$0xff]
  %v37 = vld [vmem:[%s0 + $0xb8] sm:$0xff]
  %v38 = vld [vmem:[%s0 + $0xc0] sm:$0xff]
  %v39 = vld [vmem:[%s0 + $0xc8] sm:$0xff]
  %v40 = vld [vmem:[%s0 + $0xd0] sm:$0xff]
  %v41 = vld [vmem:[%s0 + $0xd8] sm:$0xff]
  %v42 = vld [vmem:[%s0 + $0xe0] sm:$0xff]
  %v43 = vld [vmem:[%s0 + $0xe8] sm:$0xff]
  %v44 = vld [vmem:[%s0 + $0xf0] sm:$0xff]
  %v45 = vld [vmem:[%s0 + $0xf8] sm:$0xff]
  %v46 = vld [vmem:[%s0 + $0x100] sm:$0xff]
  %v47 = vld [vmem:[%s0 + $0x108] sm:$0xff]
  %v48 = vld [vmem:[%s0 + $0x110] sm:$0xff]
  %v49 = vld [vmem:[%s0 + $0x118] sm:$0xff]
  %v50 = vld [vmem:[%s0 + $0x120] sm:$0xff]
  %v51 = vld [vmem:[%s0 + $0x128] sm:$0xff]
  %v52 = vld [vmem:[%s0 + $0x130] sm:$0xff]
  %v53 = vld [vmem:[%s0 + $0x138] sm:$0xff]
  %v54 = vld [vmem:[%s0 + $0x140] sm:$0xff]
  %v55 = vld [vmem:[%s0 + $0x148] sm:$0xff]
  %v56 = vld [vmem:[%s0 + $0x150] sm:$0xff]
  %v57 = vld [vmem:[%s0 + $0x158] sm:$0xff]
  %v58 = vld [vmem:[%s0 + $0x160] sm:$0xff]
  %v59 = vld [vmem:[%s0 + $0x168] sm:$0xff]
  %v60 = vld [vmem:[%s0 + $0x170] sm:$0xff]
  %v61 = vld [vmem:[%s0 + $0x178] sm:$0xff]
  %v62 = vld [vmem:[%s0 + $0x180] sm:$0xff]
  %v63 = vld [vmem:[%s1] sm:$0xff]
  %v64 = vld [vmem:[%s1 + $0x8] sm:$0xff]
  %v65 = vld [vmem:[%s1 + $0x10] sm:$0xff]
  %v66 = vld [vmem:[%s1 + $0x18] sm:$0xff]
  %v67 = vld [vmem:[%s2] sm:$0x1]
  %v69 = vlaneseq
  %v70 = vshrl.u32 %v69, 7
  %v71 = vsub.s32 0, %v70
  %v72 = vrot.slane %v67, %v71
  %vm74 = vcmask 261120
  %v76 = vsel %vm74, %v14, 0
  %v79 = vsel %vm74, %v15, 0
  %v82 = vsel %vm74, %v16, 0
  %v85 = vsel %vm74, %v17, 0
  %v88 = vsel %vm74, %v18, 0
  %v91 = vsel %vm74, %v19, 0
  %v94 = vsel %vm74, %v20, 0
  %v97 = vsel %vm74, %v21, 0
  %v100 = vsel %vm74, %v22, 0
  %v103 = vsel %vm74, %v23, 0
  %v106 = vsel %vm74, %v24, 0
  %v109 = vsel %vm74, %v25, 0
  %v112 = vsel %vm74, %v26, 0
  %v115 = vsel %vm74, %v27, 0
  %v118 = vsel %vm74, %v28, 0
  %v121 = vsel %vm74, %v29, 0
  %v124 = vsel %vm74, %v30, 0
  %v127 = vsel %vm74, %v31, 0
  %v130 = vsel %vm74, %v32, 0
  %v133 = vsel %vm74, %v33, 0
  %v136 = vsel %vm74, %v34, 0
  %v139 = vsel %vm74, %v35, 0
  %v142 = vsel %vm74, %v36, 0
  %v145 = vsel %vm74, %v37, 0
  %v148 = vsel %vm74, %v38, 0
  %v151 = vsel %vm74, %v39, 0
  %v154 = vsel %vm74, %v40, 0
  %v157 = vsel %vm74, %v41, 0
  %v160 = vsel %vm74, %v42, 0
  %v163 = vsel %vm74, %v43, 0
  %v166 = vsel %vm74, %v44, 0
  %v169 = vsel %vm74, %v45, 0
  %v172 = vsel %vm74, %v46, 0
  %v175 = vsel %vm74, %v47, 0
  %v178 = vsel %vm74, %v48, 0
  %v181 = vsel %vm74, %v49, 0
  %v184 = vsel %vm74, %v50, 0
  %v187 = vsel %vm74, %v51, 0
  %v190 = vsel %vm74, %v52, 0
  %v193 = vsel %vm74, %v53, 0
  %v196 = vsel %vm74, %v54, 0
  %v199 = vsel %vm74, %v55, 0
  %v202 = vsel %vm74, %v56, 0
  %v205 = vsel %vm74, %v57, 0
  %v208 = vsel %vm74, %v58, 0
  %v211 = vsel %vm74, %v59, 0
  %v214 = vsel %vm74, %v60, 0
  %v217 = vsel %vm74, %v61, 0
  %v220 = vsel %vm74, %v62, 0
  %222 = vmatprep.subr.mxu0 0.0
  %223 = vmatpush1.msra.mxu0 %v63
  %224 = vmatprep.subr.mxu0 0.0
  %225 = vmatpush1.msra.mxu0 %v64
  %226 = vmatprep.subr.mxu0 0.0
  %227 = vmatpush1.msra.mxu0 %v65
  %228 = vmatprep.subr.mxu0 0.0
  %229 = vmatpush1.msra.mxu0 %v66
  %230 = vmatprep.subr.mxu0 0.0
  %231 = vmatpush1.msra.mxu0 0.0
  %232 = vmatprep.subr.mxu0 0.0
  %233 = vmatpush1.msra.mxu0 0.0
  %234 = vmatprep.subr.mxu0 0.0
  %235 = vmatpush1.msra.mxu0 0.0
  %236 = vmatprep.subr.mxu0 0.0
  %237 = vmatpush1.msra.mxu0 0.0
  %238 = vmatprep.subr.mxu0 0.0
  %239 = vmatpush1.msra.mxu0 0.0
  %240 = vmatprep.subr.mxu0 0.0
  %241 = vmatpush1.msra.mxu0 0.0
  %242 = vmatprep.subr.mxu0 0.0
  %243 = vmatpush1.msra.mxu0 0.0
  %244 = vmatprep.subr.mxu0 0.0
  %245 = vmatpush1.msra.mxu0 0.0
  %246 = vmatprep.subr.mxu0 0.0
  %247 = vmatpush1.msra.mxu0 0.0
  %248 = vmatprep.subr.mxu0 0.0
  %249 = vmatpush1.msra.mxu0 0.0
  %250 = vmatprep.subr.mxu0 0.0
  %251 = vmatpush1.msra.mxu0 0.0
  %252 = vmatprep.subr.mxu0 0.0
  %253 = vmatpush1.msra.mxu0 0.0
  %254 = vmatprep.subr.mxu0 0.0
  %255 = vmatpush1.msra.mxu0 0.0
  %256 = vmatprep.subr.mxu0 0.0
  %257 = vmatpush1.msra.mxu0 0.0
  %258 = vmatprep.subr.mxu0 0.0
  %259 = vmatpush1.msra.mxu0 0.0
  %260 = vmatprep.subr.mxu0 0.0
  %261 = vmatpush1.msra.mxu0 0.0
  %262 = vmatprep.subr.mxu0 0.0
  %263 = vmatpush1.msra.mxu0 0.0
  %264 = vmatprep.subr.mxu0 0.0
  %265 = vmatpush1.msra.mxu0 0.0
  %266 = vmatprep.subr.mxu0 0.0
  %267 = vmatpush1.msra.mxu0 0.0
  %268 = vmatprep.subr.mxu0 0.0
  %269 = vmatpush1.msra.mxu0 0.0
  %270 = vmatprep.subr.mxu0 0.0
  %271 = vmatpush1.msra.mxu0 0.0
  %272 = vmatprep.subr.mxu0 0.0
  %273 = vmatpush1.msra.mxu0 0.0
  %274 = vmatprep.subr.mxu0 0.0
  %275 = vmatpush1.msra.mxu0 0.0
  %276 = vmatprep.subr.mxu0 0.0
  %277 = vmatpush1.msra.mxu0 0.0
  %278 = vmatprep.subr.mxu0 0.0
  %279 = vmatpush1.msra.mxu0 0.0
  %280 = vmatprep.subr.mxu0 0.0
  %281 = vmatpush1.msra.mxu0 0.0
  %282 = vmatprep.subr.mxu0 0.0
  %283 = vmatpush1.msra.mxu0 0.0
  %284 = vmatprep.subr.mxu0 0.0
  %285 = vmatpush1.msra.mxu0 0.0
  %286 = vmatprep.mubr.f32.mxu0 0.0
  %287 = vmatmul.mubr.f32.gmra.mrb[0].mxu0 %v76
  %v288 = vpop.f32.mrb[0].mxu0
  %v289 = vadd.f32 %v72, %v288
  %v290 = vpop.f32.mrb[0].mxu0
  %291 = vmatprep.mubr.f32.mxu0 0.0
  %292 = vmatmul.mubr.f32.gmra.mrb[0].mxu0 %v79
  %v293 = vpop.f32.mrb[0].mxu0
  %v294 = vadd.f32 %v72, %v293
  %v295 = vpop.f32.mrb[0].mxu0
  %296 = vmatprep.mubr.f32.mxu0 0.0
  %297 = vmatmul.mubr.f32.gmra.mrb[0].mxu0 %v82
  %v298 = vpop.f32.mrb[0].mxu0
  %v299 = vadd.f32 %v72, %v298
  %v300 = vpop.f32.mrb[0].mxu0
  %301 = vmatprep.mubr.f32.mxu0 0.0
  %302 = vmatmul.mubr.f32.gmra.mrb[0].mxu0 %v85
  %v303 = vpop.f32.mrb[0].mxu0
  %v304 = vadd.f32 %v72, %v303
  %v305 = vpop.f32.mrb[0].mxu0
  %306 = vmatprep.mubr.f32.mxu0 0.0
  %307 = vmatmul.mubr.f32.gmra.mrb[0].mxu0 %v88
  %v308 = vpop.f32.mrb[0].mxu0
  %v309 = vadd.f32 %v72, %v308
  %v310 = vpop.f32.mrb[0].mxu0
  %311 = vmatprep.mubr.f32.mxu0 0.0
  %312 = vmatmul.mubr.f32.gmra.mrb[0].mxu0 %v91
  %v313 = vpop.f32.mrb[0].mxu0
  %v314 = vadd.f32 %v72, %v313
  %v315 = vpop.f32.mrb[0].mxu0
  %316 = vmatprep.mubr.f32.mxu0 0.0
  %317 = vmatmul.mubr.f32.gmra.mrb[0].mxu0 %v94
  %v318 = vpop.f32.mrb[0].mxu0
  %v319 = vadd.f32 %v72, %v318
  %v320 = vpop.f32.mrb[0].mxu0
  %321 = vmatprep.mubr.f32.mxu0 0.0
  %322 = vmatmul.mubr.f32.gmra.mrb[0].mxu0 %v97
  %v323 = vpop.f32.mrb[0].mxu0
  %v324 = vadd.f32 %v72, %v323
  %v325 = vpop.f32.mrb[0].mxu0
  %326 = vmatprep.mubr.f32.mxu0 0.0
  %327 = vmatmul.mubr.f32.gmra.mrb[0].mxu0 %v100
  %v328 = vpop.f32.mrb[0].mxu0
  %v329 = vadd.f32 %v72, %v328
  %v330 = vpop.f32.mrb[0].mxu0
  %331 = vmatprep.mubr.f32.mxu0 0.0
  %332 = vmatmul.mubr.f32.gmra.mrb[0].mxu0 %v103
  %v333 = vpop.f32.mrb[0].mxu0
  %v334 = vadd.f32 %v72, %v333
  %v335 = vpop.f32.mrb[0].mxu0
  %336 = vmatprep.mubr.f32.mxu0 0.0
  %337 = vmatmul.mubr.f32.gmra.mrb[0].mxu0 %v106
  %v338 = vpop.f32.mrb[0].mxu0
  %v339 = vadd.f32 %v72, %v338
  %v340 = vpop.f32.mrb[0].mxu0
  %341 = vmatprep.mubr.f32.mxu0 0.0
  %342 = vmatmul.mubr.f32.gmra.mrb[0].mxu0 %v109
  %v343 = vpop.f32.mrb[0].mxu0
  %v344 = vadd.f32 %v72, %v343
  %v345 = vpop.f32.mrb[0].mxu0
  %346 = vmatprep.mubr.f32.mxu0 0.0
  %347 = vmatmul.mubr.f32.gmra.mrb[0].mxu0 %v112
  %v348 = vpop.f32.mrb[0].mxu0
  %v349 = vadd.f32 %v72, %v348
  %v350 = vpop.f32.mrb[0].mxu0
  %351 = vmatprep.mubr.f32.mxu0 0.0
  %352 = vmatmul.mubr.f32.gmra.mrb[0].mxu0 %v115
  %v353 = vpop.f32.mrb[0].mxu0
  %v354 = vadd.f32 %v72, %v353
  %v355 = vpop.f32.mrb[0].mxu0
  %356 = vmatprep.mubr.f32.mxu0 0.0
  %357 = vmatmul.mubr.f32.gmra.mrb[0].mxu0 %v118
  %v358 = vpop.f32.mrb[0].mxu0
  %v359 = vadd.f32 %v72, %v358
  %v360 = vpop.f32.mrb[0].mxu0
  %361 = vmatprep.mubr.f32.mxu0 0.0
  %362 = vmatmul.mubr.f32.gmra.mrb[0].mxu0 %v121
  %v363 = vpop.f32.mrb[0].mxu0
  %v364 = vadd.f32 %v72, %v363
  %v365 = vpop.f32.mrb[0].mxu0
  %366 = vmatprep.mubr.f32.mxu0 0.0
  %367 = vmatmul.mubr.f32.gmra.mrb[0].mxu0 %v124
  %v368 = vpop.f32.mrb[0].mxu0
  %v369 = vadd.f32 %v72, %v368
  %v370 = vpop.f32.mrb[0].mxu0
  %371 = vmatprep.mubr.f32.mxu0 0.0
  %372 = vmatmul.mubr.f32.gmra.mrb[0].mxu0 %v127
  %v373 = vpop.f32.mrb[0].mxu0
  %v374 = vadd.f32 %v72, %v373
  %v375 = vpop.f32.mrb[0].mxu0
  %376 = vmatprep.mubr.f32.mxu0 0.0
  %377 = vmatmul.mubr.f32.gmra.mrb[0].mxu0 %v130
  %v378 = vpop.f32.mrb[0].mxu0
  %v379 = vadd.f32 %v72, %v378
  %v380 = vpop.f32.mrb[0].mxu0
  %381 = vmatprep.mubr.f32.mxu0 0.0
  %382 = vmatmul.mubr.f32.gmra.mrb[0].mxu0 %v133
  %v383 = vpop.f32.mrb[0].mxu0
  %v384 = vadd.f32 %v72, %v383
  %v385 = vpop.f32.mrb[0].mxu0
  %386 = vmatprep.mubr.f32.mxu0 0.0
  %387 = vmatmul.mubr.f32.gmra.mrb[0].mxu0 %v136
  %v388 = vpop.f32.mrb[0].mxu0
  %v389 = vadd.f32 %v72, %v388
  %v390 = vpop.f32.mrb[0].mxu0
  %391 = vmatprep.mubr.f32.mxu0 0.0
  %392 = vmatmul.mubr.f32.gmra.mrb[0].mxu0 %v139
  %v393 = vpop.f32.mrb[0].mxu0
  %v394 = vadd.f32 %v72, %v393
  %v395 = vpop.f32.mrb[0].mxu0
  %396 = vmatprep.mubr.f32.mxu0 0.0
  %397 = vmatmul.mubr.f32.gmra.mrb[0].mxu0 %v142
  %v398 = vpop.f32.mrb[0].mxu0
  %v399 = vadd.f32 %v72, %v398
  %v400 = vpop.f32.mrb[0].mxu0
  %401 = vmatprep.mubr.f32.mxu0 0.0
  %402 = vmatmul.mubr.f32.gmra.mrb[0].mxu0 %v145
  %v403 = vpop.f32.mrb[0].mxu0
  %v404 = vadd.f32 %v72, %v403
  %v405 = vpop.f32.mrb[0].mxu0
  %406 = vmatprep.mubr.f32.mxu0 0.0
  %407 = vmatmul.mubr.f32.gmra.mrb[0].mxu0 %v148
  %v408 = vpop.f32.mrb[0].mxu0
  %v409 = vadd.f32 %v72, %v408
  %v410 = vpop.f32.mrb[0].mxu0
  %411 = vmatprep.mubr.f32.mxu0 0.0
  %412 = vmatmul.mubr.f32.gmra.mrb[0].mxu0 %v151
  %v413 = vpop.f32.mrb[0].mxu0
  %v414 = vadd.f32 %v72, %v413
  %v415 = vpop.f32.mrb[0].mxu0
  %416 = vmatprep.mubr.f32.mxu0 0.0
  %417 = vmatmul.mubr.f32.gmra.mrb[0].mxu0 %v154
  %v418 = vpop.f32.mrb[0].mxu0
  %v419 = vadd.f32 %v72, %v418
  %v420 = vpop.f32.mrb[0].mxu0
  %421 = vmatprep.mubr.f32.mxu0 0.0
  %422 = vmatmul.mubr.f32.gmra.mrb[0].mxu0 %v157
  %v423 = vpop.f32.mrb[0].mxu0
  %v424 = vadd.f32 %v72, %v423
  %v425 = vpop.f32.mrb[0].mxu0
  %426 = vmatprep.mubr.f32.mxu0 0.0
  %427 = vmatmul.mubr.f32.gmra.mrb[0].mxu0 %v160
  %v428 = vpop.f32.mrb[0].mxu0
  %v429 = vadd.f32 %v72, %v428
  %v430 = vpop.f32.mrb[0].mxu0
  %431 = vmatprep.mubr.f32.mxu0 0.0
  %432 = vmatmul.mubr.f32.gmra.mrb[0].mxu0 %v163
  %v433 = vpop.f32.mrb[0].mxu0
  %v434 = vadd.f32 %v72, %v433
  %v435 = vpop.f32.mrb[0].mxu0
  %436 = vmatprep.mubr.f32.mxu0 0.0
  %437 = vmatmul.mubr.f32.gmra.mrb[0].mxu0 %v166
  %v438 = vpop.f32.mrb[0].mxu0
  %v439 = vadd.f32 %v72, %v438
  %v440 = vpop.f32.mrb[0].mxu0
  %441 = vmatprep.mubr.f32.mxu0 0.0
  %442 = vmatmul.mubr.f32.gmra.mrb[0].mxu0 %v169
  %v443 = vpop.f32.mrb[0].mxu0
  %v444 = vadd.f32 %v72, %v443
  %v445 = vpop.f32.mrb[0].mxu0
  %446 = vmatprep.mubr.f32.mxu0 0.0
  %447 = vmatmul.mubr.f32.gmra.mrb[0].mxu0 %v172
  %v448 = vpop.f32.mrb[0].mxu0
  %v449 = vadd.f32 %v72, %v448
  %v450 = vpop.f32.mrb[0].mxu0
  %451 = vmatprep.mubr.f32.mxu0 0.0
  %452 = vmatmul.mubr.f32.gmra.mrb[0].mxu0 %v175
  %v453 = vpop.f32.mrb[0].mxu0
  %v454 = vadd.f32 %v72, %v453
  %v455 = vpop.f32.mrb[0].mxu0
  %456 = vmatprep.mubr.f32.mxu0 0.0
  %457 = vmatmul.mubr.f32.gmra.mrb[0].mxu0 %v178
  %v458 = vpop.f32.mrb[0].mxu0
  %v459 = vadd.f32 %v72, %v458
  %v460 = vpop.f32.mrb[0].mxu0
  %461 = vmatprep.mubr.f32.mxu0 0.0
  %462 = vmatmul.mubr.f32.gmra.mrb[0].mxu0 %v181
  %v463 = vpop.f32.mrb[0].mxu0
  %v464 = vadd.f32 %v72, %v463
  %v465 = vpop.f32.mrb[0].mxu0
  %466 = vmatprep.mubr.f32.mxu0 0.0
  %467 = vmatmul.mubr.f32.gmra.mrb[0].mxu0 %v184
  %v468 = vpop.f32.mrb[0].mxu0
  %v469 = vadd.f32 %v72, %v468
  %v470 = vpop.f32.mrb[0].mxu0
  %471 = vmatprep.mubr.f32.mxu0 0.0
  %472 = vmatmul.mubr.f32.gmra.mrb[0].mxu0 %v187
  %v473 = vpop.f32.mrb[0].mxu0
  %v474 = vadd.f32 %v72, %v473
  %v475 = vpop.f32.mrb[0].mxu0
  %476 = vmatprep.mubr.f32.mxu0 0.0
  %477 = vmatmul.mubr.f32.gmra.mrb[0].mxu0 %v190
  %v478 = vpop.f32.mrb[0].mxu0
  %v479 = vadd.f32 %v72, %v478
  %v480 = vpop.f32.mrb[0].mxu0
  %481 = vmatprep.mubr.f32.mxu0 0.0
  %482 = vmatmul.mubr.f32.gmra.mrb[0].mxu0 %v193
  %v483 = vpop.f32.mrb[0].mxu0
  %v484 = vadd.f32 %v72, %v483
  %v485 = vpop.f32.mrb[0].mxu0
  %486 = vmatprep.mubr.f32.mxu0 0.0
  %487 = vmatmul.mubr.f32.gmra.mrb[0].mxu0 %v196
  %v488 = vpop.f32.mrb[0].mxu0
  %v489 = vadd.f32 %v72, %v488
  %v490 = vpop.f32.mrb[0].mxu0
  %491 = vmatprep.mubr.f32.mxu0 0.0
  %492 = vmatmul.mubr.f32.gmra.mrb[0].mxu0 %v199
  %v493 = vpop.f32.mrb[0].mxu0
  %v494 = vadd.f32 %v72, %v493
  %v495 = vpop.f32.mrb[0].mxu0
  %496 = vmatprep.mubr.f32.mxu0 0.0
  %497 = vmatmul.mubr.f32.gmra.mrb[0].mxu0 %v202
  %v498 = vpop.f32.mrb[0].mxu0
  %v499 = vadd.f32 %v72, %v498
  %v500 = vpop.f32.mrb[0].mxu0
  %501 = vmatprep.mubr.f32.mxu0 0.0
  %502 = vmatmul.mubr.f32.gmra.mrb[0].mxu0 %v205
  %v503 = vpop.f32.mrb[0].mxu0
  %v504 = vadd.f32 %v72, %v503
  %v505 = vpop.f32.mrb[0].mxu0
  %506 = vmatprep.mubr.f32.mxu0 0.0
  %507 = vmatmul.mubr.f32.gmra.mrb[0].mxu0 %v208
  %v508 = vpop.f32.mrb[0].mxu0
  %v509 = vadd.f32 %v72, %v508
  %v510 = vpop.f32.mrb[0].mxu0
  %511 = vmatprep.mubr.f32.mxu0 0.0
  %512 = vmatmul.mubr.f32.gmra.mrb[0].mxu0 %v211
  %v513 = vpop.f32.mrb[0].mxu0
  %v514 = vadd.f32 %v72, %v513
  %v515 = vpop.f32.mrb[0].mxu0
  %516 = vmatprep.mubr.f32.mxu0 0.0
  %517 = vmatmul.mubr.f32.gmra.mrb[0].mxu0 %v214
  %v518 = vpop.f32.mrb[0].mxu0
  %v519 = vadd.f32 %v72, %v518
  %v520 = vpop.f32.mrb[0].mxu0
  %521 = vmatprep.mubr.f32.mxu0 0.0
  %522 = vmatmul.mubr.f32.gmra.mrb[0].mxu0 %v217
  %v523 = vpop.f32.mrb[0].mxu0
  %v524 = vadd.f32 %v72, %v523
  %v525 = vpop.f32.mrb[0].mxu0
  %526 = vmatprep.mubr.f32.mxu0 0.0
  %527 = vmatmul.mubr.f32.gmra.mrb[0].mxu0 %v220
  %v528 = vpop.f32.mrb[0].mxu0
  %v529 = vadd.f32 %v72, %v528
  %v530 = vpop.f32.mrb[0].mxu0
  %531 = vdwg.mxu0
  %v532 = vmax.f32 %v289, 0.0
  %v533 = vmax.f32 %v294, 0.0
  %v534 = vmax.f32 %v299, 0.0
  %v535 = vmax.f32 %v304, 0.0
  %v536 = vmax.f32 %v309, 0.0
  %v537 = vmax.f32 %v314, 0.0
  %v538 = vmax.f32 %v319, 0.0
  %v539 = vmax.f32 %v324, 0.0
  %v540 = vmax.f32 %v329, 0.0
  %v541 = vmax.f32 %v334, 0.0
  %v542 = vmax.f32 %v339, 0.0
  %v543 = vmax.f32 %v344, 0.0
  %v544 = vmax.f32 %v349, 0.0
  %v545 = vmax.f32 %v354, 0.0
  %v546 = vmax.f32 %v359, 0.0
  %v547 = vmax.f32 %v364, 0.0
  %v548 = vmax.f32 %v369, 0.0
  %v549 = vmax.f32 %v374, 0.0
  %v550 = vmax.f32 %v379, 0.0
  %v551 = vmax.f32 %v384, 0.0
  %v552 = vmax.f32 %v389, 0.0
  %v553 = vmax.f32 %v394, 0.0
  %v554 = vmax.f32 %v399, 0.0
  %v555 = vmax.f32 %v404, 0.0
  %v556 = vmax.f32 %v409, 0.0
  %v557 = vmax.f32 %v414, 0.0
  %v558 = vmax.f32 %v419, 0.0
  %v559 = vmax.f32 %v424, 0.0
  %v560 = vmax.f32 %v429, 0.0
  %v561 = vmax.f32 %v434, 0.0
  %v562 = vmax.f32 %v439, 0.0
  %v563 = vmax.f32 %v444, 0.0
  %v564 = vmax.f32 %v449, 0.0
  %v565 = vmax.f32 %v454, 0.0
  %v566 = vmax.f32 %v459, 0.0
  %v567 = vmax.f32 %v464, 0.0
  %v568 = vmax.f32 %v469, 0.0
  %v569 = vmax.f32 %v474, 0.0
  %v570 = vmax.f32 %v479, 0.0
  %v571 = vmax.f32 %v484, 0.0
  %v572 = vmax.f32 %v489, 0.0
  %v573 = vmax.f32 %v494, 0.0
  %v574 = vmax.f32 %v499, 0.0
  %v575 = vmax.f32 %v504, 0.0
  %v576 = vmax.f32 %v509, 0.0
  %v577 = vmax.f32 %v514, 0.0
  %v578 = vmax.f32 %v519, 0.0
  %v579 = vmax.f32 %v524, 0.0
  %v580 = vmax.f32 %v529, 0.0
  %vm581 = vcmask 64512
  %582 = vst.msk [vmem:[%s3] sm:$0xff] %vm581, %v532
  %583 = vst.msk [vmem:[%s3 + $0x8] sm:$0xff] %vm581, %v533
  %584 = vst.msk [vmem:[%s3 + $0x10] sm:$0xff] %vm581, %v534
  %585 = vst.msk [vmem:[%s3 + $0x18] sm:$0xff] %vm581, %v535
  %586 = vst.msk [vmem:[%s3 + $0x20] sm:$0xff] %vm581, %v536
  %587 = vst.msk [vmem:[%s3 + $0x28] sm:$0xff] %vm581, %v537
  %588 = vst.msk [vmem:[%s3 + $0x30] sm:$0xff] %vm581, %v538
  %589 = vst.msk [vmem:[%s3 + $0x38] sm:$0xff] %vm581, %v539
  %590 = vst.msk [vmem:[%s3 + $0x40] sm:$0xff] %vm581, %v540
  %591 = vst.msk [vmem:[%s3 + $0x48] sm:$0xff] %vm581, %v541
  %592 = vst.msk [vmem:[%s3 + $0x50] sm:$0xff] %vm581, %v542
  %593 = vst.msk [vmem:[%s3 + $0x58] sm:$0xff] %vm581, %v543
  %594 = vst.msk [vmem:[%s3 + $0x60] sm:$0xff] %vm581, %v544
  %595 = vst.msk [vmem:[%s3 + $0x68] sm:$0xff] %vm581, %v545
  %596 = vst.msk [vmem:[%s3 + $0x70] sm:$0xff] %vm581, %v546
  %597 = vst.msk [vmem:[%s3 + $0x78] sm:$0xff] %vm581, %v547
  %598 = vst.msk [vmem:[%s3 + $0x80] sm:$0xff] %vm581, %v548
  %599 = vst.msk [vmem:[%s3 + $0x88] sm:$0xff] %vm581, %v549
  %600 = vst.msk [vmem:[%s3 + $0x90] sm:$0xff] %vm581, %v550
  %601 = vst.msk [vmem:[%s3 + $0x98] sm:$0xff] %vm581, %v551
  %602 = vst.msk [vmem:[%s3 + $0xa0] sm:$0xff] %vm581, %v552
  %603 = vst.msk [vmem:[%s3 + $0xa8] sm:$0xff] %vm581, %v553
  %604 = vst.msk [vmem:[%s3 + $0xb0] sm:$0xff] %vm581, %v554
  %605 = vst.msk [vmem:[%s3 + $0xb8] sm:$0xff] %vm581, %v555
  %606 = vst.msk [vmem:[%s3 + $0xc0] sm:$0xff] %vm581, %v556
  %607 = vst.msk [vmem:[%s3 + $0xc8] sm:$0xff] %vm581, %v557
  %608 = vst.msk [vmem:[%s3 + $0xd0] sm:$0xff] %vm581, %v558
  %609 = vst.msk [vmem:[%s3 + $0xd8] sm:$0xff] %vm581, %v559
  %610 = vst.msk [vmem:[%s3 + $0xe0] sm:$0xff] %vm581, %v560
  %611 = vst.msk [vmem:[%s3 + $0xe8] sm:$0xff] %vm581, %v561
  %612 = vst.msk [vmem:[%s3 + $0xf0] sm:$0xff] %vm581, %v562
  %613 = vst.msk [vmem:[%s3 + $0xf8] sm:$0xff] %vm581, %v563
  %614 = vst.msk [vmem:[%s3 + $0x100] sm:$0xff] %vm581, %v564
  %615 = vst.msk [vmem:[%s3 + $0x108] sm:$0xff] %vm581, %v565
  %616 = vst.msk [vmem:[%s3 + $0x110] sm:$0xff] %vm581, %v566
  %617 = vst.msk [vmem:[%s3 + $0x118] sm:$0xff] %vm581, %v567
  %618 = vst.msk [vmem:[%s3 + $0x120] sm:$0xff] %vm581, %v568
  %619 = vst.msk [vmem:[%s3 + $0x128] sm:$0xff] %vm581, %v569
  %620 = vst.msk [vmem:[%s3 + $0x130] sm:$0xff] %vm581, %v570
  %621 = vst.msk [vmem:[%s3 + $0x138] sm:$0xff] %vm581, %v571
  %622 = vst.msk [vmem:[%s3 + $0x140] sm:$0xff] %vm581, %v572
  %623 = vst.msk [vmem:[%s3 + $0x148] sm:$0xff] %vm581, %v573
  %624 = vst.msk [vmem:[%s3 + $0x150] sm:$0xff] %vm581, %v574
  %625 = vst.msk [vmem:[%s3 + $0x158] sm:$0xff] %vm581, %v575
  %626 = vst.msk [vmem:[%s3 + $0x160] sm:$0xff] %vm581, %v576
  %627 = vst.msk [vmem:[%s3 + $0x168] sm:$0xff] %vm581, %v577
  %628 = vst.msk [vmem:[%s3 + $0x170] sm:$0xff] %vm581, %v578
  %629 = vst.msk [vmem:[%s3 + $0x178] sm:$0xff] %vm581, %v579
  %630 = vst.msk [vmem:[%s3 + $0x180] sm:$0xff] %vm581, %v580
  // Predicated region
  $region14: #{mnist_cnn_forward.10} parent=0 // pred_check
    _
  $region15: #{mnist_cnn_forward.10} parent=0 // pred_check_branch
    %632 = sbr.rel (0) target = $region17
  $region16: #{mnist_cnn_forward.10} parent=0 // pred_region
    _
  $region17: #{mnist_cnn_forward.10} parent=0 // pred_fallthru
    _
  // Predicated region
  $region18: #{mnist_cnn_forward.10} parent=0 // pred_check
    _
  $region19: #{mnist_cnn_forward.10} parent=0 // pred_check_branch
    %634 = sbr.rel (0) target = $region21
  $region20: #{mnist_cnn_forward.10} parent=0 // pred_region
    _
  $region21: #{mnist_cnn_forward.10} parent=0 // pred_fallthru
    _

// kernel: mnist_cnn_forward.11
$region0: #{mnist_cnn_forward.11}
  #allocation0 [shape = 'u32[]', space=smem, size = 0x4, offset = 0x4, fixed_abs, tag = 'smem constant byte address 0x4 - core index']
  #allocation1 [shape = 'u32[144,128]{1,0:T(1,128)}', space=vmem, size = 0x12000, scoped, tag = 'internal scratch']
  %s0 = inlined_call_operand.vmem [shape: f32[16,2,8,16], index: 0, kind: input, shape index: {}]
  %s1 = inlined_call_operand.vmem [shape: f32[16,8,8], index: 1, kind: output, shape index: {}]
  %s2 = sld [smem:[#allocation0]]
  $region14: #{mnist_cnn_forward.11} parent=0
    _
  %s4 = ssub.s32 1, %s2
  %s5 = scalar_select 0, %s4, %s2
  // Predicated region
  $region2: #{mnist_cnn_forward.11} parent=0 // pred_check
    _
  $region3: #{mnist_cnn_forward.11} parent=0 // pred_check_branch
    %7 = sbr.rel (0) target = $region5
  $region4: #{mnist_cnn_forward.11} parent=0 // pred_region
    _
  $region5: #{mnist_cnn_forward.11} parent=0 // pred_fallthru
    _
  %v8 = vld [vmem:[%s0] sm:$0xff]
  %v9 = vld [vmem:[%s0 + $0x8] sm:$0xff]
  %v10 = vld [vmem:[%s0 + $0x10] sm:$0xff]
  %v11 = vld [vmem:[%s0 + $0x18] sm:$0xff]
  %v12 = vld [vmem:[%s0 + $0x20] sm:$0xff]
  %v13 = vld [vmem:[%s0 + $0x28] sm:$0xff]
  %v14 = vld [vmem:[%s0 + $0x30] sm:$0xff]
  %v15 = vld [vmem:[%s0 + $0x38] sm:$0xff]
  %v16 = vld [vmem:[%s0 + $0x40] sm:$0xff]
  %v17 = vld [vmem:[%s0 + $0x48] sm:$0xff]
  %v18 = vld [vmem:[%s0 + $0x50] sm:$0xff]
  %v19 = vld [vmem:[%s0 + $0x58] sm:$0xff]
  %v20 = vld [vmem:[%s0 + $0x60] sm:$0xff]
  %v21 = vld [vmem:[%s0 + $0x68] sm:$0xff]
  %v22 = vld [vmem:[%s0 + $0x70] sm:$0xff]
  %v23 = vld [vmem:[%s0 + $0x78] sm:$0xff]
  %v24 = vld [vmem:[%s0 + $0x80] sm:$0xff]
  %v25 = vld [vmem:[%s0 + $0x88] sm:$0xff]
  %v26 = vld [vmem:[%s0 + $0x90] sm:$0xff]
  %v27 = vld [vmem:[%s0 + $0x98] sm:$0xff]
  %v28 = vld [vmem:[%s0 + $0xa0] sm:$0xff]
  %v29 = vld [vmem:[%s0 + $0xa8] sm:$0xff]
  %v30 = vld [vmem:[%s0 + $0xb0] sm:$0xff]
  %v31 = vld [vmem:[%s0 + $0xb8] sm:$0xff]
  %v32 = vld [vmem:[%s0 + $0xc0] sm:$0xff]
  %v33 = vld [vmem:[%s0 + $0xc8] sm:$0xff]
  %v34 = vld [vmem:[%s0 + $0xd0] sm:$0xff]
  %v35 = vld [vmem:[%s0 + $0xd8] sm:$0xff]
  %v36 = vld [vmem:[%s0 + $0xe0] sm:$0xff]
  %v37 = vld [vmem:[%s0 + $0xe8] sm:$0xff]
  %v38 = vld [vmem:[%s0 + $0xf0] sm:$0xff]
  %v39 = vld [vmem:[%s0 + $0xf8] sm:$0xff]
  %v40 = vmax.f32 %v8, %v9
  %v41 = vmax.f32 %v10, %v11
  %v42 = vmax.f32 %v12, %v13
  %v43 = vmax.f32 %v14, %v15
  %v44 = vmax.f32 %v16, %v17
  %v45 = vmax.f32 %v18, %v19
  %v46 = vmax.f32 %v20, %v21
  %v47 = vmax.f32 %v22, %v23
  %v48 = vmax.f32 %v24, %v25
  %v49 = vmax.f32 %v26, %v27
  %v50 = vmax.f32 %v28, %v29
  %v51 = vmax.f32 %v30, %v31
  %v52 = vmax.f32 %v32, %v33
  %v53 = vmax.f32 %v34, %v35
  %v54 = vmax.f32 %v36, %v37
  %v55 = vmax.f32 %v38, %v39
  %72 = vrot.lane.b32.xlu0 %v40, 120
  %v73 = vpop.permute.xlu0 %72
  %74 = vrot.lane.b32.xlu0 %v41, 120
  %v75 = vpop.permute.xlu0 %74
  %76 = vrot.lane.b32.xlu0 %v42, 120
  %v77 = vpop.permute.xlu0 %76
  %78 = vrot.lane.b32.xlu0 %v43, 120
  %v79 = vpop.permute.xlu0 %78
  %80 = vrot.lane.b32.xlu0 %v44, 120
  %v81 = vpop.permute.xlu0 %80
  %82 = vrot.lane.b32.xlu0 %v45, 120
  %v83 = vpop.permute.xlu0 %82
  %84 = vrot.lane.b32.xlu0 %v46, 120
  %v85 = vpop.permute.xlu0 %84
  %86 = vrot.lane.b32.xlu0 %v47, 120
  %v87 = vpop.permute.xlu0 %86
  %88 = vrot.lane.b32.xlu0 %v48, 120
  %v89 = vpop.permute.xlu0 %88
  %90 = vrot.lane.b32.xlu0 %v49, 120
  %v91 = vpop.permute.xlu0 %90
  %92 = vrot.lane.b32.xlu0 %v50, 120
  %v93 = vpop.permute.xlu0 %92
  %94 = vrot.lane.b32.xlu0 %v51, 120
  %v95 = vpop.permute.xlu0 %94
  %96 = vrot.lane.b32.xlu0 %v52, 120
  %v97 = vpop.permute.xlu0 %96
  %98 = vrot.lane.b32.xlu0 %v53, 120
  %v99 = vpop.permute.xlu0 %98
  %100 = vrot.lane.b32.xlu0 %v54, 120
  %v101 = vpop.permute.xlu0 %100
  %102 = vrot.lane.b32.xlu0 %v55, 120
  %v103 = vpop.permute.xlu0 %102
  %v120 = vmax.f32 %v40, %v73
  %v121 = vmax.f32 %v41, %v75
  %v122 = vmax.f32 %v42, %v77
  %v123 = vmax.f32 %v43, %v79
  %v124 = vmax.f32 %v44, %v81
  %v125 = vmax.f32 %v45, %v83
  %v126 = vmax.f32 %v46, %v85
  %v127 = vmax.f32 %v47, %v87
  %v128 = vmax.f32 %v48, %v89
  %v129 = vmax.f32 %v49, %v91
  %v130 = vmax.f32 %v50, %v93
  %v131 = vmax.f32 %v51, %v95
  %v132 = vmax.f32 %v52, %v97
  %v133 = vmax.f32 %v53, %v99
  %v134 = vmax.f32 %v54, %v101
  %v135 = vmax.f32 %v55, %v103
  %vm136 = vcmask 64512
  %137 = vst.msk [vmem:[%s1] sm:$0xff] %vm136, %v120
  %138 = vst.msk [vmem:[%s1 + $0x8] sm:$0xff] %vm136, %v121
  %139 = vst.msk [vmem:[%s1 + $0x10] sm:$0xff] %vm136, %v122
  %140 = vst.msk [vmem:[%s1 + $0x18] sm:$0xff] %vm136, %v123
  %141 = vst.msk [vmem:[%s1 + $0x20] sm:$0xff] %vm136, %v124
  %142 = vst.msk [vmem:[%s1 + $0x28] sm:$0xff] %vm136, %v125
  %143 = vst.msk [vmem:[%s1 + $0x30] sm:$0xff] %vm136, %v126
  %144 = vst.msk [vmem:[%s1 + $0x38] sm:$0xff] %vm136, %v127
  %145 = vst.msk [vmem:[%s1 + $0x40] sm:$0xff] %vm136, %v128
  %146 = vst.msk [vmem:[%s1 + $0x48] sm:$0xff] %vm136, %v129
  %147 = vst.msk [vmem:[%s1 + $0x50] sm:$0xff] %vm136, %v130
  %148 = vst.msk [vmem:[%s1 + $0x58] sm:$0xff] %vm136, %v131
  %149 = vst.msk [vmem:[%s1 + $0x60] sm:$0xff] %vm136, %v132
  %150 = vst.msk [vmem:[%s1 + $0x68] sm:$0xff] %vm136, %v133
  %151 = vst.msk [vmem:[%s1 + $0x70] sm:$0xff] %vm136, %v134
  %152 = vst.msk [vmem:[%s1 + $0x78] sm:$0xff] %vm136, %v135
  // Predicated region
  $region6: #{mnist_cnn_forward.11} parent=0 // pred_check
    _
  $region7: #{mnist_cnn_forward.11} parent=0 // pred_check_branch
    %154 = sbr.rel (0) target = $region9
  $region8: #{mnist_cnn_forward.11} parent=0 // pred_region
    _
  $region9: #{mnist_cnn_forward.11} parent=0 // pred_fallthru
    _
  // Predicated region
  $region10: #{mnist_cnn_forward.11} parent=0 // pred_check
    _
  $region11: #{mnist_cnn_forward.11} parent=0 // pred_check_branch
    %156 = sbr.rel (0) target = $region13
  $region12: #{mnist_cnn_forward.11} parent=0 // pred_region
    _
  $region13: #{mnist_cnn_forward.11} parent=0 // pred_fallthru
    _

// kernel: mnist_cnn_forward.12
$region0: #{mnist_cnn_forward.12}
  #allocation0 [shape = 'u32[]', space=smem, size = 0x4, offset = 0x4, fixed_abs, tag = 'smem constant byte address 0x4 - core index']
  #allocation1 [shape = 'u32[144,128]{1,0:T(1,128)}', space=vmem, size = 0x12000, scoped, tag = 'internal scratch']
  %s0 = inlined_call_operand.vmem [shape: f32[2,512], index: 0, kind: input, shape index: {}]
  %s1 = inlined_call_operand.vmem [shape: f32[512,64], index: 1, kind: input, shape index: {}]
  %s2 = inlined_call_operand.vmem [shape: f32[1,64], index: 2, kind: input, shape index: {}]
  %s3 = inlined_call_operand.vmem [shape: f32[2,64], index: 3, kind: output, shape index: {0}]
  %s4 = inlined_call_operand.vmem [shape: f32[8,64], index: 4, kind: output, shape index: {1}]
  %5 = xla_tuple %s3, %s4
  %s6 = sld [smem:[#allocation0]]
  $region30: #{mnist_cnn_forward.12} parent=0
    _
  %s8 = ssub.s32 1, %s6
  %s9 = scalar_select 0, %s8, %s6
  // Predicated region
  $region2: #{mnist_cnn_forward.12} parent=0 // pred_check
    _
  $region3: #{mnist_cnn_forward.12} parent=0 // pred_check_branch
    %11 = sbr.rel (0) target = $region5
  $region4: #{mnist_cnn_forward.12} parent=0 // pred_region
    _
  $region5: #{mnist_cnn_forward.12} parent=0 // pred_fallthru
    _
  // Predicated region
  $region6: #{mnist_cnn_forward.12} parent=0 // pred_check
    _
  $region7: #{mnist_cnn_forward.12} parent=0 // pred_check_branch
    %13 = sbr.rel (0) target = $region9
  $region8: #{mnist_cnn_forward.12} parent=0 // pred_region
    _
  $region9: #{mnist_cnn_forward.12} parent=0 // pred_fallthru
    _
  // Predicated region
  $region10: #{mnist_cnn_forward.12} parent=0 // pred_check
    _
  $region11: #{mnist_cnn_forward.12} parent=0 // pred_check_branch
    %15 = sbr.rel (0) target = $region13
  $region12: #{mnist_cnn_forward.12} parent=0 // pred_region
    _
  $region13: #{mnist_cnn_forward.12} parent=0 // pred_fallthru
    _
  %v16 = vld [vmem:[%s0] sm:$0xff]
  %v17 = vld [vmem:[%s1] sm:$0xff]
  %v18 = vld [vmem:[%s1 + $0x8] sm:$0xff]
  %v19 = vld [vmem:[%s1 + $0x10] sm:$0xff]
  %v20 = vld [vmem:[%s1 + $0x18] sm:$0xff]
  %v21 = vld [vmem:[%s1 + $0x20] sm:$0xff]
  %v22 = vld [vmem:[%s1 + $0x28] sm:$0xff]
  %v23 = vld [vmem:[%s1 + $0x30] sm:$0xff]
  %v24 = vld [vmem:[%s1 + $0x38] sm:$0xff]
  %v25 = vld [vmem:[%s1 + $0x40] sm:$0xff]
  %v26 = vld [vmem:[%s1 + $0x48] sm:$0xff]
  %v27 = vld [vmem:[%s1 + $0x50] sm:$0xff]
  %v28 = vld [vmem:[%s1 + $0x58] sm:$0xff]
  %v29 = vld [vmem:[%s1 + $0x60] sm:$0xff]
  %v30 = vld [vmem:[%s1 + $0x68] sm:$0xff]
  %v31 = vld [vmem:[%s1 + $0x70] sm:$0xff]
  %v32 = vld [vmem:[%s1 + $0x78] sm:$0xff]
  %v33 = vld [vmem:[%s1 + $0x80] sm:$0xff]
  %v34 = vld [vmem:[%s1 + $0x88] sm:$0xff]
  %v35 = vld [vmem:[%s1 + $0x90] sm:$0xff]
  %v36 = vld [vmem:[%s1 + $0x98] sm:$0xff]
  %v37 = vld [vmem:[%s1 + $0xa0] sm:$0xff]
  %v38 = vld [vmem:[%s1 + $0xa8] sm:$0xff]
  %v39 = vld [vmem:[%s1 + $0xb0] sm:$0xff]
  %v40 = vld [vmem:[%s1 + $0xb8] sm:$0xff]
  %v41 = vld [vmem:[%s1 + $0xc0] sm:$0xff]
  %v42 = vld [vmem:[%s1 + $0xc8] sm:$0xff]
  %v43 = vld [vmem:[%s1 + $0xd0] sm:$0xff]
  %v44 = vld [vmem:[%s1 + $0xd8] sm:$0xff]
  %v45 = vld [vmem:[%s1 + $0xe0] sm:$0xff]
  %v46 = vld [vmem:[%s1 + $0xe8] sm:$0xff]
  %v47 = vld [vmem:[%s1 + $0xf0] sm:$0xff]
  %v48 = vld [vmem:[%s1 + $0xf8] sm:$0xff]
  %v49 = vld [vmem:[%s1 + $0x100] sm:$0xff]
  %v50 = vld [vmem:[%s1 + $0x108] sm:$0xff]
  %v51 = vld [vmem:[%s1 + $0x110] sm:$0xff]
  %v52 = vld [vmem:[%s1 + $0x118] sm:$0xff]
  %v53 = vld [vmem:[%s1 + $0x120] sm:$0xff]
  %v54 = vld [vmem:[%s1 + $0x128] sm:$0xff]
  %v55 = vld [vmem:[%s1 + $0x130] sm:$0xff]
  %v56 = vld [vmem:[%s1 + $0x138] sm:$0xff]
  %v57 = vld [vmem:[%s1 + $0x140] sm:$0xff]
  %v58 = vld [vmem:[%s1 + $0x148] sm:$0xff]
  %v59 = vld [vmem:[%s1 + $0x150] sm:$0xff]
  %v60 = vld [vmem:[%s1 + $0x158] sm:$0xff]
  %v61 = vld [vmem:[%s1 + $0x160] sm:$0xff]
  %v62 = vld [vmem:[%s1 + $0x168] sm:$0xff]
  %v63 = vld [vmem:[%s1 + $0x170] sm:$0xff]
  %v64 = vld [vmem:[%s1 + $0x178] sm:$0xff]
  %v65 = vld [vmem:[%s1 + $0x180] sm:$0xff]
  %v66 = vld [vmem:[%s1 + $0x188] sm:$0xff]
  %v67 = vld [vmem:[%s1 + $0x190] sm:$0xff]
  %v68 = vld [vmem:[%s1 + $0x198] sm:$0xff]
  %v69 = vld [vmem:[%s1 + $0x1a0] sm:$0xff]
  %v70 = vld [vmem:[%s1 + $0x1a8] sm:$0xff]
  %v71 = vld [vmem:[%s1 + $0x1b0] sm:$0xff]
  %v72 = vld [vmem:[%s1 + $0x1b8] sm:$0xff]
  %v73 = vld [vmem:[%s1 + $0x1c0] sm:$0xff]
  %v74 = vld [vmem:[%s1 + $0x1c8] sm:$0xff]
  %v75 = vld [vmem:[%s1 + $0x1d0] sm:$0xff]
  %v76 = vld [vmem:[%s1 + $0x1d8] sm:$0xff]
  %v77 = vld [vmem:[%s1 + $0x1e0] sm:$0xff]
  %v78 = vld [vmem:[%s1 + $0x1e8] sm:$0xff]
  %v79 = vld [vmem:[%s1 + $0x1f0] sm:$0xff]
  %v80 = vld [vmem:[%s1 + $0x1f8] sm:$0xff]
  %v81 = vld [vmem:[%s2] sm:$0x1]
  %v83 = vlaneseq
  %v84 = vshrl.u32 %v83, 7
  %v85 = vsub.s32 0, %v84
  %v86 = vrot.slane %v81, %v85
  %v89 = vcombine.high %v16, %v16
  %v91 = vunpack.c.l.s4 1983009808
  %v92 = vunpack.c.0.s8 %v91
  %v93 = vlaneseq
  %v94 = vshrl.u32 %v93, 7
  %v95 = vsub.s32 %v92, %v94
  %v96 = vrot.slane %v16, %v95
  %v98 = vunpack.c.l.s4 1983009808
  %v99 = vunpack.c.0.s8 %v98
  %v100 = vlaneseq
  %v101 = vshrl.u32 %v100, 7
  %v102 = vsub.s32 %v99, %v101
  %v103 = vrot.slane %v89, %v102
  %v104 = vcombine.high %v96, %v96
  %v105 = vcombine.high %v103, %v103
  %110 = vmatprep.subr.mxu0 0.0
  %111 = vmatpush1.msra.mxu0 %v17
  %112 = vmatprep.subr.mxu0 0.0
  %113 = vmatpush1.msra.mxu0 %v18
  %114 = vmatprep.subr.mxu0 0.0
  %115 = vmatpush1.msra.mxu0 %v19
  %116 = vmatprep.subr.mxu0 0.0
  %117 = vmatpush1.msra.mxu0 %v20
  %118 = vmatprep.subr.mxu0 0.0
  %119 = vmatpush1.msra.mxu0 %v21
  %120 = vmatprep.subr.mxu0 0.0
  %121 = vmatpush1.msra.mxu0 %v22
  %122 = vmatprep.subr.mxu0 0.0
  %123 = vmatpush1.msra.mxu0 %v23
  %124 = vmatprep.subr.mxu0 0.0
  %125 = vmatpush1.msra.mxu0 %v24
  %126 = vmatprep.subr.mxu0 0.0
  %127 = vmatpush1.msra.mxu0 %v25
  %128 = vmatprep.subr.mxu0 0.0
  %129 = vmatpush1.msra.mxu0 %v26
  %130 = vmatprep.subr.mxu0 0.0
  %131 = vmatpush1.msra.mxu0 %v27
  %132 = vmatprep.subr.mxu0 0.0
  %133 = vmatpush1.msra.mxu0 %v28
  %134 = vmatprep.subr.mxu0 0.0
  %135 = vmatpush1.msra.mxu0 %v29
  %136 = vmatprep.subr.mxu0 0.0
  %137 = vmatpush1.msra.mxu0 %v30
  %138 = vmatprep.subr.mxu0 0.0
  %139 = vmatpush1.msra.mxu0 %v31
  %140 = vmatprep.subr.mxu0 0.0
  %141 = vmatpush1.msra.mxu0 %v32
  %142 = vmatprep.subr.mxu0 0.0
  %143 = vmatpush1.msra.mxu0 %v33
  %144 = vmatprep.subr.mxu0 0.0
  %145 = vmatpush1.msra.mxu0 %v34
  %146 = vmatprep.subr.mxu0 0.0
  %147 = vmatpush1.msra.mxu0 %v35
  %148 = vmatprep.subr.mxu0 0.0
  %149 = vmatpush1.msra.mxu0 %v36
  %150 = vmatprep.subr.mxu0 0.0
  %151 = vmatpush1.msra.mxu0 %v37
  %152 = vmatprep.subr.mxu0 0.0
  %153 = vmatpush1.msra.mxu0 %v38
  %154 = vmatprep.subr.mxu0 0.0
  %155 = vmatpush1.msra.mxu0 %v39
  %156 = vmatprep.subr.mxu0 0.0
  %157 = vmatpush1.msra.mxu0 %v40
  %158 = vmatprep.subr.mxu0 0.0
  %159 = vmatpush1.msra.mxu0 %v41
  %160 = vmatprep.subr.mxu0 0.0
  %161 = vmatpush1.msra.mxu0 %v42
  %162 = vmatprep.subr.mxu0 0.0
  %163 = vmatpush1.msra.mxu0 %v43
  %164 = vmatprep.subr.mxu0 0.0
  %165 = vmatpush1.msra.mxu0 %v44
  %166 = vmatprep.subr.mxu0 0.0
  %167 = vmatpush1.msra.mxu0 %v45
  %168 = vmatprep.subr.mxu0 0.0
  %169 = vmatpush1.msra.mxu0 %v46
  %170 = vmatprep.subr.mxu0 0.0
  %171 = vmatpush1.msra.mxu0 %v47
  %172 = vmatprep.subr.mxu0 0.0
  %173 = vmatpush1.msra.mxu0 %v48
  %174 = vmatprep.mubr.f32.mxu0 %v104
  %175 = vmatmul.mubr.f32.gmra.mrb[0].mxu0 %v96
  %v176 = vpop.f32.mrb[0].mxu0
  %v177 = vadd.f32 %v86, %v176
  %v178 = vpop.f32.mrb[0].mxu0
  %179 = vdwg.mxu0
  %180 = vmatprep.subr.mxu0 0.0
  %181 = vmatpush1.msra.mxu0 %v49
  %182 = vmatprep.subr.mxu0 0.0
  %183 = vmatpush1.msra.mxu0 %v50
  %184 = vmatprep.subr.mxu0 0.0
  %185 = vmatpush1.msra.mxu0 %v51
  %186 = vmatprep.subr.mxu0 0.0
  %187 = vmatpush1.msra.mxu0 %v52
  %188 = vmatprep.subr.mxu0 0.0
  %189 = vmatpush1.msra.mxu0 %v53
  %190 = vmatprep.subr.mxu0 0.0
  %191 = vmatpush1.msra.mxu0 %v54
  %192 = vmatprep.subr.mxu0 0.0
  %193 = vmatpush1.msra.mxu0 %v55
  %194 = vmatprep.subr.mxu0 0.0
  %195 = vmatpush1.msra.mxu0 %v56
  %196 = vmatprep.subr.mxu0 0.0
  %197 = vmatpush1.msra.mxu0 %v57
  %198 = vmatprep.subr.mxu0 0.0
  %199 = vmatpush1.msra.mxu0 %v58
  %200 = vmatprep.subr.mxu0 0.0
  %201 = vmatpush1.msra.mxu0 %v59
  %202 = vmatprep.subr.mxu0 0.0
  %203 = vmatpush1.msra.mxu0 %v60
  %204 = vmatprep.subr.mxu0 0.0
  %205 = vmatpush1.msra.mxu0 %v61
  %206 = vmatprep.subr.mxu0 0.0
  %207 = vmatpush1.msra.mxu0 %v62
  %208 = vmatprep.subr.mxu0 0.0
  %209 = vmatpush1.msra.mxu0 %v63
  %210 = vmatprep.subr.mxu0 0.0
  %211 = vmatpush1.msra.mxu0 %v64
  %212 = vmatprep.subr.mxu0 0.0
  %213 = vmatpush1.msra.mxu0 %v65
  %214 = vmatprep.subr.mxu0 0.0
  %215 = vmatpush1.msra.mxu0 %v66
  %216 = vmatprep.subr.mxu0 0.0
  %217 = vmatpush1.msra.mxu0 %v67
  %218 = vmatprep.subr.mxu0 0.0
  %219 = vmatpush1.msra.mxu0 %v68
  %220 = vmatprep.subr.mxu0 0.0
  %221 = vmatpush1.msra.mxu0 %v69
  %222 = vmatprep.subr.mxu0 0.0
  %223 = vmatpush1.msra.mxu0 %v70
  %224 = vmatprep.subr.mxu0 0.0
  %225 = vmatpush1.msra.mxu0 %v71
  %226 = vmatprep.subr.mxu0 0.0
  %227 = vmatpush1.msra.mxu0 %v72
  %228 = vmatprep.subr.mxu0 0.0
  %229 = vmatpush1.msra.mxu0 %v73
  %230 = vmatprep.subr.mxu0 0.0
  %231 = vmatpush1.msra.mxu0 %v74
  %232 = vmatprep.subr.mxu0 0.0
  %233 = vmatpush1.msra.mxu0 %v75
  %234 = vmatprep.subr.mxu0 0.0
  %235 = vmatpush1.msra.mxu0 %v76
  %236 = vmatprep.subr.mxu0 0.0
  %237 = vmatpush1.msra.mxu0 %v77
  %238 = vmatprep.subr.mxu0 0.0
  %239 = vmatpush1.msra.mxu0 %v78
  %240 = vmatprep.subr.mxu0 0.0
  %241 = vmatpush1.msra.mxu0 %v79
  %242 = vmatprep.subr.mxu0 0.0
  %243 = vmatpush1.msra.mxu0 %v80
  %244 = vmatprep.mubr.f32.mxu0 %v105
  %245 = vmatmul.mubr.f32.gmra.mrb[0].mxu0 %v103
  %v246 = vpop.f32.mrb[0].mxu0
  %v247 = vadd.f32 %v177, %v246
  %v248 = vpop.f32.mrb[0].mxu0
  %249 = vdwg.mxu0
  %v250 = vmax.f32 %v247, 0.0
  %vm251 = vcmask 517120
  %252 = vst.msk [vmem:[%s3] sm:$0x3] %vm251, %v250
  %v253 = vsel %vm251, %v250, 0.0
  %v254 = vrot.slane %v253, 4
  %v255 = vadd.f32 %v253, %v254
  %v256 = vrot.slane %v255, 2
  %v257 = vadd.f32 %v255, %v256
  %v258 = vrot.slane %v257, 1
  %v259 = vadd.f32 %v257, %v258
  %v260 = vmul.f32 %v250, %v250
  %v261 = vsel %vm251, %v260, 0.0
  %v262 = vrot.slane %v261, 4
  %v263 = vadd.f32 %v261, %v262
  %v264 = vrot.slane %v263, 2
  %v265 = vadd.f32 %v263, %v264
  %v266 = vrot.slane %v265, 1
  %v267 = vadd.f32 %v265, %v266
  %v268 = vlaneseq
  %v269 = vshrl.u32 %v268, 7
  %vm270 = vcmp.eq.s32.totalorder %v269, 0
  %v271 = vsel %vm270, %v259, 0.0
  %vm272 = vcmp.eq.s32.totalorder %v269, 1
  %v273 = vsel %vm272, %v267, 0.0
  %v274 = vadd.f32 %v271, %v273
  %vm275 = vcmask 523264
  %276 = vst.msk [vmem:[%s4] sm:$0xff] %vm275, %v274
  // Predicated region
  $region14: #{mnist_cnn_forward.12} parent=0 // pred_check
    _
  $region15: #{mnist_cnn_forward.12} parent=0 // pred_check_branch
    %278 = sbr.rel (0) target = $region17
  $region16: #{mnist_cnn_forward.12} parent=0 // pred_region
    _
  $region17: #{mnist_cnn_forward.12} parent=0 // pred_fallthru
    _
  // Predicated region
  $region18: #{mnist_cnn_forward.12} parent=0 // pred_check
    _
  $region19: #{mnist_cnn_forward.12} parent=0 // pred_check_branch
    %280 = sbr.rel (0) target = $region21
  $region20: #{mnist_cnn_forward.12} parent=0 // pred_region
    _
  $region21: #{mnist_cnn_forward.12} parent=0 // pred_fallthru
    _
  // Predicated region
  $region22: #{mnist_cnn_forward.12} parent=0 // pred_check
    _
  $region23: #{mnist_cnn_forward.12} parent=0 // pred_check_branch
    %282 = sbr.rel (0) target = $region25
  $region24: #{mnist_cnn_forward.12} parent=0 // pred_region
    _
  $region25: #{mnist_cnn_forward.12} parent=0 // pred_fallthru
    _
  // Predicated region
  $region26: #{mnist_cnn_forward.12} parent=0 // pred_check
    _
  $region27: #{mnist_cnn_forward.12} parent=0 // pred_check_branch
    %284 = sbr.rel (0) target = $region29
  $region28: #{mnist_cnn_forward.12} parent=0 // pred_region
    _
  $region29: #{mnist_cnn_forward.12} parent=0 // pred_fallthru
    _

// kernel: mnist_cnn_forward.13
$region0: #{mnist_cnn_forward.13}
  #allocation0 [shape = 'u32[]', space=smem, size = 0x4, offset = 0x4, fixed_abs, tag = 'smem constant byte address 0x4 - core index']
  #allocation1 [shape = 'u32[144,128]{1,0:T(1,128)}', space=vmem, size = 0x12000, scoped, tag = 'internal scratch']
  %s0 = inlined_call_operand.vmem [shape: f32[2,64], index: 0, kind: input, shape index: {}]
  %s1 = inlined_call_operand.vmem [shape: f32[64,10], index: 1, kind: input, shape index: {}]
  %s2 = inlined_call_operand.vmem [shape: f32[1,10], index: 2, kind: input, shape index: {}]
  %s3 = inlined_call_operand.hbm [shape: f32[2,10], index: 3, kind: output, shape index: {}]
  %s4 = sld [smem:[#allocation0]]
  $region22: #{mnist_cnn_forward.13} parent=0
    _
  %s6 = ssub.s32 1, %s4
  %s7 = scalar_select 0, %s6, %s4
  $region1: #{mnist_cnn_forward.13} parent=0
    #allocation2 [shape = 'u8[1024]{0}', space=vmem, size = 0x400, scoped, tag = 'output window, operand 0, single buffered']
    #allocation3 [shape = 's32[1]{0}', space=sflag, size = 0x4, scoped, tag = 'scoped memory for mnist_cnn_forward.13']
    %8 = vsyncpa [#allocation3], 0
    // Predicated region
    $region2: #{mnist_cnn_forward.13} parent=1 // pred_check
      _
    $region3: #{mnist_cnn_forward.13} parent=1 // pred_check_branch
      %10 = sbr.rel (0) target = $region5
    $region4: #{mnist_cnn_forward.13} parent=1 // pred_region
      _
    $region5: #{mnist_cnn_forward.13} parent=1 // pred_fallthru
      _
    // Predicated region
    $region6: #{mnist_cnn_forward.13} parent=1 // pred_check
      _
    $region7: #{mnist_cnn_forward.13} parent=1 // pred_check_branch
      %12 = sbr.rel (0) target = $region9
    $region8: #{mnist_cnn_forward.13} parent=1 // pred_region
      _
    $region9: #{mnist_cnn_forward.13} parent=1 // pred_fallthru
      _
    // Predicated region
    $region10: #{mnist_cnn_forward.13} parent=1 // pred_check
      _
    $region11: #{mnist_cnn_forward.13} parent=1 // pred_check_branch
      %14 = sbr.rel (0) target = $region13
    $region12: #{mnist_cnn_forward.13} parent=1 // pred_region
      _
    $region13: #{mnist_cnn_forward.13} parent=1 // pred_fallthru
      _
    %v15 = vld [vmem:[%s0] sm:$0x3]
    %v16 = vld [vmem:[%s1] sm:$0xff]
    %v17 = vld [vmem:[%s1 + $0x8] sm:$0xff]
    %v18 = vld [vmem:[%s1 + $0x10] sm:$0xff]
    %v19 = vld [vmem:[%s1 + $0x18] sm:$0xff]
    %v20 = vld [vmem:[%s1 + $0x20] sm:$0xff]
    %v21 = vld [vmem:[%s1 + $0x28] sm:$0xff]
    %v22 = vld [vmem:[%s1 + $0x30] sm:$0xff]
    %v23 = vld [vmem:[%s1 + $0x38] sm:$0xff]
    %v24 = vld [vmem:[%s2] sm:$0x1]
    %v26 = vlaneseq
    %v27 = vshrl.u32 %v26, 7
    %v28 = vsub.s32 0, %v27
    %v29 = vrot.slane %v24, %v28
    %vm31 = vcmask 523264
    %v33 = vsel %vm31, %v15, 0
    %35 = vmatprep.subr.mxu0 0.0
    %36 = vmatpush1.msra.mxu0 %v16
    %37 = vmatprep.subr.mxu0 0.0
    %38 = vmatpush1.msra.mxu0 %v17
    %39 = vmatprep.subr.mxu0 0.0
    %40 = vmatpush1.msra.mxu0 %v18
    %41 = vmatprep.subr.mxu0 0.0
    %42 = vmatpush1.msra.mxu0 %v19
    %43 = vmatprep.subr.mxu0 0.0
    %44 = vmatpush1.msra.mxu0 %v20
    %45 = vmatprep.subr.mxu0 0.0
    %46 = vmatpush1.msra.mxu0 %v21
    %47 = vmatprep.subr.mxu0 0.0
    %48 = vmatpush1.msra.mxu0 %v22
    %49 = vmatprep.subr.mxu0 0.0
    %50 = vmatpush1.msra.mxu0 %v23
    %51 = vmatprep.subr.mxu0 0.0
    %52 = vmatpush1.msra.mxu0 0.0
    %53 = vmatprep.subr.mxu0 0.0
    %54 = vmatpush1.msra.mxu0 0.0
    %55 = vmatprep.subr.mxu0 0.0
    %56 = vmatpush1.msra.mxu0 0.0
    %57 = vmatprep.subr.mxu0 0.0
    %58 = vmatpush1.msra.mxu0 0.0
    %59 = vmatprep.subr.mxu0 0.0
    %60 = vmatpush1.msra.mxu0 0.0
    %61 = vmatprep.subr.mxu0 0.0
    %62 = vmatpush1.msra.mxu0 0.0
    %63 = vmatprep.subr.mxu0 0.0
    %64 = vmatpush1.msra.mxu0 0.0
    %65 = vmatprep.subr.mxu0 0.0
    %66 = vmatpush1.msra.mxu0 0.0
    %67 = vmatprep.subr.mxu0 0.0
    %68 = vmatpush1.msra.mxu0 0.0
    %69 = vmatprep.subr.mxu0 0.0
    %70 = vmatpush1.msra.mxu0 0.0
    %71 = vmatprep.subr.mxu0 0.0
    %72 = vmatpush1.msra.mxu0 0.0
    %73 = vmatprep.subr.mxu0 0.0
    %74 = vmatpush1.msra.mxu0 0.0
    %75 = vmatprep.subr.mxu0 0.0
    %76 = vmatpush1.msra.mxu0 0.0
    %77 = vmatprep.subr.mxu0 0.0
    %78 = vmatpush1.msra.mxu0 0.0
    %79 = vmatprep.subr.mxu0 0.0
    %80 = vmatpush1.msra.mxu0 0.0
    %81 = vmatprep.subr.mxu0 0.0
    %82 = vmatpush1.msra.mxu0 0.0
    %83 = vmatprep.subr.mxu0 0.0
    %84 = vmatpush1.msra.mxu0 0.0
    %85 = vmatprep.subr.mxu0 0.0
    %86 = vmatpush1.msra.mxu0 0.0
    %87 = vmatprep.subr.mxu0 0.0
    %88 = vmatpush1.msra.mxu0 0.0
    %89 = vmatprep.subr.mxu0 0.0
    %90 = vmatpush1.msra.mxu0 0.0
    %91 = vmatprep.subr.mxu0 0.0
    %92 = vmatpush1.msra.mxu0 0.0
    %93 = vmatprep.subr.mxu0 0.0
    %94 = vmatpush1.msra.mxu0 0.0
    %95 = vmatprep.subr.mxu0 0.0
    %96 = vmatpush1.msra.mxu0 0.0
    %97 = vmatprep.subr.mxu0 0.0
    %98 = vmatpush1.msra.mxu0 0.0
    %99 = vmatprep.mubr.f32.mxu0 0.0
    %100 = vmatmul.mubr.f32.gmra.mrb[0].mxu0 %v33
    %v101 = vpop.f32.mrb[0].mxu0
    %v102 = vadd.f32 %v29, %v101
    %v103 = vpop.f32.mrb[0].mxu0
    %104 = vdwg.mxu0
    %vm105 = vcmask 74752
    %106 = vst.msk [vmem:[#allocation2] sm:$0x3] %vm105, %v102
    // Predicated region
    $region14: #{mnist_cnn_forward.13} parent=1 // pred_check
      _
    $region15: #{mnist_cnn_forward.13} parent=1 // pred_check_branch
      %108 = sbr.rel (0) target = $region17
    $region16: #{mnist_cnn_forward.13} parent=1 // pred_region
      %s110 = ssub.s32 32, 32
      %111 = vsyncadd [#allocation3], %s110
      %s113 = sshll.u32 [#allocation2], 4
      %s114 = int_to_ptr.vmem [resolvable:$true] %s113
      %116 = dma.vmem_to_hbm [thread:$0]  %s114, 32, %s3, [#allocation3]
    $region17: #{mnist_cnn_forward.13} parent=1 // pred_fallthru
      _
    // Predicated region
    $region18: #{mnist_cnn_forward.13} parent=1 // pred_check
      _
    $region19: #{mnist_cnn_forward.13} parent=1 // pred_check_branch
      %118 = sbr.rel (0) target = $region21
    $region20: #{mnist_cnn_forward.13} parent=1 // pred_region
      %119 = dma.done [#allocation3], 32
    $region21: #{mnist_cnn_forward.13} parent=1 // pred_fallthru
      _
    %120 = vsyncpa [#allocation3], 1

</llo_original>
